<compile_context>
chip_gen: v7x
topology: tpu7x:2x2x1
jax: 0.10.0
libtpu: 0.0.40
codegen_flags: <defaults>
</compile_context>

<pallas_src>
import functools
import math

import jax
import jax.numpy as jnp
from jax import lax
from jax.experimental import pallas as pl
from jax.experimental.pallas import tpu as pltpu

K_ITERS = 10          # the module hardcodes K=10 in APPNP(K=10, alpha=alpha)
BN_EPS = 1e-5
LANE = 128


def _round_up(v, m):
    return ((v + m - 1) // m) * m


def _pad_last(x, target):
    pad = target - x.shape[-1]
    if pad == 0:
        return x
    widths = [(0, 0)] * (x.ndim - 1) + [(0, pad)]
    return jnp.pad(x, widths)


def appnpx_bn_kernel(*refs, alpha, k, num_mid):
    it = iter(refs)
    x_ref = next(it)
    a_hbm = next(it)                                  # (1-alpha)-scaled bf16 A_hat, in HBM (pl.ANY)
    w1_ref, b1_ref, g1_ref, be1_ref = next(it), next(it), next(it), next(it)
    if num_mid > 0:
        wx_ref, bx_ref, g3_ref, be3_ref = next(it), next(it), next(it), next(it)
    w2_ref, b2_ref, g2_ref, be2_ref = next(it), next(it), next(it), next(it)
    o_ref = next(it)
    a_vmem = next(it)                                 # VMEM scratch for A (bf16)
    a_sem = next(it)                                  # DMA semaphore

    alpha_f = jnp.float32(alpha)

    # Kick off the O(N^2) A_hat HBM->VMEM DMA immediately; the first Linear below does not
    # need A, so its MXU work hides (part of) the DMA latency.
    a_copy = pltpu.make_async_copy(a_hbm, a_vmem, a_sem)
    a_copy.start()

    # Layer-1 Linear (f32) overlapped with the A DMA.
    h = jnp.dot(x_ref[...], w1_ref[...], preferred_element_type=jnp.float32) + b1_ref[...]

    a_copy.wait()
    a_bf16 = a_vmem[...]      # already scaled by (1-alpha) in the wrapper; native bf16 MXU rate

    def propagate(h32):
        # alpha * h computed once per layer (hoisted out of the K loop). K is a static 10:
        # full unroll so the scheduler can overlap MXU push/pop with the VPU add.
        alpha_h = alpha_f * h32
        z = h32
        for _ in range(k):
            z = jnp.dot(a_bf16, z.astype(jnp.bfloat16),
                        preferred_element_type=jnp.float32) + alpha_h
        return z

    def batch_norm(z, gamma, beta):
        # One reduction pass: var = E[z^2] - mean^2 (biased, training-mode), then fold gamma
        # into a per-channel scale/shift so the normalize+affine is a single z*scale+shift.
        mean = jnp.mean(z, axis=0, keepdims=True)
        mean_sq = jnp.mean(z * z, axis=0, keepdims=True)
        var = mean_sq - mean * mean
        scale = gamma * lax.rsqrt(var + BN_EPS)
        shift = beta - mean * scale
        return z * scale + shift

    # Layer 1: Linear -> APPNP -> BN1 -> ReLU
    z = jnp.maximum(batch_norm(propagate(h), g1_ref[...], be1_ref[...]), 0.0)

    # Middle layers: Linear -> APPNP -> BN3 (shared affine params) -> ReLU
    for i in range(num_mid):
        h = jnp.dot(z, wx_ref[i], preferred_element_type=jnp.float32) + bx_ref[i]
        z = jnp.maximum(batch_norm(propagate(h), g3_ref[...], be3_ref[...]), 0.0)

    # Final layer: Linear -> APPNP -> BN2 (no ReLU)
    h = jnp.dot(z, w2_ref[...], preferred_element_type=jnp.float32) + b2_ref[...]
    o_ref[...] = batch_norm(propagate(h), g2_ref[...], be2_ref[...]).astype(o_ref.dtype)


def appnpx_bn_forward(x, a_hat, params, *, alpha, k=K_ITERS):
    """params keys: w1,b1,g1,be1, (wx [M,H,H], bx [M,H], g3, be3 if any middle layers), w2,b2,g2,be2."""
    n, _ = x.shape
    hidden = params["w1"].shape[1]
    num_classes = params["w2"].shape[1]
    # At hidden<=128 a 128-lane pad already fills every MXU pass on all generations; bump to
    # multiples of 256 on v6e/v7x only if the real hidden ever exceeds 128.
    h_pad = _round_up(hidden, LANE)
    c_pad = _round_up(num_classes, LANE)
    num_mid = 0 if params.get("wx") is None else int(params["wx"].shape[0])

    # Fold the (1 - alpha) propagation scale into A_hat ONCE (free: fuses with the GCN
    # normalization in XLA) and store it in bf16: halves A's footprint and puts the dominant
    # A@z loop on the native bf16 MXU path.
    a_in = ((1.0 - alpha) * a_hat).astype(jnp.bfloat16)

    # Lane-dense padding: pad every channel axis up to a multiple of 128 so h/z vregs are
    # fully utilized and all stores are unmasked vst. Zero padding is exact: padded columns
    # stay identically zero through Linear/APPNP/BN/ReLU and are sliced off at the end.
    w1 = _pad_last(params["w1"], h_pad)
    b1 = _pad_last(params["b1"].reshape(1, -1), h_pad)
    g1 = _pad_last(params["g1"].reshape(1, -1), h_pad)
    be1 = _pad_last(params["be1"].reshape(1, -1), h_pad)
    args = [x, a_in, w1, b1, g1, be1]
    if num_mid > 0:
        wx = jnp.pad(params["wx"], ((0, 0), (0, h_pad - hidden), (0, h_pad - hidden)))
        bx = _pad_last(params["bx"].reshape(num_mid, 1, -1), h_pad)
        g3 = _pad_last(params["g3"].reshape(1, -1), h_pad)
        be3 = _pad_last(params["be3"].reshape(1, -1), h_pad)
        args += [wx, bx, g3, be3]
    w2 = jnp.pad(params["w2"], ((0, h_pad - hidden), (0, c_pad - num_classes)))
    b2 = _pad_last(params["b2"].reshape(1, -1), c_pad)
    g2 = _pad_last(params["g2"].reshape(1, -1), c_pad)
    be2 = _pad_last(params["be2"].reshape(1, -1), c_pad)
    args += [w2, b2, g2, be2]

    # Scoped-VMEM budget from the actual buffers (A is the O(N^2) term, now bf16 and counted
    # once, in scratch), capped by the chip's physical VMEM (64 MiB on v7x, 128 MiB v5e/v6e).
    in_vmem_bytes = sum(int(a.size) * a.dtype.itemsize for a in args if a is not a_in)
    a_scratch_bytes = 2 * n * n                              # bf16 A resident in VMEM scratch
    act_bytes = 8 * 4 * n * max(h_pad, c_pad)                # h/z/alpha_h/bf16-z/BN temporaries
    out_bytes = 4 * n * c_pad
    need = in_vmem_bytes + a_scratch_bytes + act_bytes + out_bytes + (8 << 20)
    try:
        phys_vmem = int(pltpu.get_tpu_info().vmem_capacity_bytes)
    except Exception:
        phys_vmem = 64 << 20                                 # conservative (v7x per-TC VMEM)
    vmem_limit = int(min(need, phys_vmem - (8 << 20)))

    kernel = functools.partial(
        appnpx_bn_kernel, alpha=float(alpha), k=int(k), num_mid=num_mid)
    vmem = pl.BlockSpec(memory_space=pltpu.MemorySpace.VMEM)
    in_specs = [vmem, pl.BlockSpec(memory_space=pl.ANY)] + [vmem] * (len(args) - 2)

    # TODO(synk): for N beyond VMEM residency (~5k bf16-A on v7x, ~7k on v5e/v6e) switch to a
    # row-tiled grid over A/output (row axis "parallel" for the v7x dual-TC, K/layer axis
    # "arbitrary") with z kept resident in VMEM scratch and pipelined A row tiles; not needed
    # at these toy shapes.
    out_padded = pl.pallas_call(
        kernel,
        out_shape=jax.ShapeDtypeStruct((n, c_pad), jnp.float32),
        in_specs=in_specs,
        out_specs=vmem,
        scratch_shapes=[pltpu.VMEM((n, n), jnp.bfloat16),
                        pltpu.SemaphoreType.DMA],
        compiler_params=pltpu.CompilerParams(vmem_limit_bytes=vmem_limit),
    )(*args)
    return out_padded[:, :num_classes]


def build_dense_gcn_adj(edge_index, num_nodes):
    """Dense GCN-normalized adjacency with self-loops: A_hat = D^-1/2 (A + I) D^-1/2."""
    src, dst = edge_index[0], edge_index[1]
    a = jnp.zeros((num_nodes, num_nodes), jnp.float32)
    a = a.at[dst, src].set(1.0)                       # row = target i, col = source j
    a = a + jnp.eye(num_nodes, dtype=jnp.float32)     # self loops
    a = jnp.minimum(a, 1.0)
    deg = jnp.sum(a, axis=1)
    d_inv_sqrt = jnp.where(deg > 0, lax.rsqrt(deg), 0.0)
    return d_inv_sqrt[:, None] * a * d_inv_sqrt[None, :]


def reference_forward(x, a_hat, params, *, alpha, k=K_ITERS):
    def prop(h):
        z = h
        for _ in range(k):
            z = (1.0 - alpha) * (a_hat @ z) + alpha * h
        return z

    def bn(z, gamma, beta):
        mean = jnp.mean(z, axis=0, keepdims=True)
        var = jnp.mean((z - mean) ** 2, axis=0, keepdims=True)
        return (z - mean) / jnp.sqrt(var + BN_EPS) * gamma + beta

    h = x @ params["w1"] + params["b1"]
    z = jax.nn.relu(bn(prop(h), params["g1"], params["be1"]))
    if params.get("wx") is not None:
        for i in range(params["wx"].shape[0]):
            h = z @ params["wx"][i] + params["bx"][i]
            z = jax.nn.relu(bn(prop(h), params["g3"], params["be3"]))
    h = z @ params["w2"] + params["b2"]
    return bn(prop(h), params["g2"], params["be2"])


if __name__ == "__main__":
    key = jax.random.PRNGKey(0)
    N, F_IN, HIDDEN, NUM_CLASSES = 64, 32, 32, 16
    LAYER = 3           # layer-2 = 1 middle (Linear -> APPNP -> BN3 -> ReLU) block
    ALPHA = 0.1
    NUM_EDGES = 256

    keys = jax.random.split(key, 12)

    # Deterministic synthetic undirected graph.
    e_src = jax.random.randint(keys[0], (NUM_EDGES,), 0, N)
    e_dst = jax.random.randint(keys[1], (NUM_EDGES,), 0, N)
    edge_index = jnp.stack(
        [jnp.concatenate([e_src, e_dst]), jnp.concatenate([e_dst, e_src])], axis=0)
    a_hat = build_dense_gcn_adj(edge_index, N)

    x = jax.random.normal(keys[2], (N, F_IN), jnp.float32)

    def linear_init(kw, kb, fan_in, fan_out):
        bound = 1.0 / math.sqrt(fan_in)
        w = jax.random.uniform(kw, (fan_in, fan_out), jnp.float32, -bound, bound)
        b = jax.random.uniform(kb, (fan_out,), jnp.float32, -bound, bound)
        return w, b

    w1, b1 = linear_init(keys[3], keys[4], F_IN, HIDDEN)
    wx0, bx0 = linear_init(keys[5], keys[6], HIDDEN, HIDDEN)
    w2, b2 = linear_init(keys[7], keys[8], HIDDEN, NUM_CLASSES)

    # BatchNorm affine params (PyTorch default is ones/zeros; perturb slightly so the
    # affine path is actually exercised).
    g1 = 1.0 + 0.1 * jax.random.normal(keys[9], (HIDDEN,), jnp.float32)
    be1 = 0.1 * jax.random.normal(keys[10], (HIDDEN,), jnp.float32)
    g3 = jnp.ones((HIDDEN,), jnp.float32)
    be3 = jnp.zeros((HIDDEN,), jnp.float32)
    g2 = jnp.ones((NUM_CLASSES,), jnp.float32)
    be2 = 0.05 * jax.random.normal(keys[11], (NUM_CLASSES,), jnp.float32)

    params = dict(
        w1=w1, b1=b1, g1=g1, be1=be1,
        wx=wx0[None], bx=bx0[None], g3=g3, be3=be3,   # LAYER - 2 = 1 middle block
        w2=w2, b2=b2, g2=g2, be2=be2,
    )

    out = appnpx_bn_forward(x, a_hat, params, alpha=ALPHA)
    out = jax.block_until_ready(out)

    ref = reference_forward(x, a_hat, params, alpha=ALPHA)
    assert out.shape == (N, NUM_CLASSES)
    # bf16 A / bf16 z in the K=10 propagation -> ~1e-2-level agreement vs. the f32 reference.
    assert jnp.allclose(out, ref, atol=5e-2, rtol=5e-2), float(jnp.max(jnp.abs(out - ref)))

    print("KERNEL_OK")
</pallas_src>

<mosaic_0001>
module attributes {stable_mosaic.version = 11 : i64} {
  func.func @appnpx_bn_kernel(%arg0: memref<64x32xf32, #tpu.memory_space<vmem>>, %arg1: memref<64x64xbf16, #tpu.memory_space<any>>, %arg2: memref<32x128xf32, #tpu.memory_space<vmem>>, %arg3: memref<1x128xf32, #tpu.memory_space<vmem>>, %arg4: memref<1x128xf32, #tpu.memory_space<vmem>>, %arg5: memref<1x128xf32, #tpu.memory_space<vmem>>, %arg6: memref<1x128x128xf32, #tpu.memory_space<vmem>>, %arg7: memref<1x1x128xf32, #tpu.memory_space<vmem>>, %arg8: memref<1x128xf32, #tpu.memory_space<vmem>>, %arg9: memref<1x128xf32, #tpu.memory_space<vmem>>, %arg10: memref<128x128xf32, #tpu.memory_space<vmem>>, %arg11: memref<1x128xf32, #tpu.memory_space<vmem>>, %arg12: memref<1x128xf32, #tpu.memory_space<vmem>>, %arg13: memref<1x128xf32, #tpu.memory_space<vmem>>, %arg14: memref<64x128xf32, #tpu.memory_space<vmem>>, %arg15: memref<64x64xbf16, #tpu.memory_space<vmem>>, %arg16: memref<!tpu.dma_semaphore, #tpu.memory_space<semaphore_mem>>) attributes {dimension_semantics = [], scalar_prefetch = 0 : i64, scratch_operands = 2 : i64, tpu.core_type = #tpu.core_type<tc>} {
    tpu.enqueue_dma source(%arg1 : memref<64x64xbf16, #tpu.memory_space<any>>) target(%arg15 : memref<64x64xbf16, #tpu.memory_space<vmem>>) target_semaphore(%arg16 : memref<!tpu.dma_semaphore, #tpu.memory_space<semaphore_mem>>)
    %c0 = arith.constant 0 : index
    %c0_0 = arith.constant 0 : index
    %0 = vector.load %arg0[%c0, %c0_0] : memref<64x32xf32, #tpu.memory_space<vmem>>, vector<64x32xf32>
    %c0_1 = arith.constant 0 : index
    %c0_2 = arith.constant 0 : index
    %1 = vector.load %arg2[%c0_1, %c0_2] : memref<32x128xf32, #tpu.memory_space<vmem>>, vector<32x128xf32>
    %cst = arith.constant dense<0.000000e+00> : vector<64x128xf32>
    %2 = tpu.matmul %0, %1, %cst {dimension_numbers = #tpu.dot_dimension_numbers<[1], [0], [0], [1], [0, 0, 1, 1], [], []>} : vector<64x32xf32>, vector<32x128xf32>, vector<64x128xf32> -> vector<64x128xf32>
    %c0_3 = arith.constant 0 : index
    %c0_4 = arith.constant 0 : index
    %3 = vector.load %arg3[%c0_3, %c0_4] : memref<1x128xf32, #tpu.memory_space<vmem>>, vector<1x128xf32>
    %4 = vector.broadcast %3 : vector<1x128xf32> to vector<64x128xf32>
    %5 = arith.addf %2, %4 : vector<64x128xf32>
    tpu.wait_dma2 semaphore(%arg16 : memref<!tpu.dma_semaphore, #tpu.memory_space<semaphore_mem>>) src(%arg1 : memref<64x64xbf16, #tpu.memory_space<any>>) dst(%arg15 : memref<64x64xbf16, #tpu.memory_space<vmem>>)
    %c0_5 = arith.constant 0 : index
    %c0_6 = arith.constant 0 : index
    %6 = vector.load %arg15[%c0_5, %c0_6] : memref<64x64xbf16, #tpu.memory_space<vmem>>, vector<64x64xbf16>
    %cst_7 = arith.constant 1.000000e-01 : f32
    %7 = vector.broadcast %cst_7 : f32 to vector<64x128xf32>
    %8 = arith.mulf %7, %5 : vector<64x128xf32>
    %9 = arith.truncf %5 : vector<64x128xf32> to vector<64x128xbf16>
    %cst_8 = arith.constant dense<0.000000e+00> : vector<64x128xf32>
    %10 = tpu.matmul %6, %9, %cst_8 {dimension_numbers = #tpu.dot_dimension_numbers<[1], [0], [0], [1], [0, 0, 1, 1], [], []>} : vector<64x64xbf16>, vector<64x128xbf16>, vector<64x128xf32> -> vector<64x128xf32>
    %11 = arith.addf %10, %8 : vector<64x128xf32>
    %12 = arith.truncf %11 : vector<64x128xf32> to vector<64x128xbf16>
    %cst_9 = arith.constant dense<0.000000e+00> : vector<64x128xf32>
    %13 = tpu.matmul %6, %12, %cst_9 {dimension_numbers = #tpu.dot_dimension_numbers<[1], [0], [0], [1], [0, 0, 1, 1], [], []>} : vector<64x64xbf16>, vector<64x128xbf16>, vector<64x128xf32> -> vector<64x128xf32>
    %14 = arith.addf %13, %8 : vector<64x128xf32>
    %15 = arith.truncf %14 : vector<64x128xf32> to vector<64x128xbf16>
    %cst_10 = arith.constant dense<0.000000e+00> : vector<64x128xf32>
    %16 = tpu.matmul %6, %15, %cst_10 {dimension_numbers = #tpu.dot_dimension_numbers<[1], [0], [0], [1], [0, 0, 1, 1], [], []>} : vector<64x64xbf16>, vector<64x128xbf16>, vector<64x128xf32> -> vector<64x128xf32>
    %17 = arith.addf %16, %8 : vector<64x128xf32>
    %18 = arith.truncf %17 : vector<64x128xf32> to vector<64x128xbf16>
    %cst_11 = arith.constant dense<0.000000e+00> : vector<64x128xf32>
    %19 = tpu.matmul %6, %18, %cst_11 {dimension_numbers = #tpu.dot_dimension_numbers<[1], [0], [0], [1], [0, 0, 1, 1], [], []>} : vector<64x64xbf16>, vector<64x128xbf16>, vector<64x128xf32> -> vector<64x128xf32>
    %20 = arith.addf %19, %8 : vector<64x128xf32>
    %21 = arith.truncf %20 : vector<64x128xf32> to vector<64x128xbf16>
    %cst_12 = arith.constant dense<0.000000e+00> : vector<64x128xf32>
    %22 = tpu.matmul %6, %21, %cst_12 {dimension_numbers = #tpu.dot_dimension_numbers<[1], [0], [0], [1], [0, 0, 1, 1], [], []>} : vector<64x64xbf16>, vector<64x128xbf16>, vector<64x128xf32> -> vector<64x128xf32>
    %23 = arith.addf %22, %8 : vector<64x128xf32>
    %24 = arith.truncf %23 : vector<64x128xf32> to vector<64x128xbf16>
    %cst_13 = arith.constant dense<0.000000e+00> : vector<64x128xf32>
    %25 = tpu.matmul %6, %24, %cst_13 {dimension_numbers = #tpu.dot_dimension_numbers<[1], [0], [0], [1], [0, 0, 1, 1], [], []>} : vector<64x64xbf16>, vector<64x128xbf16>, vector<64x128xf32> -> vector<64x128xf32>
    %26 = arith.addf %25, %8 : vector<64x128xf32>
    %27 = arith.truncf %26 : vector<64x128xf32> to vector<64x128xbf16>
    %cst_14 = arith.constant dense<0.000000e+00> : vector<64x128xf32>
    %28 = tpu.matmul %6, %27, %cst_14 {dimension_numbers = #tpu.dot_dimension_numbers<[1], [0], [0], [1], [0, 0, 1, 1], [], []>} : vector<64x64xbf16>, vector<64x128xbf16>, vector<64x128xf32> -> vector<64x128xf32>
    %29 = arith.addf %28, %8 : vector<64x128xf32>
    %30 = arith.truncf %29 : vector<64x128xf32> to vector<64x128xbf16>
    %cst_15 = arith.constant dense<0.000000e+00> : vector<64x128xf32>
    %31 = tpu.matmul %6, %30, %cst_15 {dimension_numbers = #tpu.dot_dimension_numbers<[1], [0], [0], [1], [0, 0, 1, 1], [], []>} : vector<64x64xbf16>, vector<64x128xbf16>, vector<64x128xf32> -> vector<64x128xf32>
    %32 = arith.addf %31, %8 : vector<64x128xf32>
    %33 = arith.truncf %32 : vector<64x128xf32> to vector<64x128xbf16>
    %cst_16 = arith.constant dense<0.000000e+00> : vector<64x128xf32>
    %34 = tpu.matmul %6, %33, %cst_16 {dimension_numbers = #tpu.dot_dimension_numbers<[1], [0], [0], [1], [0, 0, 1, 1], [], []>} : vector<64x64xbf16>, vector<64x128xbf16>, vector<64x128xf32> -> vector<64x128xf32>
    %35 = arith.addf %34, %8 : vector<64x128xf32>
    %36 = arith.truncf %35 : vector<64x128xf32> to vector<64x128xbf16>
    %cst_17 = arith.constant dense<0.000000e+00> : vector<64x128xf32>
    %37 = tpu.matmul %6, %36, %cst_17 {dimension_numbers = #tpu.dot_dimension_numbers<[1], [0], [0], [1], [0, 0, 1, 1], [], []>} : vector<64x64xbf16>, vector<64x128xbf16>, vector<64x128xf32> -> vector<64x128xf32>
    %38 = arith.addf %37, %8 : vector<64x128xf32>
    %c0_18 = arith.constant 0 : index
    %c0_19 = arith.constant 0 : index
    %39 = vector.load %arg4[%c0_18, %c0_19] : memref<1x128xf32, #tpu.memory_space<vmem>>, vector<1x128xf32>
    %c0_20 = arith.constant 0 : index
    %c0_21 = arith.constant 0 : index
    %40 = vector.load %arg5[%c0_20, %c0_21] : memref<1x128xf32, #tpu.memory_space<vmem>>, vector<1x128xf32>
    %cst_22 = arith.constant dense<0.000000e+00> : vector<128xf32>
    %41 = vector.multi_reduction <add>, %38, %cst_22 [0] : vector<64x128xf32> to vector<128xf32>
    %42 = vector.shape_cast %41 : vector<128xf32> to vector<1x128xf32>
    %cst_23 = arith.constant 6.400000e+01 : f32
    %43 = vector.broadcast %cst_23 : f32 to vector<1x128xf32>
    %44 = arith.divf %42, %43 : vector<1x128xf32>
    %45 = arith.mulf %38, %38 : vector<64x128xf32>
    %cst_24 = arith.constant dense<0.000000e+00> : vector<128xf32>
    %46 = vector.multi_reduction <add>, %45, %cst_24 [0] : vector<64x128xf32> to vector<128xf32>
    %47 = vector.shape_cast %46 : vector<128xf32> to vector<1x128xf32>
    %cst_25 = arith.constant 6.400000e+01 : f32
    %48 = vector.broadcast %cst_25 : f32 to vector<1x128xf32>
    %49 = arith.divf %47, %48 : vector<1x128xf32>
    %50 = arith.mulf %44, %44 : vector<1x128xf32>
    %51 = arith.subf %49, %50 : vector<1x128xf32>
    %cst_26 = arith.constant 9.99999974E-6 : f32
    %52 = vector.broadcast %cst_26 : f32 to vector<1x128xf32>
    %53 = arith.addf %51, %52 : vector<1x128xf32>
    %54 = math.rsqrt %53 : vector<1x128xf32>
    %55 = arith.mulf %39, %54 : vector<1x128xf32>
    %56 = arith.mulf %44, %55 : vector<1x128xf32>
    %57 = arith.subf %40, %56 : vector<1x128xf32>
    %58 = vector.broadcast %55 : vector<1x128xf32> to vector<64x128xf32>
    %59 = arith.mulf %38, %58 : vector<64x128xf32>
    %60 = vector.broadcast %57 : vector<1x128xf32> to vector<64x128xf32>
    %61 = arith.addf %59, %60 : vector<64x128xf32>
    %cst_27 = arith.constant 0.000000e+00 : f32
    %62 = vector.broadcast %cst_27 : f32 to vector<64x128xf32>
    %63 = arith.maximumf %61, %62 : vector<64x128xf32>
    %c0_28 = arith.constant 0 : index
    %c0_29 = arith.constant 0 : index
    %c0_30 = arith.constant 0 : index
    %64 = vector.load %arg6[%c0_28, %c0_29, %c0_30] : memref<1x128x128xf32, #tpu.memory_space<vmem>>, vector<1x128x128xf32>
    %65 = vector.shape_cast %64 : vector<1x128x128xf32> to vector<128x128xf32>
    %cst_31 = arith.constant dense<0.000000e+00> : vector<64x128xf32>
    %66 = tpu.matmul %63, %65, %cst_31 {dimension_numbers = #tpu.dot_dimension_numbers<[1], [0], [0], [1], [0, 0, 1, 1], [], []>} : vector<64x128xf32>, vector<128x128xf32>, vector<64x128xf32> -> vector<64x128xf32>
    %c0_32 = arith.constant 0 : index
    %c0_33 = arith.constant 0 : index
    %c0_34 = arith.constant 0 : index
    %67 = vector.load %arg7[%c0_32, %c0_33, %c0_34] : memref<1x1x128xf32, #tpu.memory_space<vmem>>, vector<1x1x128xf32>
    %68 = vector.shape_cast %67 : vector<1x1x128xf32> to vector<1x128xf32>
    %69 = vector.broadcast %68 : vector<1x128xf32> to vector<64x128xf32>
    %70 = arith.addf %66, %69 : vector<64x128xf32>
    %cst_35 = arith.constant 1.000000e-01 : f32
    %71 = vector.broadcast %cst_35 : f32 to vector<64x128xf32>
    %72 = arith.mulf %71, %70 : vector<64x128xf32>
    %73 = arith.truncf %70 : vector<64x128xf32> to vector<64x128xbf16>
    %cst_36 = arith.constant dense<0.000000e+00> : vector<64x128xf32>
    %74 = tpu.matmul %6, %73, %cst_36 {dimension_numbers = #tpu.dot_dimension_numbers<[1], [0], [0], [1], [0, 0, 1, 1], [], []>} : vector<64x64xbf16>, vector<64x128xbf16>, vector<64x128xf32> -> vector<64x128xf32>
    %75 = arith.addf %74, %72 : vector<64x128xf32>
    %76 = arith.truncf %75 : vector<64x128xf32> to vector<64x128xbf16>
    %cst_37 = arith.constant dense<0.000000e+00> : vector<64x128xf32>
    %77 = tpu.matmul %6, %76, %cst_37 {dimension_numbers = #tpu.dot_dimension_numbers<[1], [0], [0], [1], [0, 0, 1, 1], [], []>} : vector<64x64xbf16>, vector<64x128xbf16>, vector<64x128xf32> -> vector<64x128xf32>
    %78 = arith.addf %77, %72 : vector<64x128xf32>
    %79 = arith.truncf %78 : vector<64x128xf32> to vector<64x128xbf16>
    %cst_38 = arith.constant dense<0.000000e+00> : vector<64x128xf32>
    %80 = tpu.matmul %6, %79, %cst_38 {dimension_numbers = #tpu.dot_dimension_numbers<[1], [0], [0], [1], [0, 0, 1, 1], [], []>} : vector<64x64xbf16>, vector<64x128xbf16>, vector<64x128xf32> -> vector<64x128xf32>
    %81 = arith.addf %80, %72 : vector<64x128xf32>
    %82 = arith.truncf %81 : vector<64x128xf32> to vector<64x128xbf16>
    %cst_39 = arith.constant dense<0.000000e+00> : vector<64x128xf32>
    %83 = tpu.matmul %6, %82, %cst_39 {dimension_numbers = #tpu.dot_dimension_numbers<[1], [0], [0], [1], [0, 0, 1, 1], [], []>} : vector<64x64xbf16>, vector<64x128xbf16>, vector<64x128xf32> -> vector<64x128xf32>
    %84 = arith.addf %83, %72 : vector<64x128xf32>
    %85 = arith.truncf %84 : vector<64x128xf32> to vector<64x128xbf16>
    %cst_40 = arith.constant dense<0.000000e+00> : vector<64x128xf32>
    %86 = tpu.matmul %6, %85, %cst_40 {dimension_numbers = #tpu.dot_dimension_numbers<[1], [0], [0], [1], [0, 0, 1, 1], [], []>} : vector<64x64xbf16>, vector<64x128xbf16>, vector<64x128xf32> -> vector<64x128xf32>
    %87 = arith.addf %86, %72 : vector<64x128xf32>
    %88 = arith.truncf %87 : vector<64x128xf32> to vector<64x128xbf16>
    %cst_41 = arith.constant dense<0.000000e+00> : vector<64x128xf32>
    %89 = tpu.matmul %6, %88, %cst_41 {dimension_numbers = #tpu.dot_dimension_numbers<[1], [0], [0], [1], [0, 0, 1, 1], [], []>} : vector<64x64xbf16>, vector<64x128xbf16>, vector<64x128xf32> -> vector<64x128xf32>
    %90 = arith.addf %89, %72 : vector<64x128xf32>
    %91 = arith.truncf %90 : vector<64x128xf32> to vector<64x128xbf16>
    %cst_42 = arith.constant dense<0.000000e+00> : vector<64x128xf32>
    %92 = tpu.matmul %6, %91, %cst_42 {dimension_numbers = #tpu.dot_dimension_numbers<[1], [0], [0], [1], [0, 0, 1, 1], [], []>} : vector<64x64xbf16>, vector<64x128xbf16>, vector<64x128xf32> -> vector<64x128xf32>
    %93 = arith.addf %92, %72 : vector<64x128xf32>
    %94 = arith.truncf %93 : vector<64x128xf32> to vector<64x128xbf16>
    %cst_43 = arith.constant dense<0.000000e+00> : vector<64x128xf32>
    %95 = tpu.matmul %6, %94, %cst_43 {dimension_numbers = #tpu.dot_dimension_numbers<[1], [0], [0], [1], [0, 0, 1, 1], [], []>} : vector<64x64xbf16>, vector<64x128xbf16>, vector<64x128xf32> -> vector<64x128xf32>
    %96 = arith.addf %95, %72 : vector<64x128xf32>
    %97 = arith.truncf %96 : vector<64x128xf32> to vector<64x128xbf16>
    %cst_44 = arith.constant dense<0.000000e+00> : vector<64x128xf32>
    %98 = tpu.matmul %6, %97, %cst_44 {dimension_numbers = #tpu.dot_dimension_numbers<[1], [0], [0], [1], [0, 0, 1, 1], [], []>} : vector<64x64xbf16>, vector<64x128xbf16>, vector<64x128xf32> -> vector<64x128xf32>
    %99 = arith.addf %98, %72 : vector<64x128xf32>
    %100 = arith.truncf %99 : vector<64x128xf32> to vector<64x128xbf16>
    %cst_45 = arith.constant dense<0.000000e+00> : vector<64x128xf32>
    %101 = tpu.matmul %6, %100, %cst_45 {dimension_numbers = #tpu.dot_dimension_numbers<[1], [0], [0], [1], [0, 0, 1, 1], [], []>} : vector<64x64xbf16>, vector<64x128xbf16>, vector<64x128xf32> -> vector<64x128xf32>
    %102 = arith.addf %101, %72 : vector<64x128xf32>
    %c0_46 = arith.constant 0 : index
    %c0_47 = arith.constant 0 : index
    %103 = vector.load %arg8[%c0_46, %c0_47] : memref<1x128xf32, #tpu.memory_space<vmem>>, vector<1x128xf32>
    %c0_48 = arith.constant 0 : index
    %c0_49 = arith.constant 0 : index
    %104 = vector.load %arg9[%c0_48, %c0_49] : memref<1x128xf32, #tpu.memory_space<vmem>>, vector<1x128xf32>
    %cst_50 = arith.constant dense<0.000000e+00> : vector<128xf32>
    %105 = vector.multi_reduction <add>, %102, %cst_50 [0] : vector<64x128xf32> to vector<128xf32>
    %106 = vector.shape_cast %105 : vector<128xf32> to vector<1x128xf32>
    %cst_51 = arith.constant 6.400000e+01 : f32
    %107 = vector.broadcast %cst_51 : f32 to vector<1x128xf32>
    %108 = arith.divf %106, %107 : vector<1x128xf32>
    %109 = arith.mulf %102, %102 : vector<64x128xf32>
    %cst_52 = arith.constant dense<0.000000e+00> : vector<128xf32>
    %110 = vector.multi_reduction <add>, %109, %cst_52 [0] : vector<64x128xf32> to vector<128xf32>
    %111 = vector.shape_cast %110 : vector<128xf32> to vector<1x128xf32>
    %cst_53 = arith.constant 6.400000e+01 : f32
    %112 = vector.broadcast %cst_53 : f32 to vector<1x128xf32>
    %113 = arith.divf %111, %112 : vector<1x128xf32>
    %114 = arith.mulf %108, %108 : vector<1x128xf32>
    %115 = arith.subf %113, %114 : vector<1x128xf32>
    %cst_54 = arith.constant 9.99999974E-6 : f32
    %116 = vector.broadcast %cst_54 : f32 to vector<1x128xf32>
    %117 = arith.addf %115, %116 : vector<1x128xf32>
    %118 = math.rsqrt %117 : vector<1x128xf32>
    %119 = arith.mulf %103, %118 : vector<1x128xf32>
    %120 = arith.mulf %108, %119 : vector<1x128xf32>
    %121 = arith.subf %104, %120 : vector<1x128xf32>
    %122 = vector.broadcast %119 : vector<1x128xf32> to vector<64x128xf32>
    %123 = arith.mulf %102, %122 : vector<64x128xf32>
    %124 = vector.broadcast %121 : vector<1x128xf32> to vector<64x128xf32>
    %125 = arith.addf %123, %124 : vector<64x128xf32>
    %cst_55 = arith.constant 0.000000e+00 : f32
    %126 = vector.broadcast %cst_55 : f32 to vector<64x128xf32>
    %127 = arith.maximumf %125, %126 : vector<64x128xf32>
    %c0_56 = arith.constant 0 : index
    %c0_57 = arith.constant 0 : index
    %128 = vector.load %arg10[%c0_56, %c0_57] : memref<128x128xf32, #tpu.memory_space<vmem>>, vector<128x128xf32>
    %cst_58 = arith.constant dense<0.000000e+00> : vector<64x128xf32>
    %129 = tpu.matmul %127, %128, %cst_58 {dimension_numbers = #tpu.dot_dimension_numbers<[1], [0], [0], [1], [0, 0, 1, 1], [], []>} : vector<64x128xf32>, vector<128x128xf32>, vector<64x128xf32> -> vector<64x128xf32>
    %c0_59 = arith.constant 0 : index
    %c0_60 = arith.constant 0 : index
    %130 = vector.load %arg11[%c0_59, %c0_60] : memref<1x128xf32, #tpu.memory_space<vmem>>, vector<1x128xf32>
    %131 = vector.broadcast %130 : vector<1x128xf32> to vector<64x128xf32>
    %132 = arith.addf %129, %131 : vector<64x128xf32>
    %cst_61 = arith.constant 1.000000e-01 : f32
    %133 = vector.broadcast %cst_61 : f32 to vector<64x128xf32>
    %134 = arith.mulf %133, %132 : vector<64x128xf32>
    %135 = arith.truncf %132 : vector<64x128xf32> to vector<64x128xbf16>
    %cst_62 = arith.constant dense<0.000000e+00> : vector<64x128xf32>
    %136 = tpu.matmul %6, %135, %cst_62 {dimension_numbers = #tpu.dot_dimension_numbers<[1], [0], [0], [1], [0, 0, 1, 1], [], []>} : vector<64x64xbf16>, vector<64x128xbf16>, vector<64x128xf32> -> vector<64x128xf32>
    %137 = arith.addf %136, %134 : vector<64x128xf32>
    %138 = arith.truncf %137 : vector<64x128xf32> to vector<64x128xbf16>
    %cst_63 = arith.constant dense<0.000000e+00> : vector<64x128xf32>
    %139 = tpu.matmul %6, %138, %cst_63 {dimension_numbers = #tpu.dot_dimension_numbers<[1], [0], [0], [1], [0, 0, 1, 1], [], []>} : vector<64x64xbf16>, vector<64x128xbf16>, vector<64x128xf32> -> vector<64x128xf32>
    %140 = arith.addf %139, %134 : vector<64x128xf32>
    %141 = arith.truncf %140 : vector<64x128xf32> to vector<64x128xbf16>
    %cst_64 = arith.constant dense<0.000000e+00> : vector<64x128xf32>
    %142 = tpu.matmul %6, %141, %cst_64 {dimension_numbers = #tpu.dot_dimension_numbers<[1], [0], [0], [1], [0, 0, 1, 1], [], []>} : vector<64x64xbf16>, vector<64x128xbf16>, vector<64x128xf32> -> vector<64x128xf32>
    %143 = arith.addf %142, %134 : vector<64x128xf32>
    %144 = arith.truncf %143 : vector<64x128xf32> to vector<64x128xbf16>
    %cst_65 = arith.constant dense<0.000000e+00> : vector<64x128xf32>
    %145 = tpu.matmul %6, %144, %cst_65 {dimension_numbers = #tpu.dot_dimension_numbers<[1], [0], [0], [1], [0, 0, 1, 1], [], []>} : vector<64x64xbf16>, vector<64x128xbf16>, vector<64x128xf32> -> vector<64x128xf32>
    %146 = arith.addf %145, %134 : vector<64x128xf32>
    %147 = arith.truncf %146 : vector<64x128xf32> to vector<64x128xbf16>
    %cst_66 = arith.constant dense<0.000000e+00> : vector<64x128xf32>
    %148 = tpu.matmul %6, %147, %cst_66 {dimension_numbers = #tpu.dot_dimension_numbers<[1], [0], [0], [1], [0, 0, 1, 1], [], []>} : vector<64x64xbf16>, vector<64x128xbf16>, vector<64x128xf32> -> vector<64x128xf32>
    %149 = arith.addf %148, %134 : vector<64x128xf32>
    %150 = arith.truncf %149 : vector<64x128xf32> to vector<64x128xbf16>
    %cst_67 = arith.constant dense<0.000000e+00> : vector<64x128xf32>
    %151 = tpu.matmul %6, %150, %cst_67 {dimension_numbers = #tpu.dot_dimension_numbers<[1], [0], [0], [1], [0, 0, 1, 1], [], []>} : vector<64x64xbf16>, vector<64x128xbf16>, vector<64x128xf32> -> vector<64x128xf32>
    %152 = arith.addf %151, %134 : vector<64x128xf32>
    %153 = arith.truncf %152 : vector<64x128xf32> to vector<64x128xbf16>
    %cst_68 = arith.constant dense<0.000000e+00> : vector<64x128xf32>
    %154 = tpu.matmul %6, %153, %cst_68 {dimension_numbers = #tpu.dot_dimension_numbers<[1], [0], [0], [1], [0, 0, 1, 1], [], []>} : vector<64x64xbf16>, vector<64x128xbf16>, vector<64x128xf32> -> vector<64x128xf32>
    %155 = arith.addf %154, %134 : vector<64x128xf32>
    %156 = arith.truncf %155 : vector<64x128xf32> to vector<64x128xbf16>
    %cst_69 = arith.constant dense<0.000000e+00> : vector<64x128xf32>
    %157 = tpu.matmul %6, %156, %cst_69 {dimension_numbers = #tpu.dot_dimension_numbers<[1], [0], [0], [1], [0, 0, 1, 1], [], []>} : vector<64x64xbf16>, vector<64x128xbf16>, vector<64x128xf32> -> vector<64x128xf32>
    %158 = arith.addf %157, %134 : vector<64x128xf32>
    %159 = arith.truncf %158 : vector<64x128xf32> to vector<64x128xbf16>
    %cst_70 = arith.constant dense<0.000000e+00> : vector<64x128xf32>
    %160 = tpu.matmul %6, %159, %cst_70 {dimension_numbers = #tpu.dot_dimension_numbers<[1], [0], [0], [1], [0, 0, 1, 1], [], []>} : vector<64x64xbf16>, vector<64x128xbf16>, vector<64x128xf32> -> vector<64x128xf32>
    %161 = arith.addf %160, %134 : vector<64x128xf32>
    %162 = arith.truncf %161 : vector<64x128xf32> to vector<64x128xbf16>
    %cst_71 = arith.constant dense<0.000000e+00> : vector<64x128xf32>
    %163 = tpu.matmul %6, %162, %cst_71 {dimension_numbers = #tpu.dot_dimension_numbers<[1], [0], [0], [1], [0, 0, 1, 1], [], []>} : vector<64x64xbf16>, vector<64x128xbf16>, vector<64x128xf32> -> vector<64x128xf32>
    %164 = arith.addf %163, %134 : vector<64x128xf32>
    %c0_72 = arith.constant 0 : index
    %c0_73 = arith.constant 0 : index
    %165 = vector.load %arg12[%c0_72, %c0_73] : memref<1x128xf32, #tpu.memory_space<vmem>>, vector<1x128xf32>
    %c0_74 = arith.constant 0 : index
    %c0_75 = arith.constant 0 : index
    %166 = vector.load %arg13[%c0_74, %c0_75] : memref<1x128xf32, #tpu.memory_space<vmem>>, vector<1x128xf32>
    %cst_76 = arith.constant dense<0.000000e+00> : vector<128xf32>
    %167 = vector.multi_reduction <add>, %164, %cst_76 [0] : vector<64x128xf32> to vector<128xf32>
    %168 = vector.shape_cast %167 : vector<128xf32> to vector<1x128xf32>
    %cst_77 = arith.constant 6.400000e+01 : f32
    %169 = vector.broadcast %cst_77 : f32 to vector<1x128xf32>
    %170 = arith.divf %168, %169 : vector<1x128xf32>
    %171 = arith.mulf %164, %164 : vector<64x128xf32>
    %cst_78 = arith.constant dense<0.000000e+00> : vector<128xf32>
    %172 = vector.multi_reduction <add>, %171, %cst_78 [0] : vector<64x128xf32> to vector<128xf32>
    %173 = vector.shape_cast %172 : vector<128xf32> to vector<1x128xf32>
    %cst_79 = arith.constant 6.400000e+01 : f32
    %174 = vector.broadcast %cst_79 : f32 to vector<1x128xf32>
    %175 = arith.divf %173, %174 : vector<1x128xf32>
    %176 = arith.mulf %170, %170 : vector<1x128xf32>
    %177 = arith.subf %175, %176 : vector<1x128xf32>
    %cst_80 = arith.constant 9.99999974E-6 : f32
    %178 = vector.broadcast %cst_80 : f32 to vector<1x128xf32>
    %179 = arith.addf %177, %178 : vector<1x128xf32>
    %180 = math.rsqrt %179 : vector<1x128xf32>
    %181 = arith.mulf %165, %180 : vector<1x128xf32>
    %182 = arith.mulf %170, %181 : vector<1x128xf32>
    %183 = arith.subf %166, %182 : vector<1x128xf32>
    %184 = vector.broadcast %181 : vector<1x128xf32> to vector<64x128xf32>
    %185 = arith.mulf %164, %184 : vector<64x128xf32>
    %186 = vector.broadcast %183 : vector<1x128xf32> to vector<64x128xf32>
    %187 = arith.addf %185, %186 : vector<64x128xf32>
    %c0_81 = arith.constant 0 : index
    %c0_82 = arith.constant 0 : index
    %188 = vector.load %arg14[%c0_81, %c0_82] : memref<64x128xf32, #tpu.memory_space<vmem>>, vector<64x128xf32>
    tpu.vector_store %arg14[%c0_81, %c0_82], %187 {strides = array<i32>} : memref<64x128xf32, #tpu.memory_space<vmem>>, vector<64x128xf32>,
    return
  }
}

</mosaic_0001>

<llo_original>
// kernel: tpu_custom_call.1
$region0: #{tpu_custom_call.1}
  #allocation0 [shape = 'u32[]', space=smem, size = 0x4, offset = 0x4, fixed_abs, tag = 'smem constant byte address 0x4 - core index']
  #allocation1 [shape = 'u32[144,128]{1,0:T(1,128)}', space=vmem, size = 0x12000, scoped, tag = 'internal scratch']
  #allocation2 [shape = 'bf16[64,64]{1,0:T(16,128)(2,1)}', space=vmem, size = 0x4000, scoped, tag = 'scratch operand']
  #allocation3 [shape = 's32[1]{0}', space=sflag, size = 0x4, scoped, tag = 'scratch operand']
  #allocation11 [shape = 's32[]', space=sflag, size = 0x4, offset = 0, fixed_abs, tag = 'sflag constant byte address 0x0 - dummy sync flag']
  #allocation12 [shape = 's32[]', space=sflag, size = 0x4, offset = 0, fixed_abs, tag = 'sflag constant byte address 0x0 - dummy sync flag']
  #allocation13 [shape = 'u32[]', space=smem, size = 0x4, offset = 0x44, fixed_abs, tag = 'smem constant byte address 0x44 - assertion arg 0']
  #allocation14 [shape = 'u32[]', space=smem, size = 0x4, offset = 0x48, fixed_abs, tag = 'smem constant byte address 0x48 - assertion arg 1']
  %s0 = inlined_call_operand.vmem [shape: f32[64,32], index: 0, kind: input, shape index: {}]
  %s1 = inlined_call_operand.hbm [shape: bf16[64,64], index: 1, kind: input, shape index: {}]
  %s2 = inlined_call_operand.hbm [shape: f32[32,128], index: 2, kind: input, shape index: {}]
  %s3 = inlined_call_operand.vmem [shape: f32[1,128], index: 3, kind: input, shape index: {}]
  %s4 = inlined_call_operand.vmem [shape: f32[1,128], index: 4, kind: input, shape index: {}]
  %s5 = inlined_call_operand.vmem [shape: f32[1,128], index: 5, kind: input, shape index: {}]
  %s6 = inlined_call_operand.hbm [shape: f32[1,128,128], index: 6, kind: input, shape index: {}]
  %s7 = inlined_call_operand.vmem [shape: f32[1,1,128], index: 7, kind: input, shape index: {}]
  %s8 = inlined_call_operand.vmem [shape: f32[1,128], index: 8, kind: input, shape index: {}]
  %s9 = inlined_call_operand.hbm [shape: f32[1,128], index: 9, kind: input, shape index: {}]
  %s10 = inlined_call_operand.vmem [shape: f32[128,128], index: 10, kind: input, shape index: {}]
  %s11 = inlined_call_operand.vmem [shape: f32[1,128], index: 11, kind: input, shape index: {}]
  %s12 = inlined_call_operand.vmem [shape: f32[1,128], index: 12, kind: input, shape index: {}]
  %s13 = inlined_call_operand.vmem [shape: f32[1,128], index: 13, kind: input, shape index: {}]
  %s14 = inlined_call_operand.hbm [shape: f32[64,128], index: 14, kind: output, shape index: {}]
  %s15 = sld [smem:[#allocation0]]
  $region78: #{tpu_custom_call.1} parent=0
    _
  %s17 = ssub.s32 1, %s15
  %s18 = scalar_select 0, %s17, %s15
  $region1: #{tpu_custom_call.1} parent=0
    #allocation4 [shape = 'u8[16384]{0}', space=vmem, size = 0x4000, scoped, tag = 'input window, operand 2, single buffered']
    #allocation5 [shape = 's32[1]{0}', space=sflag, size = 0x4, scoped, tag = 'scoped memory for tpu_custom_call.1']
    #allocation6 [shape = 's32[1]{0}', space=sflag, size = 0x4, scoped, tag = 'scoped memory for tpu_custom_call.1']
    #allocation7 [shape = 'u8[65536]{0}', space=vmem, size = 0x10000, scoped, tag = 'input window, operand 6, single buffered']
    #allocation8 [shape = 's32[1]{0}', space=sflag, size = 0x4, scoped, tag = 'scoped memory for tpu_custom_call.1']
    #allocation9 [shape = 'u8[512]{0}', space=vmem, size = 0x400, scoped, tag = 'input window, operand 9, single buffered']
    #allocation10 [shape = 'u8[32768]{0}', space=vmem, size = 0x8000, scoped, tag = 'output window, operand 0, single buffered']
    %19 = vsyncpa [#allocation5], 0
    %20 = vsyncpa [#allocation8], 0
    %21 = vsyncpa [#allocation6], 0
    // Predicated region
    $region2: #{tpu_custom_call.1} parent=1 // pred_check
      _
    $region3: #{tpu_custom_call.1} parent=1 // pred_check_branch
      %23 = sbr.rel (0) target = $region5
    $region4: #{tpu_custom_call.1} parent=1 // pred_region
      _
    $region5: #{tpu_custom_call.1} parent=1 // pred_fallthru
      _
    // Predicated region
    $region6: #{tpu_custom_call.1} parent=1 // pred_check
      _
    $region7: #{tpu_custom_call.1} parent=1 // pred_check_branch
      %25 = sbr.rel (0) target = $region9
    $region8: #{tpu_custom_call.1} parent=1 // pred_region
      %s27 = ssub.s32 512, 512
      %28 = vsyncadd [#allocation5], %s27
      %s29 = sshll.u32 [#allocation4], 4
      %s30 = int_to_ptr.vmem [resolvable:$true] %s29
      %35 = dma.hbm_to_vmem [thread:$0]  %s2, 512, %s30, [#allocation5], 128, 128, 8
    $region9: #{tpu_custom_call.1} parent=1 // pred_fallthru
      _
    // Predicated region
    $region10: #{tpu_custom_call.1} parent=1 // pred_check
      _
    $region11: #{tpu_custom_call.1} parent=1 // pred_check_branch
      %37 = sbr.rel (0) target = $region13
    $region12: #{tpu_custom_call.1} parent=1 // pred_region
      _
    $region13: #{tpu_custom_call.1} parent=1 // pred_fallthru
      _
    // Predicated region
    $region14: #{tpu_custom_call.1} parent=1 // pred_check
      _
    $region15: #{tpu_custom_call.1} parent=1 // pred_check_branch
      %39 = sbr.rel (0) target = $region17
    $region16: #{tpu_custom_call.1} parent=1 // pred_region
      _
    $region17: #{tpu_custom_call.1} parent=1 // pred_fallthru
      _
    // Predicated region
    $region18: #{tpu_custom_call.1} parent=1 // pred_check
      _
    $region19: #{tpu_custom_call.1} parent=1 // pred_check_branch
      %41 = sbr.rel (0) target = $region21
    $region20: #{tpu_custom_call.1} parent=1 // pred_region
      _
    $region21: #{tpu_custom_call.1} parent=1 // pred_fallthru
      _
    // Predicated region
    $region22: #{tpu_custom_call.1} parent=1 // pred_check
      _
    $region23: #{tpu_custom_call.1} parent=1 // pred_check_branch
      %43 = sbr.rel (0) target = $region25
    $region24: #{tpu_custom_call.1} parent=1 // pred_region
      %s45 = ssub.s32 2048, 2048
      %46 = vsyncadd [#allocation8], %s45
      %s47 = sshll.u32 [#allocation7], 4
      %s48 = int_to_ptr.vmem [resolvable:$true] %s47
      %53 = dma.hbm_to_vmem [thread:$0]  %s6, 2048, %s48, [#allocation8], 128, 128, 8
    $region25: #{tpu_custom_call.1} parent=1 // pred_fallthru
      _
    // Predicated region
    $region26: #{tpu_custom_call.1} parent=1 // pred_check
      _
    $region27: #{tpu_custom_call.1} parent=1 // pred_check_branch
      %55 = sbr.rel (0) target = $region29
    $region28: #{tpu_custom_call.1} parent=1 // pred_region
      _
    $region29: #{tpu_custom_call.1} parent=1 // pred_fallthru
      _
    // Predicated region
    $region30: #{tpu_custom_call.1} parent=1 // pred_check
      _
    $region31: #{tpu_custom_call.1} parent=1 // pred_check_branch
      %57 = sbr.rel (0) target = $region33
    $region32: #{tpu_custom_call.1} parent=1 // pred_region
      _
    $region33: #{tpu_custom_call.1} parent=1 // pred_fallthru
      _
    // Predicated region
    $region34: #{tpu_custom_call.1} parent=1 // pred_check
      _
    $region35: #{tpu_custom_call.1} parent=1 // pred_check_branch
      %59 = sbr.rel (0) target = $region37
    $region36: #{tpu_custom_call.1} parent=1 // pred_region
      %s61 = ssub.s32 16, 16
      %62 = vsyncadd [#allocation8], %s61
      %s64 = sshll.u32 [#allocation9], 4
      %s65 = int_to_ptr.vmem [resolvable:$true] %s64
      %67 = dma.hbm_to_vmem [thread:$0]  %s9, 16, %s65, [#allocation8]
    $region37: #{tpu_custom_call.1} parent=1 // pred_fallthru
      _
    // Predicated region
    $region38: #{tpu_custom_call.1} parent=1 // pred_check
      _
    $region39: #{tpu_custom_call.1} parent=1 // pred_check_branch
      %69 = sbr.rel (0) target = $region41
    $region40: #{tpu_custom_call.1} parent=1 // pred_region
      _
    $region41: #{tpu_custom_call.1} parent=1 // pred_fallthru
      _
    // Predicated region
    $region42: #{tpu_custom_call.1} parent=1 // pred_check
      _
    $region43: #{tpu_custom_call.1} parent=1 // pred_check_branch
      %71 = sbr.rel (0) target = $region45
    $region44: #{tpu_custom_call.1} parent=1 // pred_region
      _
    $region45: #{tpu_custom_call.1} parent=1 // pred_fallthru
      _
    // Predicated region
    $region46: #{tpu_custom_call.1} parent=1 // pred_check
      _
    $region47: #{tpu_custom_call.1} parent=1 // pred_check_branch
      %73 = sbr.rel (0) target = $region49
    $region48: #{tpu_custom_call.1} parent=1 // pred_region
      _
    $region49: #{tpu_custom_call.1} parent=1 // pred_fallthru
      _
    // Predicated region
    $region50: #{tpu_custom_call.1} parent=1 // pred_check
      _
    $region51: #{tpu_custom_call.1} parent=1 // pred_check_branch
      %75 = sbr.rel (0) target = $region53
    $region52: #{tpu_custom_call.1} parent=1 // pred_region
      _
    $region53: #{tpu_custom_call.1} parent=1 // pred_fallthru
      _
    // Predicated region
    $region54: #{tpu_custom_call.1} parent=1 // pred_check
      _
    $region55: #{tpu_custom_call.1} parent=1 // pred_check_branch
      %77 = sbr.rel (0) target = $region57
    $region56: #{tpu_custom_call.1} parent=1 // pred_region
      %78 = dma.done [#allocation5], 512
    $region57: #{tpu_custom_call.1} parent=1 // pred_fallthru
      _
    // Predicated region
    $region58: #{tpu_custom_call.1} parent=1 // pred_check
      _
    $region59: #{tpu_custom_call.1} parent=1 // pred_check_branch
      %80 = sbr.rel (0) target = $region61
    $region60: #{tpu_custom_call.1} parent=1 // pred_region
      %81 = dma.done [#allocation8], 2048
    $region61: #{tpu_custom_call.1} parent=1 // pred_fallthru
      _
    // Predicated region
    $region62: #{tpu_custom_call.1} parent=1 // pred_check
      _
    $region63: #{tpu_custom_call.1} parent=1 // pred_check_branch
      %83 = sbr.rel (0) target = $region65
    $region64: #{tpu_custom_call.1} parent=1 // pred_region
      %84 = dma.done [#allocation8], 16
    $region65: #{tpu_custom_call.1} parent=1 // pred_fallthru
      _
    // Predicated region
    $region66: #{tpu_custom_call.1} parent=1 // pred_check
      _
    $region67: #{tpu_custom_call.1} parent=1 // pred_check_branch
      %87 = sbr.rel target = $region69
    $region68: #{tpu_custom_call.1} parent=1 // pred_region
      %88 = sst [smem:[#allocation13]] [#allocation12]
      %89 = sst [smem:[#allocation14]] [#allocation11]
    $region69: #{tpu_custom_call.1} parent=1 // pred_fallthru
      _
    %91 = shalt.err (0)
    %s93 = sshll.u32 [#allocation2], 4
    %s94 = int_to_ptr.vmem [resolvable:$true] %s93
    %96 = dma.hbm_to_vmem [thread:$0]  %s1, 512, %s94, [#allocation3]
    %v97 = vld [vmem:[%s0] sm:$0xff]
    %v98 = vld [vmem:[%s0 + $0x8] sm:$0xff]
    %v99 = vld [vmem:[%s0 + $0x10] sm:$0xff]
    %v100 = vld [vmem:[%s0 + $0x18] sm:$0xff]
    %v101 = vld [vmem:[%s0 + $0x20] sm:$0xff]
    %v102 = vld [vmem:[%s0 + $0x28] sm:$0xff]
    %v103 = vld [vmem:[%s0 + $0x30] sm:$0xff]
    %v104 = vld [vmem:[%s0 + $0x38] sm:$0xff]
    %v105 = vld [vmem:[#allocation4] sm:$0xff]
    %v106 = vld [vmem:[#allocation4 + $0x8] sm:$0xff]
    %v107 = vld [vmem:[#allocation4 + $0x10] sm:$0xff]
    %v108 = vld [vmem:[#allocation4 + $0x18] sm:$0xff]
    %v109 = vld [vmem:[%s3] sm:$0x1]
    %v111 = vlaneseq
    %v112 = vshrl.u32 %v111, 7
    %v113 = vsub.s32 0, %v112
    %v114 = vrot.slane %v109, %v113
    %vm116 = vcmask 261120
    %v118 = vsel %vm116, %v97, 0
    %v121 = vsel %vm116, %v98, 0
    %v124 = vsel %vm116, %v99, 0
    %v127 = vsel %vm116, %v100, 0
    %v130 = vsel %vm116, %v101, 0
    %v133 = vsel %vm116, %v102, 0
    %v136 = vsel %vm116, %v103, 0
    %v139 = vsel %vm116, %v104, 0
    %141 = vmatprep.subr.mxu0 0.0
    %142 = vmatpush1.msra.mxu0 %v105
    %143 = vmatprep.subr.mxu0 0.0
    %144 = vmatpush1.msra.mxu0 %v106
    %145 = vmatprep.subr.mxu0 0.0
    %146 = vmatpush1.msra.mxu0 %v107
    %147 = vmatprep.subr.mxu0 0.0
    %148 = vmatpush1.msra.mxu0 %v108
    %149 = vmatprep.subr.mxu0 0.0
    %150 = vmatpush1.msra.mxu0 0.0
    %151 = vmatprep.subr.mxu0 0.0
    %152 = vmatpush1.msra.mxu0 0.0
    %153 = vmatprep.subr.mxu0 0.0
    %154 = vmatpush1.msra.mxu0 0.0
    %155 = vmatprep.subr.mxu0 0.0
    %156 = vmatpush1.msra.mxu0 0.0
    %157 = vmatprep.subr.mxu0 0.0
    %158 = vmatpush1.msra.mxu0 0.0
    %159 = vmatprep.subr.mxu0 0.0
    %160 = vmatpush1.msra.mxu0 0.0
    %161 = vmatprep.subr.mxu0 0.0
    %162 = vmatpush1.msra.mxu0 0.0
    %163 = vmatprep.subr.mxu0 0.0
    %164 = vmatpush1.msra.mxu0 0.0
    %165 = vmatprep.subr.mxu0 0.0
    %166 = vmatpush1.msra.mxu0 0.0
    %167 = vmatprep.subr.mxu0 0.0
    %168 = vmatpush1.msra.mxu0 0.0
    %169 = vmatprep.subr.mxu0 0.0
    %170 = vmatpush1.msra.mxu0 0.0
    %171 = vmatprep.subr.mxu0 0.0
    %172 = vmatpush1.msra.mxu0 0.0
    %173 = vmatprep.subr.mxu0 0.0
    %174 = vmatpush1.msra.mxu0 0.0
    %175 = vmatprep.subr.mxu0 0.0
    %176 = vmatpush1.msra.mxu0 0.0
    %177 = vmatprep.subr.mxu0 0.0
    %178 = vmatpush1.msra.mxu0 0.0
    %179 = vmatprep.subr.mxu0 0.0
    %180 = vmatpush1.msra.mxu0 0.0
    %181 = vmatprep.subr.mxu0 0.0
    %182 = vmatpush1.msra.mxu0 0.0
    %183 = vmatprep.subr.mxu0 0.0
    %184 = vmatpush1.msra.mxu0 0.0
    %185 = vmatprep.subr.mxu0 0.0
    %186 = vmatpush1.msra.mxu0 0.0
    %187 = vmatprep.subr.mxu0 0.0
    %188 = vmatpush1.msra.mxu0 0.0
    %189 = vmatprep.subr.mxu0 0.0
    %190 = vmatpush1.msra.mxu0 0.0
    %191 = vmatprep.subr.mxu0 0.0
    %192 = vmatpush1.msra.mxu0 0.0
    %193 = vmatprep.subr.mxu0 0.0
    %194 = vmatpush1.msra.mxu0 0.0
    %195 = vmatprep.subr.mxu0 0.0
    %196 = vmatpush1.msra.mxu0 0.0
    %197 = vmatprep.subr.mxu0 0.0
    %198 = vmatpush1.msra.mxu0 0.0
    %199 = vmatprep.subr.mxu0 0.0
    %200 = vmatpush1.msra.mxu0 0.0
    %201 = vmatprep.subr.mxu0 0.0
    %202 = vmatpush1.msra.mxu0 0.0
    %203 = vmatprep.subr.mxu0 0.0
    %204 = vmatpush1.msra.mxu0 0.0
    %205 = vmatprep.mubr.f32.mxu0 0.0
    %206 = vmatmul.mubr.f32.gmra.mrb[0].mxu0 %v118
    %v207 = vpop.f32.mrb[0].mxu0
    %v208 = vadd.f32 %v114, %v207
    %v209 = vpop.f32.mrb[0].mxu0
    %210 = vmatprep.mubr.f32.mxu0 0.0
    %211 = vmatmul.mubr.f32.gmra.mrb[0].mxu0 %v121
    %v212 = vpop.f32.mrb[0].mxu0
    %v213 = vadd.f32 %v114, %v212
    %v214 = vpop.f32.mrb[0].mxu0
    %215 = vmatprep.mubr.f32.mxu0 0.0
    %216 = vmatmul.mubr.f32.gmra.mrb[0].mxu0 %v124
    %v217 = vpop.f32.mrb[0].mxu0
    %v218 = vadd.f32 %v114, %v217
    %v219 = vpop.f32.mrb[0].mxu0
    %220 = vmatprep.mubr.f32.mxu0 0.0
    %221 = vmatmul.mubr.f32.gmra.mrb[0].mxu0 %v127
    %v222 = vpop.f32.mrb[0].mxu0
    %v223 = vadd.f32 %v114, %v222
    %v224 = vpop.f32.mrb[0].mxu0
    %225 = vmatprep.mubr.f32.mxu0 0.0
    %226 = vmatmul.mubr.f32.gmra.mrb[0].mxu0 %v130
    %v227 = vpop.f32.mrb[0].mxu0
    %v228 = vadd.f32 %v114, %v227
    %v229 = vpop.f32.mrb[0].mxu0
    %230 = vmatprep.mubr.f32.mxu0 0.0
    %231 = vmatmul.mubr.f32.gmra.mrb[0].mxu0 %v133
    %v232 = vpop.f32.mrb[0].mxu0
    %v233 = vadd.f32 %v114, %v232
    %v234 = vpop.f32.mrb[0].mxu0
    %235 = vmatprep.mubr.f32.mxu0 0.0
    %236 = vmatmul.mubr.f32.gmra.mrb[0].mxu0 %v136
    %v237 = vpop.f32.mrb[0].mxu0
    %v238 = vadd.f32 %v114, %v237
    %v239 = vpop.f32.mrb[0].mxu0
    %240 = vmatprep.mubr.f32.mxu0 0.0
    %241 = vmatmul.mubr.f32.gmra.mrb[0].mxu0 %v139
    %v242 = vpop.f32.mrb[0].mxu0
    %v243 = vadd.f32 %v114, %v242
    %v244 = vpop.f32.mrb[0].mxu0
    %245 = vdwg.mxu0
    %s246 = smul.u32 4, 8
    %s247 = smul.u32 %s246, 1
    %s248 = sshll.u32 %s247, 4
    %249 = dma.done [#allocation3], %s248
    %v250 = vld [vmem:[#allocation2] sm:$0xff]
    %v251 = vld [vmem:[#allocation2 + $0x8] sm:$0xff]
    %v252 = vld [vmem:[#allocation2 + $0x10] sm:$0xff]
    %v253 = vld [vmem:[#allocation2 + $0x18] sm:$0xff]
    %v254 = vmul.f32 %v208, 0.1
    %v255 = vmul.f32 %v213, 0.1
    %v256 = vmul.f32 %v218, 0.1
    %v257 = vmul.f32 %v223, 0.1
    %v258 = vmul.f32 %v228, 0.1
    %v259 = vmul.f32 %v233, 0.1
    %v260 = vmul.f32 %v238, 0.1
    %v261 = vmul.f32 %v243, 0.1
    %v262 = vpack.c.bf16 %v213, %v208
    %v263 = vpack.c.bf16 %v223, %v218
    %v264 = vpack.c.bf16 %v233, %v228
    %v265 = vpack.c.bf16 %v243, %v238
    %vm266 = vcmask 523264
    %v268 = vsel %vm266, %v250, 0
    %v271 = vsel %vm266, %v251, 0
    %v274 = vsel %vm266, %v252, 0
    %v277 = vsel %vm266, %v253, 0
    %279 = vmatprep.subr.bf16.mxu0 0
    %280 = vmatpush1.bf16.msra.mxu0 %v262
    %281 = vmatprep.subr.bf16.mxu0 0
    %282 = vmatpush1.bf16.msra.mxu0 %v263
    %283 = vmatprep.subr.bf16.mxu0 0
    %284 = vmatpush1.bf16.msra.mxu0 %v264
    %285 = vmatprep.subr.bf16.mxu0 0
    %286 = vmatpush1.bf16.msra.mxu0 %v265
    %287 = vmatprep.subr.bf16.mxu0 0
    %288 = vmatpush1.bf16.msra.mxu0 0
    %289 = vmatprep.subr.bf16.mxu0 0
    %290 = vmatpush1.bf16.msra.mxu0 0
    %291 = vmatprep.subr.bf16.mxu0 0
    %292 = vmatpush1.bf16.msra.mxu0 0
    %293 = vmatprep.subr.bf16.mxu0 0
    %294 = vmatpush1.bf16.msra.mxu0 0
    %295 = vmatprep.subr.bf16.mxu0 0
    %296 = vmatpush1.bf16.msra.mxu0 0
    %297 = vmatprep.subr.bf16.mxu0 0
    %298 = vmatpush1.bf16.msra.mxu0 0
    %299 = vmatprep.subr.bf16.mxu0 0
    %300 = vmatpush1.bf16.msra.mxu0 0
    %301 = vmatprep.subr.bf16.mxu0 0
    %302 = vmatpush1.bf16.msra.mxu0 0
    %303 = vmatprep.subr.bf16.mxu0 0
    %304 = vmatpush1.bf16.msra.mxu0 0
    %305 = vmatprep.subr.bf16.mxu0 0
    %306 = vmatpush1.bf16.msra.mxu0 0
    %307 = vmatprep.subr.bf16.mxu0 0
    %308 = vmatpush1.bf16.msra.mxu0 0
    %309 = vmatprep.subr.bf16.mxu0 0
    %310 = vmatpush1.bf16.msra.mxu0 0
    %311 = vmatprep.mubr.bf16.mxu0 0
    %312 = vmatmul.mubr.bf16.gmra.mrb[0].mxu0 %v268
    %v313 = vpop.f32.mrb[0].mxu0
    %v314 = vadd.f32 %v254, %v313
    %v315 = vpop.f32.mrb[0].mxu0
    %v316 = vpop.f32.mrb[0].mxu0
    %v317 = vadd.f32 %v255, %v316
    %v318 = vpop.f32.mrb[0].mxu0
    %319 = vmatprep.mubr.bf16.mxu0 0
    %320 = vmatmul.mubr.bf16.gmra.mrb[0].mxu0 %v271
    %v321 = vpop.f32.mrb[0].mxu0
    %v322 = vadd.f32 %v256, %v321
    %v323 = vpop.f32.mrb[0].mxu0
    %v324 = vpop.f32.mrb[0].mxu0
    %v325 = vadd.f32 %v257, %v324
    %v326 = vpop.f32.mrb[0].mxu0
    %327 = vmatprep.mubr.bf16.mxu0 0
    %328 = vmatmul.mubr.bf16.gmra.mrb[0].mxu0 %v274
    %v329 = vpop.f32.mrb[0].mxu0
    %v330 = vadd.f32 %v258, %v329
    %v331 = vpop.f32.mrb[0].mxu0
    %v332 = vpop.f32.mrb[0].mxu0
    %v333 = vadd.f32 %v259, %v332
    %v334 = vpop.f32.mrb[0].mxu0
    %335 = vmatprep.mubr.bf16.mxu0 0
    %336 = vmatmul.mubr.bf16.gmra.mrb[0].mxu0 %v277
    %v337 = vpop.f32.mrb[0].mxu0
    %v338 = vadd.f32 %v260, %v337
    %v339 = vpop.f32.mrb[0].mxu0
    %v340 = vpop.f32.mrb[0].mxu0
    %v341 = vadd.f32 %v261, %v340
    %v342 = vpop.f32.mrb[0].mxu0
    %343 = vdwg.mxu0
    %v344 = vpack.c.bf16 %v317, %v314
    %v345 = vpack.c.bf16 %v325, %v322
    %v346 = vpack.c.bf16 %v333, %v330
    %v347 = vpack.c.bf16 %v341, %v338
    %348 = vmatprep.subr.bf16.mxu0 0
    %349 = vmatpush1.bf16.msra.mxu0 %v344
    %350 = vmatprep.subr.bf16.mxu0 0
    %351 = vmatpush1.bf16.msra.mxu0 %v345
    %352 = vmatprep.subr.bf16.mxu0 0
    %353 = vmatpush1.bf16.msra.mxu0 %v346
    %354 = vmatprep.subr.bf16.mxu0 0
    %355 = vmatpush1.bf16.msra.mxu0 %v347
    %356 = vmatprep.subr.bf16.mxu0 0
    %357 = vmatpush1.bf16.msra.mxu0 0
    %358 = vmatprep.subr.bf16.mxu0 0
    %359 = vmatpush1.bf16.msra.mxu0 0
    %360 = vmatprep.subr.bf16.mxu0 0
    %361 = vmatpush1.bf16.msra.mxu0 0
    %362 = vmatprep.subr.bf16.mxu0 0
    %363 = vmatpush1.bf16.msra.mxu0 0
    %364 = vmatprep.subr.bf16.mxu0 0
    %365 = vmatpush1.bf16.msra.mxu0 0
    %366 = vmatprep.subr.bf16.mxu0 0
    %367 = vmatpush1.bf16.msra.mxu0 0
    %368 = vmatprep.subr.bf16.mxu0 0
    %369 = vmatpush1.bf16.msra.mxu0 0
    %370 = vmatprep.subr.bf16.mxu0 0
    %371 = vmatpush1.bf16.msra.mxu0 0
    %372 = vmatprep.subr.bf16.mxu0 0
    %373 = vmatpush1.bf16.msra.mxu0 0
    %374 = vmatprep.subr.bf16.mxu0 0
    %375 = vmatpush1.bf16.msra.mxu0 0
    %376 = vmatprep.subr.bf16.mxu0 0
    %377 = vmatpush1.bf16.msra.mxu0 0
    %378 = vmatprep.subr.bf16.mxu0 0
    %379 = vmatpush1.bf16.msra.mxu0 0
    %380 = vmatprep.mubr.bf16.mxu0 0
    %381 = vmatmul.mubr.bf16.gmra.mrb[0].mxu0 %v268
    %v382 = vpop.f32.mrb[0].mxu0
    %v383 = vadd.f32 %v254, %v382
    %v384 = vpop.f32.mrb[0].mxu0
    %v385 = vpop.f32.mrb[0].mxu0
    %v386 = vadd.f32 %v255, %v385
    %v387 = vpop.f32.mrb[0].mxu0
    %388 = vmatprep.mubr.bf16.mxu0 0
    %389 = vmatmul.mubr.bf16.gmra.mrb[0].mxu0 %v271
    %v390 = vpop.f32.mrb[0].mxu0
    %v391 = vadd.f32 %v256, %v390
    %v392 = vpop.f32.mrb[0].mxu0
    %v393 = vpop.f32.mrb[0].mxu0
    %v394 = vadd.f32 %v257, %v393
    %v395 = vpop.f32.mrb[0].mxu0
    %396 = vmatprep.mubr.bf16.mxu0 0
    %397 = vmatmul.mubr.bf16.gmra.mrb[0].mxu0 %v274
    %v398 = vpop.f32.mrb[0].mxu0
    %v399 = vadd.f32 %v258, %v398
    %v400 = vpop.f32.mrb[0].mxu0
    %v401 = vpop.f32.mrb[0].mxu0
    %v402 = vadd.f32 %v259, %v401
    %v403 = vpop.f32.mrb[0].mxu0
    %404 = vmatprep.mubr.bf16.mxu0 0
    %405 = vmatmul.mubr.bf16.gmra.mrb[0].mxu0 %v277
    %v406 = vpop.f32.mrb[0].mxu0
    %v407 = vadd.f32 %v260, %v406
    %v408 = vpop.f32.mrb[0].mxu0
    %v409 = vpop.f32.mrb[0].mxu0
    %v410 = vadd.f32 %v261, %v409
    %v411 = vpop.f32.mrb[0].mxu0
    %412 = vdwg.mxu0
    %v413 = vpack.c.bf16 %v386, %v383
    %v414 = vpack.c.bf16 %v394, %v391
    %v415 = vpack.c.bf16 %v402, %v399
    %v416 = vpack.c.bf16 %v410, %v407
    %417 = vmatprep.subr.bf16.mxu0 0
    %418 = vmatpush1.bf16.msra.mxu0 %v413
    %419 = vmatprep.subr.bf16.mxu0 0
    %420 = vmatpush1.bf16.msra.mxu0 %v414
    %421 = vmatprep.subr.bf16.mxu0 0
    %422 = vmatpush1.bf16.msra.mxu0 %v415
    %423 = vmatprep.subr.bf16.mxu0 0
    %424 = vmatpush1.bf16.msra.mxu0 %v416
    %425 = vmatprep.subr.bf16.mxu0 0
    %426 = vmatpush1.bf16.msra.mxu0 0
    %427 = vmatprep.subr.bf16.mxu0 0
    %428 = vmatpush1.bf16.msra.mxu0 0
    %429 = vmatprep.subr.bf16.mxu0 0
    %430 = vmatpush1.bf16.msra.mxu0 0
    %431 = vmatprep.subr.bf16.mxu0 0
    %432 = vmatpush1.bf16.msra.mxu0 0
    %433 = vmatprep.subr.bf16.mxu0 0
    %434 = vmatpush1.bf16.msra.mxu0 0
    %435 = vmatprep.subr.bf16.mxu0 0
    %436 = vmatpush1.bf16.msra.mxu0 0
    %437 = vmatprep.subr.bf16.mxu0 0
    %438 = vmatpush1.bf16.msra.mxu0 0
    %439 = vmatprep.subr.bf16.mxu0 0
    %440 = vmatpush1.bf16.msra.mxu0 0
    %441 = vmatprep.subr.bf16.mxu0 0
    %442 = vmatpush1.bf16.msra.mxu0 0
    %443 = vmatprep.subr.bf16.mxu0 0
    %444 = vmatpush1.bf16.msra.mxu0 0
    %445 = vmatprep.subr.bf16.mxu0 0
    %446 = vmatpush1.bf16.msra.mxu0 0
    %447 = vmatprep.subr.bf16.mxu0 0
    %448 = vmatpush1.bf16.msra.mxu0 0
    %449 = vmatprep.mubr.bf16.mxu0 0
    %450 = vmatmul.mubr.bf16.gmra.mrb[0].mxu0 %v268
    %v451 = vpop.f32.mrb[0].mxu0
    %v452 = vadd.f32 %v254, %v451
    %v453 = vpop.f32.mrb[0].mxu0
    %v454 = vpop.f32.mrb[0].mxu0
    %v455 = vadd.f32 %v255, %v454
    %v456 = vpop.f32.mrb[0].mxu0
    %457 = vmatprep.mubr.bf16.mxu0 0
    %458 = vmatmul.mubr.bf16.gmra.mrb[0].mxu0 %v271
    %v459 = vpop.f32.mrb[0].mxu0
    %v460 = vadd.f32 %v256, %v459
    %v461 = vpop.f32.mrb[0].mxu0
    %v462 = vpop.f32.mrb[0].mxu0
    %v463 = vadd.f32 %v257, %v462
    %v464 = vpop.f32.mrb[0].mxu0
    %465 = vmatprep.mubr.bf16.mxu0 0
    %466 = vmatmul.mubr.bf16.gmra.mrb[0].mxu0 %v274
    %v467 = vpop.f32.mrb[0].mxu0
    %v468 = vadd.f32 %v258, %v467
    %v469 = vpop.f32.mrb[0].mxu0
    %v470 = vpop.f32.mrb[0].mxu0
    %v471 = vadd.f32 %v259, %v470
    %v472 = vpop.f32.mrb[0].mxu0
    %473 = vmatprep.mubr.bf16.mxu0 0
    %474 = vmatmul.mubr.bf16.gmra.mrb[0].mxu0 %v277
    %v475 = vpop.f32.mrb[0].mxu0
    %v476 = vadd.f32 %v260, %v475
    %v477 = vpop.f32.mrb[0].mxu0
    %v478 = vpop.f32.mrb[0].mxu0
    %v479 = vadd.f32 %v261, %v478
    %v480 = vpop.f32.mrb[0].mxu0
    %481 = vdwg.mxu0
    %v482 = vpack.c.bf16 %v455, %v452
    %v483 = vpack.c.bf16 %v463, %v460
    %v484 = vpack.c.bf16 %v471, %v468
    %v485 = vpack.c.bf16 %v479, %v476
    %486 = vmatprep.subr.bf16.mxu0 0
    %487 = vmatpush1.bf16.msra.mxu0 %v482
    %488 = vmatprep.subr.bf16.mxu0 0
    %489 = vmatpush1.bf16.msra.mxu0 %v483
    %490 = vmatprep.subr.bf16.mxu0 0
    %491 = vmatpush1.bf16.msra.mxu0 %v484
    %492 = vmatprep.subr.bf16.mxu0 0
    %493 = vmatpush1.bf16.msra.mxu0 %v485
    %494 = vmatprep.subr.bf16.mxu0 0
    %495 = vmatpush1.bf16.msra.mxu0 0
    %496 = vmatprep.subr.bf16.mxu0 0
    %497 = vmatpush1.bf16.msra.mxu0 0
    %498 = vmatprep.subr.bf16.mxu0 0
    %499 = vmatpush1.bf16.msra.mxu0 0
    %500 = vmatprep.subr.bf16.mxu0 0
    %501 = vmatpush1.bf16.msra.mxu0 0
    %502 = vmatprep.subr.bf16.mxu0 0
    %503 = vmatpush1.bf16.msra.mxu0 0
    %504 = vmatprep.subr.bf16.mxu0 0
    %505 = vmatpush1.bf16.msra.mxu0 0
    %506 = vmatprep.subr.bf16.mxu0 0
    %507 = vmatpush1.bf16.msra.mxu0 0
    %508 = vmatprep.subr.bf16.mxu0 0
    %509 = vmatpush1.bf16.msra.mxu0 0
    %510 = vmatprep.subr.bf16.mxu0 0
    %511 = vmatpush1.bf16.msra.mxu0 0
    %512 = vmatprep.subr.bf16.mxu0 0
    %513 = vmatpush1.bf16.msra.mxu0 0
    %514 = vmatprep.subr.bf16.mxu0 0
    %515 = vmatpush1.bf16.msra.mxu0 0
    %516 = vmatprep.subr.bf16.mxu0 0
    %517 = vmatpush1.bf16.msra.mxu0 0
    %518 = vmatprep.mubr.bf16.mxu0 0
    %519 = vmatmul.mubr.bf16.gmra.mrb[0].mxu0 %v268
    %v520 = vpop.f32.mrb[0].mxu0
    %v521 = vadd.f32 %v254, %v520
    %v522 = vpop.f32.mrb[0].mxu0
    %v523 = vpop.f32.mrb[0].mxu0
    %v524 = vadd.f32 %v255, %v523
    %v525 = vpop.f32.mrb[0].mxu0
    %526 = vmatprep.mubr.bf16.mxu0 0
    %527 = vmatmul.mubr.bf16.gmra.mrb[0].mxu0 %v271
    %v528 = vpop.f32.mrb[0].mxu0
    %v529 = vadd.f32 %v256, %v528
    %v530 = vpop.f32.mrb[0].mxu0
    %v531 = vpop.f32.mrb[0].mxu0
    %v532 = vadd.f32 %v257, %v531
    %v533 = vpop.f32.mrb[0].mxu0
    %534 = vmatprep.mubr.bf16.mxu0 0
    %535 = vmatmul.mubr.bf16.gmra.mrb[0].mxu0 %v274
    %v536 = vpop.f32.mrb[0].mxu0
    %v537 = vadd.f32 %v258, %v536
    %v538 = vpop.f32.mrb[0].mxu0
    %v539 = vpop.f32.mrb[0].mxu0
    %v540 = vadd.f32 %v259, %v539
    %v541 = vpop.f32.mrb[0].mxu0
    %542 = vmatprep.mubr.bf16.mxu0 0
    %543 = vmatmul.mubr.bf16.gmra.mrb[0].mxu0 %v277
    %v544 = vpop.f32.mrb[0].mxu0
    %v545 = vadd.f32 %v260, %v544
    %v546 = vpop.f32.mrb[0].mxu0
    %v547 = vpop.f32.mrb[0].mxu0
    %v548 = vadd.f32 %v261, %v547
    %v549 = vpop.f32.mrb[0].mxu0
    %550 = vdwg.mxu0
    %v551 = vpack.c.bf16 %v524, %v521
    %v552 = vpack.c.bf16 %v532, %v529
    %v553 = vpack.c.bf16 %v540, %v537
    %v554 = vpack.c.bf16 %v548, %v545
    %555 = vmatprep.subr.bf16.mxu0 0
    %556 = vmatpush1.bf16.msra.mxu0 %v551
    %557 = vmatprep.subr.bf16.mxu0 0
    %558 = vmatpush1.bf16.msra.mxu0 %v552
    %559 = vmatprep.subr.bf16.mxu0 0
    %560 = vmatpush1.bf16.msra.mxu0 %v553
    %561 = vmatprep.subr.bf16.mxu0 0
    %562 = vmatpush1.bf16.msra.mxu0 %v554
    %563 = vmatprep.subr.bf16.mxu0 0
    %564 = vmatpush1.bf16.msra.mxu0 0
    %565 = vmatprep.subr.bf16.mxu0 0
    %566 = vmatpush1.bf16.msra.mxu0 0
    %567 = vmatprep.subr.bf16.mxu0 0
    %568 = vmatpush1.bf16.msra.mxu0 0
    %569 = vmatprep.subr.bf16.mxu0 0
    %570 = vmatpush1.bf16.msra.mxu0 0
    %571 = vmatprep.subr.bf16.mxu0 0
    %572 = vmatpush1.bf16.msra.mxu0 0
    %573 = vmatprep.subr.bf16.mxu0 0
    %574 = vmatpush1.bf16.msra.mxu0 0
    %575 = vmatprep.subr.bf16.mxu0 0
    %576 = vmatpush1.bf16.msra.mxu0 0
    %577 = vmatprep.subr.bf16.mxu0 0
    %578 = vmatpush1.bf16.msra.mxu0 0
    %579 = vmatprep.subr.bf16.mxu0 0
    %580 = vmatpush1.bf16.msra.mxu0 0
    %581 = vmatprep.subr.bf16.mxu0 0
    %582 = vmatpush1.bf16.msra.mxu0 0
    %583 = vmatprep.subr.bf16.mxu0 0
    %584 = vmatpush1.bf16.msra.mxu0 0
    %585 = vmatprep.subr.bf16.mxu0 0
    %586 = vmatpush1.bf16.msra.mxu0 0
    %587 = vmatprep.mubr.bf16.mxu0 0
    %588 = vmatmul.mubr.bf16.gmra.mrb[0].mxu0 %v268
    %v589 = vpop.f32.mrb[0].mxu0
    %v590 = vadd.f32 %v254, %v589
    %v591 = vpop.f32.mrb[0].mxu0
    %v592 = vpop.f32.mrb[0].mxu0
    %v593 = vadd.f32 %v255, %v592
    %v594 = vpop.f32.mrb[0].mxu0
    %595 = vmatprep.mubr.bf16.mxu0 0
    %596 = vmatmul.mubr.bf16.gmra.mrb[0].mxu0 %v271
    %v597 = vpop.f32.mrb[0].mxu0
    %v598 = vadd.f32 %v256, %v597
    %v599 = vpop.f32.mrb[0].mxu0
    %v600 = vpop.f32.mrb[0].mxu0
    %v601 = vadd.f32 %v257, %v600
    %v602 = vpop.f32.mrb[0].mxu0
    %603 = vmatprep.mubr.bf16.mxu0 0
    %604 = vmatmul.mubr.bf16.gmra.mrb[0].mxu0 %v274
    %v605 = vpop.f32.mrb[0].mxu0
    %v606 = vadd.f32 %v258, %v605
    %v607 = vpop.f32.mrb[0].mxu0
    %v608 = vpop.f32.mrb[0].mxu0
    %v609 = vadd.f32 %v259, %v608
    %v610 = vpop.f32.mrb[0].mxu0
    %611 = vmatprep.mubr.bf16.mxu0 0
    %612 = vmatmul.mubr.bf16.gmra.mrb[0].mxu0 %v277
    %v613 = vpop.f32.mrb[0].mxu0
    %v614 = vadd.f32 %v260, %v613
    %v615 = vpop.f32.mrb[0].mxu0
    %v616 = vpop.f32.mrb[0].mxu0
    %v617 = vadd.f32 %v261, %v616
    %v618 = vpop.f32.mrb[0].mxu0
    %619 = vdwg.mxu0
    %v620 = vpack.c.bf16 %v593, %v590
    %v621 = vpack.c.bf16 %v601, %v598
    %v622 = vpack.c.bf16 %v609, %v606
    %v623 = vpack.c.bf16 %v617, %v614
    %624 = vmatprep.subr.bf16.mxu0 0
    %625 = vmatpush1.bf16.msra.mxu0 %v620
    %626 = vmatprep.subr.bf16.mxu0 0
    %627 = vmatpush1.bf16.msra.mxu0 %v621
    %628 = vmatprep.subr.bf16.mxu0 0
    %629 = vmatpush1.bf16.msra.mxu0 %v622
    %630 = vmatprep.subr.bf16.mxu0 0
    %631 = vmatpush1.bf16.msra.mxu0 %v623
    %632 = vmatprep.subr.bf16.mxu0 0
    %633 = vmatpush1.bf16.msra.mxu0 0
    %634 = vmatprep.subr.bf16.mxu0 0
    %635 = vmatpush1.bf16.msra.mxu0 0
    %636 = vmatprep.subr.bf16.mxu0 0
    %637 = vmatpush1.bf16.msra.mxu0 0
    %638 = vmatprep.subr.bf16.mxu0 0
    %639 = vmatpush1.bf16.msra.mxu0 0
    %640 = vmatprep.subr.bf16.mxu0 0
    %641 = vmatpush1.bf16.msra.mxu0 0
    %642 = vmatprep.subr.bf16.mxu0 0
    %643 = vmatpush1.bf16.msra.mxu0 0
    %644 = vmatprep.subr.bf16.mxu0 0
    %645 = vmatpush1.bf16.msra.mxu0 0
    %646 = vmatprep.subr.bf16.mxu0 0
    %647 = vmatpush1.bf16.msra.mxu0 0
    %648 = vmatprep.subr.bf16.mxu0 0
    %649 = vmatpush1.bf16.msra.mxu0 0
    %650 = vmatprep.subr.bf16.mxu0 0
    %651 = vmatpush1.bf16.msra.mxu0 0
    %652 = vmatprep.subr.bf16.mxu0 0
    %653 = vmatpush1.bf16.msra.mxu0 0
    %654 = vmatprep.subr.bf16.mxu0 0
    %655 = vmatpush1.bf16.msra.mxu0 0
    %656 = vmatprep.mubr.bf16.mxu0 0
    %657 = vmatmul.mubr.bf16.gmra.mrb[0].mxu0 %v268
    %v658 = vpop.f32.mrb[0].mxu0
    %v659 = vadd.f32 %v254, %v658
    %v660 = vpop.f32.mrb[0].mxu0
    %v661 = vpop.f32.mrb[0].mxu0
    %v662 = vadd.f32 %v255, %v661
    %v663 = vpop.f32.mrb[0].mxu0
    %664 = vmatprep.mubr.bf16.mxu0 0
    %665 = vmatmul.mubr.bf16.gmra.mrb[0].mxu0 %v271
    %v666 = vpop.f32.mrb[0].mxu0
    %v667 = vadd.f32 %v256, %v666
    %v668 = vpop.f32.mrb[0].mxu0
    %v669 = vpop.f32.mrb[0].mxu0
    %v670 = vadd.f32 %v257, %v669
    %v671 = vpop.f32.mrb[0].mxu0
    %672 = vmatprep.mubr.bf16.mxu0 0
    %673 = vmatmul.mubr.bf16.gmra.mrb[0].mxu0 %v274
    %v674 = vpop.f32.mrb[0].mxu0
    %v675 = vadd.f32 %v258, %v674
    %v676 = vpop.f32.mrb[0].mxu0
    %v677 = vpop.f32.mrb[0].mxu0
    %v678 = vadd.f32 %v259, %v677
    %v679 = vpop.f32.mrb[0].mxu0
    %680 = vmatprep.mubr.bf16.mxu0 0
    %681 = vmatmul.mubr.bf16.gmra.mrb[0].mxu0 %v277
    %v682 = vpop.f32.mrb[0].mxu0
    %v683 = vadd.f32 %v260, %v682
    %v684 = vpop.f32.mrb[0].mxu0
    %v685 = vpop.f32.mrb[0].mxu0
    %v686 = vadd.f32 %v261, %v685
    %v687 = vpop.f32.mrb[0].mxu0
    %688 = vdwg.mxu0
    %v689 = vpack.c.bf16 %v662, %v659
    %v690 = vpack.c.bf16 %v670, %v667
    %v691 = vpack.c.bf16 %v678, %v675
    %v692 = vpack.c.bf16 %v686, %v683
    %693 = vmatprep.subr.bf16.mxu0 0
    %694 = vmatpush1.bf16.msra.mxu0 %v689
    %695 = vmatprep.subr.bf16.mxu0 0
    %696 = vmatpush1.bf16.msra.mxu0 %v690
    %697 = vmatprep.subr.bf16.mxu0 0
    %698 = vmatpush1.bf16.msra.mxu0 %v691
    %699 = vmatprep.subr.bf16.mxu0 0
    %700 = vmatpush1.bf16.msra.mxu0 %v692
    %701 = vmatprep.subr.bf16.mxu0 0
    %702 = vmatpush1.bf16.msra.mxu0 0
    %703 = vmatprep.subr.bf16.mxu0 0
    %704 = vmatpush1.bf16.msra.mxu0 0
    %705 = vmatprep.subr.bf16.mxu0 0
    %706 = vmatpush1.bf16.msra.mxu0 0
    %707 = vmatprep.subr.bf16.mxu0 0
    %708 = vmatpush1.bf16.msra.mxu0 0
    %709 = vmatprep.subr.bf16.mxu0 0
    %710 = vmatpush1.bf16.msra.mxu0 0
    %711 = vmatprep.subr.bf16.mxu0 0
    %712 = vmatpush1.bf16.msra.mxu0 0
    %713 = vmatprep.subr.bf16.mxu0 0
    %714 = vmatpush1.bf16.msra.mxu0 0
    %715 = vmatprep.subr.bf16.mxu0 0
    %716 = vmatpush1.bf16.msra.mxu0 0
    %717 = vmatprep.subr.bf16.mxu0 0
    %718 = vmatpush1.bf16.msra.mxu0 0
    %719 = vmatprep.subr.bf16.mxu0 0
    %720 = vmatpush1.bf16.msra.mxu0 0
    %721 = vmatprep.subr.bf16.mxu0 0
    %722 = vmatpush1.bf16.msra.mxu0 0
    %723 = vmatprep.subr.bf16.mxu0 0
    %724 = vmatpush1.bf16.msra.mxu0 0
    %725 = vmatprep.mubr.bf16.mxu0 0
    %726 = vmatmul.mubr.bf16.gmra.mrb[0].mxu0 %v268
    %v727 = vpop.f32.mrb[0].mxu0
    %v728 = vadd.f32 %v254, %v727
    %v729 = vpop.f32.mrb[0].mxu0
    %v730 = vpop.f32.mrb[0].mxu0
    %v731 = vadd.f32 %v255, %v730
    %v732 = vpop.f32.mrb[0].mxu0
    %733 = vmatprep.mubr.bf16.mxu0 0
    %734 = vmatmul.mubr.bf16.gmra.mrb[0].mxu0 %v271
    %v735 = vpop.f32.mrb[0].mxu0
    %v736 = vadd.f32 %v256, %v735
    %v737 = vpop.f32.mrb[0].mxu0
    %v738 = vpop.f32.mrb[0].mxu0
    %v739 = vadd.f32 %v257, %v738
    %v740 = vpop.f32.mrb[0].mxu0
    %741 = vmatprep.mubr.bf16.mxu0 0
    %742 = vmatmul.mubr.bf16.gmra.mrb[0].mxu0 %v274
    %v743 = vpop.f32.mrb[0].mxu0
    %v744 = vadd.f32 %v258, %v743
    %v745 = vpop.f32.mrb[0].mxu0
    %v746 = vpop.f32.mrb[0].mxu0
    %v747 = vadd.f32 %v259, %v746
    %v748 = vpop.f32.mrb[0].mxu0
    %749 = vmatprep.mubr.bf16.mxu0 0
    %750 = vmatmul.mubr.bf16.gmra.mrb[0].mxu0 %v277
    %v751 = vpop.f32.mrb[0].mxu0
    %v752 = vadd.f32 %v260, %v751
    %v753 = vpop.f32.mrb[0].mxu0
    %v754 = vpop.f32.mrb[0].mxu0
    %v755 = vadd.f32 %v261, %v754
    %v756 = vpop.f32.mrb[0].mxu0
    %757 = vdwg.mxu0
    %v758 = vpack.c.bf16 %v731, %v728
    %v759 = vpack.c.bf16 %v739, %v736
    %v760 = vpack.c.bf16 %v747, %v744
    %v761 = vpack.c.bf16 %v755, %v752
    %762 = vmatprep.subr.bf16.mxu0 0
    %763 = vmatpush1.bf16.msra.mxu0 %v758
    %764 = vmatprep.subr.bf16.mxu0 0
    %765 = vmatpush1.bf16.msra.mxu0 %v759
    %766 = vmatprep.subr.bf16.mxu0 0
    %767 = vmatpush1.bf16.msra.mxu0 %v760
    %768 = vmatprep.subr.bf16.mxu0 0
    %769 = vmatpush1.bf16.msra.mxu0 %v761
    %770 = vmatprep.subr.bf16.mxu0 0
    %771 = vmatpush1.bf16.msra.mxu0 0
    %772 = vmatprep.subr.bf16.mxu0 0
    %773 = vmatpush1.bf16.msra.mxu0 0
    %774 = vmatprep.subr.bf16.mxu0 0
    %775 = vmatpush1.bf16.msra.mxu0 0
    %776 = vmatprep.subr.bf16.mxu0 0
    %777 = vmatpush1.bf16.msra.mxu0 0
    %778 = vmatprep.subr.bf16.mxu0 0
    %779 = vmatpush1.bf16.msra.mxu0 0
    %780 = vmatprep.subr.bf16.mxu0 0
    %781 = vmatpush1.bf16.msra.mxu0 0
    %782 = vmatprep.subr.bf16.mxu0 0
    %783 = vmatpush1.bf16.msra.mxu0 0
    %784 = vmatprep.subr.bf16.mxu0 0
    %785 = vmatpush1.bf16.msra.mxu0 0
    %786 = vmatprep.subr.bf16.mxu0 0
    %787 = vmatpush1.bf16.msra.mxu0 0
    %788 = vmatprep.subr.bf16.mxu0 0
    %789 = vmatpush1.bf16.msra.mxu0 0
    %790 = vmatprep.subr.bf16.mxu0 0
    %791 = vmatpush1.bf16.msra.mxu0 0
    %792 = vmatprep.subr.bf16.mxu0 0
    %793 = vmatpush1.bf16.msra.mxu0 0
    %794 = vmatprep.mubr.bf16.mxu0 0
    %795 = vmatmul.mubr.bf16.gmra.mrb[0].mxu0 %v268
    %v796 = vpop.f32.mrb[0].mxu0
    %v797 = vadd.f32 %v254, %v796
    %v798 = vpop.f32.mrb[0].mxu0
    %v799 = vpop.f32.mrb[0].mxu0
    %v800 = vadd.f32 %v255, %v799
    %v801 = vpop.f32.mrb[0].mxu0
    %802 = vmatprep.mubr.bf16.mxu0 0
    %803 = vmatmul.mubr.bf16.gmra.mrb[0].mxu0 %v271
    %v804 = vpop.f32.mrb[0].mxu0
    %v805 = vadd.f32 %v256, %v804
    %v806 = vpop.f32.mrb[0].mxu0
    %v807 = vpop.f32.mrb[0].mxu0
    %v808 = vadd.f32 %v257, %v807
    %v809 = vpop.f32.mrb[0].mxu0
    %810 = vmatprep.mubr.bf16.mxu0 0
    %811 = vmatmul.mubr.bf16.gmra.mrb[0].mxu0 %v274
    %v812 = vpop.f32.mrb[0].mxu0
    %v813 = vadd.f32 %v258, %v812
    %v814 = vpop.f32.mrb[0].mxu0
    %v815 = vpop.f32.mrb[0].mxu0
    %v816 = vadd.f32 %v259, %v815
    %v817 = vpop.f32.mrb[0].mxu0
    %818 = vmatprep.mubr.bf16.mxu0 0
    %819 = vmatmul.mubr.bf16.gmra.mrb[0].mxu0 %v277
    %v820 = vpop.f32.mrb[0].mxu0
    %v821 = vadd.f32 %v260, %v820
    %v822 = vpop.f32.mrb[0].mxu0
    %v823 = vpop.f32.mrb[0].mxu0
    %v824 = vadd.f32 %v261, %v823
    %v825 = vpop.f32.mrb[0].mxu0
    %826 = vdwg.mxu0
    %v827 = vpack.c.bf16 %v800, %v797
    %v828 = vpack.c.bf16 %v808, %v805
    %v829 = vpack.c.bf16 %v816, %v813
    %v830 = vpack.c.bf16 %v824, %v821
    %831 = vmatprep.subr.bf16.mxu0 0
    %832 = vmatpush1.bf16.msra.mxu0 %v827
    %833 = vmatprep.subr.bf16.mxu0 0
    %834 = vmatpush1.bf16.msra.mxu0 %v828
    %835 = vmatprep.subr.bf16.mxu0 0
    %836 = vmatpush1.bf16.msra.mxu0 %v829
    %837 = vmatprep.subr.bf16.mxu0 0
    %838 = vmatpush1.bf16.msra.mxu0 %v830
    %839 = vmatprep.subr.bf16.mxu0 0
    %840 = vmatpush1.bf16.msra.mxu0 0
    %841 = vmatprep.subr.bf16.mxu0 0
    %842 = vmatpush1.bf16.msra.mxu0 0
    %843 = vmatprep.subr.bf16.mxu0 0
    %844 = vmatpush1.bf16.msra.mxu0 0
    %845 = vmatprep.subr.bf16.mxu0 0
    %846 = vmatpush1.bf16.msra.mxu0 0
    %847 = vmatprep.subr.bf16.mxu0 0
    %848 = vmatpush1.bf16.msra.mxu0 0
    %849 = vmatprep.subr.bf16.mxu0 0
    %850 = vmatpush1.bf16.msra.mxu0 0
    %851 = vmatprep.subr.bf16.mxu0 0
    %852 = vmatpush1.bf16.msra.mxu0 0
    %853 = vmatprep.subr.bf16.mxu0 0
    %854 = vmatpush1.bf16.msra.mxu0 0
    %855 = vmatprep.subr.bf16.mxu0 0
    %856 = vmatpush1.bf16.msra.mxu0 0
    %857 = vmatprep.subr.bf16.mxu0 0
    %858 = vmatpush1.bf16.msra.mxu0 0
    %859 = vmatprep.subr.bf16.mxu0 0
    %860 = vmatpush1.bf16.msra.mxu0 0
    %861 = vmatprep.subr.bf16.mxu0 0
    %862 = vmatpush1.bf16.msra.mxu0 0
    %863 = vmatprep.mubr.bf16.mxu0 0
    %864 = vmatmul.mubr.bf16.gmra.mrb[0].mxu0 %v268
    %v865 = vpop.f32.mrb[0].mxu0
    %v866 = vadd.f32 %v254, %v865
    %v867 = vpop.f32.mrb[0].mxu0
    %v868 = vpop.f32.mrb[0].mxu0
    %v869 = vadd.f32 %v255, %v868
    %v870 = vpop.f32.mrb[0].mxu0
    %871 = vmatprep.mubr.bf16.mxu0 0
    %872 = vmatmul.mubr.bf16.gmra.mrb[0].mxu0 %v271
    %v873 = vpop.f32.mrb[0].mxu0
    %v874 = vadd.f32 %v256, %v873
    %v875 = vpop.f32.mrb[0].mxu0
    %v876 = vpop.f32.mrb[0].mxu0
    %v877 = vadd.f32 %v257, %v876
    %v878 = vpop.f32.mrb[0].mxu0
    %879 = vmatprep.mubr.bf16.mxu0 0
    %880 = vmatmul.mubr.bf16.gmra.mrb[0].mxu0 %v274
    %v881 = vpop.f32.mrb[0].mxu0
    %v882 = vadd.f32 %v258, %v881
    %v883 = vpop.f32.mrb[0].mxu0
    %v884 = vpop.f32.mrb[0].mxu0
    %v885 = vadd.f32 %v259, %v884
    %v886 = vpop.f32.mrb[0].mxu0
    %887 = vmatprep.mubr.bf16.mxu0 0
    %888 = vmatmul.mubr.bf16.gmra.mrb[0].mxu0 %v277
    %v889 = vpop.f32.mrb[0].mxu0
    %v890 = vadd.f32 %v260, %v889
    %v891 = vpop.f32.mrb[0].mxu0
    %v892 = vpop.f32.mrb[0].mxu0
    %v893 = vadd.f32 %v261, %v892
    %v894 = vpop.f32.mrb[0].mxu0
    %895 = vdwg.mxu0
    %v896 = vpack.c.bf16 %v869, %v866
    %v897 = vpack.c.bf16 %v877, %v874
    %v898 = vpack.c.bf16 %v885, %v882
    %v899 = vpack.c.bf16 %v893, %v890
    %900 = vmatprep.subr.bf16.mxu0 0
    %901 = vmatpush1.bf16.msra.mxu0 %v896
    %902 = vmatprep.subr.bf16.mxu0 0
    %903 = vmatpush1.bf16.msra.mxu0 %v897
    %904 = vmatprep.subr.bf16.mxu0 0
    %905 = vmatpush1.bf16.msra.mxu0 %v898
    %906 = vmatprep.subr.bf16.mxu0 0
    %907 = vmatpush1.bf16.msra.mxu0 %v899
    %908 = vmatprep.subr.bf16.mxu0 0
    %909 = vmatpush1.bf16.msra.mxu0 0
    %910 = vmatprep.subr.bf16.mxu0 0
    %911 = vmatpush1.bf16.msra.mxu0 0
    %912 = vmatprep.subr.bf16.mxu0 0
    %913 = vmatpush1.bf16.msra.mxu0 0
    %914 = vmatprep.subr.bf16.mxu0 0
    %915 = vmatpush1.bf16.msra.mxu0 0
    %916 = vmatprep.subr.bf16.mxu0 0
    %917 = vmatpush1.bf16.msra.mxu0 0
    %918 = vmatprep.subr.bf16.mxu0 0
    %919 = vmatpush1.bf16.msra.mxu0 0
    %920 = vmatprep.subr.bf16.mxu0 0
    %921 = vmatpush1.bf16.msra.mxu0 0
    %922 = vmatprep.subr.bf16.mxu0 0
    %923 = vmatpush1.bf16.msra.mxu0 0
    %924 = vmatprep.subr.bf16.mxu0 0
    %925 = vmatpush1.bf16.msra.mxu0 0
    %926 = vmatprep.subr.bf16.mxu0 0
    %927 = vmatpush1.bf16.msra.mxu0 0
    %928 = vmatprep.subr.bf16.mxu0 0
    %929 = vmatpush1.bf16.msra.mxu0 0
    %930 = vmatprep.subr.bf16.mxu0 0
    %931 = vmatpush1.bf16.msra.mxu0 0
    %932 = vmatprep.mubr.bf16.mxu0 0
    %933 = vmatmul.mubr.bf16.gmra.mrb[0].mxu0 %v268
    %v934 = vpop.f32.mrb[0].mxu0
    %v935 = vadd.f32 %v254, %v934
    %v936 = vpop.f32.mrb[0].mxu0
    %v937 = vpop.f32.mrb[0].mxu0
    %v938 = vadd.f32 %v255, %v937
    %v939 = vpop.f32.mrb[0].mxu0
    %940 = vmatprep.mubr.bf16.mxu0 0
    %941 = vmatmul.mubr.bf16.gmra.mrb[0].mxu0 %v271
    %v942 = vpop.f32.mrb[0].mxu0
    %v943 = vadd.f32 %v256, %v942
    %v944 = vpop.f32.mrb[0].mxu0
    %v945 = vpop.f32.mrb[0].mxu0
    %v946 = vadd.f32 %v257, %v945
    %v947 = vpop.f32.mrb[0].mxu0
    %948 = vmatprep.mubr.bf16.mxu0 0
    %949 = vmatmul.mubr.bf16.gmra.mrb[0].mxu0 %v274
    %v950 = vpop.f32.mrb[0].mxu0
    %v951 = vadd.f32 %v258, %v950
    %v952 = vpop.f32.mrb[0].mxu0
    %v953 = vpop.f32.mrb[0].mxu0
    %v954 = vadd.f32 %v259, %v953
    %v955 = vpop.f32.mrb[0].mxu0
    %956 = vmatprep.mubr.bf16.mxu0 0
    %957 = vmatmul.mubr.bf16.gmra.mrb[0].mxu0 %v277
    %v958 = vpop.f32.mrb[0].mxu0
    %v959 = vadd.f32 %v260, %v958
    %v960 = vpop.f32.mrb[0].mxu0
    %v961 = vpop.f32.mrb[0].mxu0
    %v962 = vadd.f32 %v261, %v961
    %v963 = vpop.f32.mrb[0].mxu0
    %964 = vdwg.mxu0
    %v965 = vld [vmem:[%s4] sm:$0x1]
    %v966 = vld [vmem:[%s5] sm:$0x1]
    %v967 = vadd.f32 %v935, %v938
    %v968 = vadd.f32 %v967, %v943
    %v969 = vadd.f32 %v968, %v946
    %v970 = vadd.f32 %v969, %v951
    %v971 = vadd.f32 %v970, %v954
    %v972 = vadd.f32 %v971, %v959
    %v973 = vadd.f32 %v972, %v962
    %v974 = vrot.slane %v973, 4
    %v975 = vadd.f32 %v973, %v974
    %v976 = vrot.slane %v975, 2
    %v977 = vadd.f32 %v975, %v976
    %v978 = vrot.slane %v977, 1
    %v979 = vadd.f32 %v977, %v978
    %v980 = vrcp.pop 64.0
    %v981 = vmul.f32 %v979, %v980
    %v982 = vmul.f32 %v935, %v935
    %v983 = vmul.f32 %v938, %v938
    %v984 = vmul.f32 %v943, %v943
    %v985 = vmul.f32 %v946, %v946
    %v986 = vmul.f32 %v951, %v951
    %v987 = vmul.f32 %v954, %v954
    %v988 = vmul.f32 %v959, %v959
    %v989 = vmul.f32 %v962, %v962
    %v990 = vadd.f32 %v982, %v983
    %v991 = vadd.f32 %v990, %v984
    %v992 = vadd.f32 %v991, %v985
    %v993 = vadd.f32 %v992, %v986
    %v994 = vadd.f32 %v993, %v987
    %v995 = vadd.f32 %v994, %v988
    %v996 = vadd.f32 %v995, %v989
    %v997 = vrot.slane %v996, 4
    %v998 = vadd.f32 %v996, %v997
    %v999 = vrot.slane %v998, 2
    %v1000 = vadd.f32 %v998, %v999
    %v1001 = vrot.slane %v1000, 1
    %v1002 = vadd.f32 %v1000, %v1001
    %v1003 = vmul.f32 %v1002, %v980
    %v1004 = vmul.f32 %v981, %v981
    %v1005 = vsub.f32 %v1003, %v1004
    %v1006 = vadd.f32 %v1005, 1e-05
    %v1007 = vrsqrt.pop %v1006
    %v1008 = vmul.f32 %v965, %v1007
    %v1009 = vmul.f32 %v981, %v1008
    %v1010 = vsub.f32 %v966, %v1009
    %v1012 = vlaneseq
    %v1013 = vshrl.u32 %v1012, 7
    %v1014 = vsub.s32 0, %v1013
    %v1015 = vrot.slane %v1008, %v1014
    %v1017 = vmul.f32 %v935, %v1015
    %v1018 = vmul.f32 %v938, %v1015
    %v1019 = vmul.f32 %v943, %v1015
    %v1020 = vmul.f32 %v946, %v1015
    %v1021 = vmul.f32 %v951, %v1015
    %v1022 = vmul.f32 %v954, %v1015
    %v1023 = vmul.f32 %v959, %v1015
    %v1024 = vmul.f32 %v962, %v1015
    %v1026 = vlaneseq
    %v1027 = vshrl.u32 %v1026, 7
    %v1028 = vsub.s32 0, %v1027
    %v1029 = vrot.slane %v1010, %v1028
    %v1031 = vadd.f32 %v1017, %v1029
    %v1032 = vadd.f32 %v1018, %v1029
    %v1033 = vadd.f32 %v1019, %v1029
    %v1034 = vadd.f32 %v1020, %v1029
    %v1035 = vadd.f32 %v1021, %v1029
    %v1036 = vadd.f32 %v1022, %v1029
    %v1037 = vadd.f32 %v1023, %v1029
    %v1038 = vadd.f32 %v1024, %v1029
    %v1039 = vmax.f32 %v1031, 0.0
    %v1040 = vmax.f32 %v1032, 0.0
    %v1041 = vmax.f32 %v1033, 0.0
    %v1042 = vmax.f32 %v1034, 0.0
    %v1043 = vmax.f32 %v1035, 0.0
    %v1044 = vmax.f32 %v1036, 0.0
    %v1045 = vmax.f32 %v1037, 0.0
    %v1046 = vmax.f32 %v1038, 0.0
    %v1047 = vld [vmem:[#allocation7] sm:$0xff]
    %v1048 = vld [vmem:[#allocation7 + $0x8] sm:$0xff]
    %v1049 = vld [vmem:[#allocation7 + $0x10] sm:$0xff]
    %v1050 = vld [vmem:[#allocation7 + $0x18] sm:$0xff]
    %v1051 = vld [vmem:[#allocation7 + $0x20] sm:$0xff]
    %v1052 = vld [vmem:[#allocation7 + $0x28] sm:$0xff]
    %v1053 = vld [vmem:[#allocation7 + $0x30] sm:$0xff]
    %v1054 = vld [vmem:[#allocation7 + $0x38] sm:$0xff]
    %v1055 = vld [vmem:[#allocation7 + $0x40] sm:$0xff]
    %v1056 = vld [vmem:[#allocation7 + $0x48] sm:$0xff]
    %v1057 = vld [vmem:[#allocation7 + $0x50] sm:$0xff]
    %v1058 = vld [vmem:[#allocation7 + $0x58] sm:$0xff]
    %v1059 = vld [vmem:[#allocation7 + $0x60] sm:$0xff]
    %v1060 = vld [vmem:[#allocation7 + $0x68] sm:$0xff]
    %v1061 = vld [vmem:[#allocation7 + $0x70] sm:$0xff]
    %v1062 = vld [vmem:[#allocation7 + $0x78] sm:$0xff]
    %v1063 = vld [vmem:[%s7] sm:$0x1]
    %v1065 = vlaneseq
    %v1066 = vshrl.u32 %v1065, 7
    %v1067 = vsub.s32 0, %v1066
    %v1068 = vrot.slane %v1063, %v1067
    %1070 = vmatprep.subr.mxu0 0.0
    %1071 = vmatpush1.msra.mxu0 %v1047
    %1072 = vmatprep.subr.mxu0 0.0
    %1073 = vmatpush1.msra.mxu0 %v1048
    %1074 = vmatprep.subr.mxu0 0.0
    %1075 = vmatpush1.msra.mxu0 %v1049
    %1076 = vmatprep.subr.mxu0 0.0
    %1077 = vmatpush1.msra.mxu0 %v1050
    %1078 = vmatprep.subr.mxu0 0.0
    %1079 = vmatpush1.msra.mxu0 %v1051
    %1080 = vmatprep.subr.mxu0 0.0
    %1081 = vmatpush1.msra.mxu0 %v1052
    %1082 = vmatprep.subr.mxu0 0.0
    %1083 = vmatpush1.msra.mxu0 %v1053
    %1084 = vmatprep.subr.mxu0 0.0
    %1085 = vmatpush1.msra.mxu0 %v1054
    %1086 = vmatprep.subr.mxu0 0.0
    %1087 = vmatpush1.msra.mxu0 %v1055
    %1088 = vmatprep.subr.mxu0 0.0
    %1089 = vmatpush1.msra.mxu0 %v1056
    %1090 = vmatprep.subr.mxu0 0.0
    %1091 = vmatpush1.msra.mxu0 %v1057
    %1092 = vmatprep.subr.mxu0 0.0
    %1093 = vmatpush1.msra.mxu0 %v1058
    %1094 = vmatprep.subr.mxu0 0.0
    %1095 = vmatpush1.msra.mxu0 %v1059
    %1096 = vmatprep.subr.mxu0 0.0
    %1097 = vmatpush1.msra.mxu0 %v1060
    %1098 = vmatprep.subr.mxu0 0.0
    %1099 = vmatpush1.msra.mxu0 %v1061
    %1100 = vmatprep.subr.mxu0 0.0
    %1101 = vmatpush1.msra.mxu0 %v1062
    %1102 = vmatprep.subr.mxu0 0.0
    %1103 = vmatpush1.msra.mxu0 0.0
    %1104 = vmatprep.subr.mxu0 0.0
    %1105 = vmatpush1.msra.mxu0 0.0
    %1106 = vmatprep.subr.mxu0 0.0
    %1107 = vmatpush1.msra.mxu0 0.0
    %1108 = vmatprep.subr.mxu0 0.0
    %1109 = vmatpush1.msra.mxu0 0.0
    %1110 = vmatprep.subr.mxu0 0.0
    %1111 = vmatpush1.msra.mxu0 0.0
    %1112 = vmatprep.subr.mxu0 0.0
    %1113 = vmatpush1.msra.mxu0 0.0
    %1114 = vmatprep.subr.mxu0 0.0
    %1115 = vmatpush1.msra.mxu0 0.0
    %1116 = vmatprep.subr.mxu0 0.0
    %1117 = vmatpush1.msra.mxu0 0.0
    %1118 = vmatprep.subr.mxu0 0.0
    %1119 = vmatpush1.msra.mxu0 0.0
    %1120 = vmatprep.subr.mxu0 0.0
    %1121 = vmatpush1.msra.mxu0 0.0
    %1122 = vmatprep.subr.mxu0 0.0
    %1123 = vmatpush1.msra.mxu0 0.0
    %1124 = vmatprep.subr.mxu0 0.0
    %1125 = vmatpush1.msra.mxu0 0.0
    %1126 = vmatprep.subr.mxu0 0.0
    %1127 = vmatpush1.msra.mxu0 0.0
    %1128 = vmatprep.subr.mxu0 0.0
    %1129 = vmatpush1.msra.mxu0 0.0
    %1130 = vmatprep.subr.mxu0 0.0
    %1131 = vmatpush1.msra.mxu0 0.0
    %1132 = vmatprep.subr.mxu0 0.0
    %1133 = vmatpush1.msra.mxu0 0.0
    %1134 = vmatprep.mubr.f32.mxu0 0.0
    %1135 = vmatmul.mubr.f32.gmra.mrb[0].mxu0 %v1039
    %v1136 = vpop.f32.mrb[0].mxu0
    %v1137 = vadd.f32 %v1068, %v1136
    %v1138 = vpop.f32.mrb[0].mxu0
    %1139 = vmatprep.mubr.f32.mxu0 0.0
    %1140 = vmatmul.mubr.f32.gmra.mrb[0].mxu0 %v1040
    %v1141 = vpop.f32.mrb[0].mxu0
    %v1142 = vadd.f32 %v1068, %v1141
    %v1143 = vpop.f32.mrb[0].mxu0
    %1144 = vmatprep.mubr.f32.mxu0 0.0
    %1145 = vmatmul.mubr.f32.gmra.mrb[0].mxu0 %v1041
    %v1146 = vpop.f32.mrb[0].mxu0
    %v1147 = vadd.f32 %v1068, %v1146
    %v1148 = vpop.f32.mrb[0].mxu0
    %1149 = vmatprep.mubr.f32.mxu0 0.0
    %1150 = vmatmul.mubr.f32.gmra.mrb[0].mxu0 %v1042
    %v1151 = vpop.f32.mrb[0].mxu0
    %v1152 = vadd.f32 %v1068, %v1151
    %v1153 = vpop.f32.mrb[0].mxu0
    %1154 = vmatprep.mubr.f32.mxu0 0.0
    %1155 = vmatmul.mubr.f32.gmra.mrb[0].mxu0 %v1043
    %v1156 = vpop.f32.mrb[0].mxu0
    %v1157 = vadd.f32 %v1068, %v1156
    %v1158 = vpop.f32.mrb[0].mxu0
    %1159 = vmatprep.mubr.f32.mxu0 0.0
    %1160 = vmatmul.mubr.f32.gmra.mrb[0].mxu0 %v1044
    %v1161 = vpop.f32.mrb[0].mxu0
    %v1162 = vadd.f32 %v1068, %v1161
    %v1163 = vpop.f32.mrb[0].mxu0
    %1164 = vmatprep.mubr.f32.mxu0 0.0
    %1165 = vmatmul.mubr.f32.gmra.mrb[0].mxu0 %v1045
    %v1166 = vpop.f32.mrb[0].mxu0
    %v1167 = vadd.f32 %v1068, %v1166
    %v1168 = vpop.f32.mrb[0].mxu0
    %1169 = vmatprep.mubr.f32.mxu0 0.0
    %1170 = vmatmul.mubr.f32.gmra.mrb[0].mxu0 %v1046
    %v1171 = vpop.f32.mrb[0].mxu0
    %v1172 = vadd.f32 %v1068, %v1171
    %v1173 = vpop.f32.mrb[0].mxu0
    %1174 = vdwg.mxu0
    %v1175 = vmul.f32 %v1137, 0.1
    %v1176 = vmul.f32 %v1142, 0.1
    %v1177 = vmul.f32 %v1147, 0.1
    %v1178 = vmul.f32 %v1152, 0.1
    %v1179 = vmul.f32 %v1157, 0.1
    %v1180 = vmul.f32 %v1162, 0.1
    %v1181 = vmul.f32 %v1167, 0.1
    %v1182 = vmul.f32 %v1172, 0.1
    %v1183 = vpack.c.bf16 %v1142, %v1137
    %v1184 = vpack.c.bf16 %v1152, %v1147
    %v1185 = vpack.c.bf16 %v1162, %v1157
    %v1186 = vpack.c.bf16 %v1172, %v1167
    %1187 = vmatprep.subr.bf16.mxu0 0
    %1188 = vmatpush1.bf16.msra.mxu0 %v1183
    %1189 = vmatprep.subr.bf16.mxu0 0
    %1190 = vmatpush1.bf16.msra.mxu0 %v1184
    %1191 = vmatprep.subr.bf16.mxu0 0
    %1192 = vmatpush1.bf16.msra.mxu0 %v1185
    %1193 = vmatprep.subr.bf16.mxu0 0
    %1194 = vmatpush1.bf16.msra.mxu0 %v1186
    %1195 = vmatprep.subr.bf16.mxu0 0
    %1196 = vmatpush1.bf16.msra.mxu0 0
    %1197 = vmatprep.subr.bf16.mxu0 0
    %1198 = vmatpush1.bf16.msra.mxu0 0
    %1199 = vmatprep.subr.bf16.mxu0 0
    %1200 = vmatpush1.bf16.msra.mxu0 0
    %1201 = vmatprep.subr.bf16.mxu0 0
    %1202 = vmatpush1.bf16.msra.mxu0 0
    %1203 = vmatprep.subr.bf16.mxu0 0
    %1204 = vmatpush1.bf16.msra.mxu0 0
    %1205 = vmatprep.subr.bf16.mxu0 0
    %1206 = vmatpush1.bf16.msra.mxu0 0
    %1207 = vmatprep.subr.bf16.mxu0 0
    %1208 = vmatpush1.bf16.msra.mxu0 0
    %1209 = vmatprep.subr.bf16.mxu0 0
    %1210 = vmatpush1.bf16.msra.mxu0 0
    %1211 = vmatprep.subr.bf16.mxu0 0
    %1212 = vmatpush1.bf16.msra.mxu0 0
    %1213 = vmatprep.subr.bf16.mxu0 0
    %1214 = vmatpush1.bf16.msra.mxu0 0
    %1215 = vmatprep.subr.bf16.mxu0 0
    %1216 = vmatpush1.bf16.msra.mxu0 0
    %1217 = vmatprep.subr.bf16.mxu0 0
    %1218 = vmatpush1.bf16.msra.mxu0 0
    %1219 = vmatprep.mubr.bf16.mxu0 0
    %1220 = vmatmul.mubr.bf16.gmra.mrb[0].mxu0 %v268
    %v1221 = vpop.f32.mrb[0].mxu0
    %v1222 = vadd.f32 %v1175, %v1221
    %v1223 = vpop.f32.mrb[0].mxu0
    %v1224 = vpop.f32.mrb[0].mxu0
    %v1225 = vadd.f32 %v1176, %v1224
    %v1226 = vpop.f32.mrb[0].mxu0
    %1227 = vmatprep.mubr.bf16.mxu0 0
    %1228 = vmatmul.mubr.bf16.gmra.mrb[0].mxu0 %v271
    %v1229 = vpop.f32.mrb[0].mxu0
    %v1230 = vadd.f32 %v1177, %v1229
    %v1231 = vpop.f32.mrb[0].mxu0
    %v1232 = vpop.f32.mrb[0].mxu0
    %v1233 = vadd.f32 %v1178, %v1232
    %v1234 = vpop.f32.mrb[0].mxu0
    %1235 = vmatprep.mubr.bf16.mxu0 0
    %1236 = vmatmul.mubr.bf16.gmra.mrb[0].mxu0 %v274
    %v1237 = vpop.f32.mrb[0].mxu0
    %v1238 = vadd.f32 %v1179, %v1237
    %v1239 = vpop.f32.mrb[0].mxu0
    %v1240 = vpop.f32.mrb[0].mxu0
    %v1241 = vadd.f32 %v1180, %v1240
    %v1242 = vpop.f32.mrb[0].mxu0
    %1243 = vmatprep.mubr.bf16.mxu0 0
    %1244 = vmatmul.mubr.bf16.gmra.mrb[0].mxu0 %v277
    %v1245 = vpop.f32.mrb[0].mxu0
    %v1246 = vadd.f32 %v1181, %v1245
    %v1247 = vpop.f32.mrb[0].mxu0
    %v1248 = vpop.f32.mrb[0].mxu0
    %v1249 = vadd.f32 %v1182, %v1248
    %v1250 = vpop.f32.mrb[0].mxu0
    %1251 = vdwg.mxu0
    %v1252 = vpack.c.bf16 %v1225, %v1222
    %v1253 = vpack.c.bf16 %v1233, %v1230
    %v1254 = vpack.c.bf16 %v1241, %v1238
    %v1255 = vpack.c.bf16 %v1249, %v1246
    %1256 = vmatprep.subr.bf16.mxu0 0
    %1257 = vmatpush1.bf16.msra.mxu0 %v1252
    %1258 = vmatprep.subr.bf16.mxu0 0
    %1259 = vmatpush1.bf16.msra.mxu0 %v1253
    %1260 = vmatprep.subr.bf16.mxu0 0
    %1261 = vmatpush1.bf16.msra.mxu0 %v1254
    %1262 = vmatprep.subr.bf16.mxu0 0
    %1263 = vmatpush1.bf16.msra.mxu0 %v1255
    %1264 = vmatprep.subr.bf16.mxu0 0
    %1265 = vmatpush1.bf16.msra.mxu0 0
    %1266 = vmatprep.subr.bf16.mxu0 0
    %1267 = vmatpush1.bf16.msra.mxu0 0
    %1268 = vmatprep.subr.bf16.mxu0 0
    %1269 = vmatpush1.bf16.msra.mxu0 0
    %1270 = vmatprep.subr.bf16.mxu0 0
    %1271 = vmatpush1.bf16.msra.mxu0 0
    %1272 = vmatprep.subr.bf16.mxu0 0
    %1273 = vmatpush1.bf16.msra.mxu0 0
    %1274 = vmatprep.subr.bf16.mxu0 0
    %1275 = vmatpush1.bf16.msra.mxu0 0
    %1276 = vmatprep.subr.bf16.mxu0 0
    %1277 = vmatpush1.bf16.msra.mxu0 0
    %1278 = vmatprep.subr.bf16.mxu0 0
    %1279 = vmatpush1.bf16.msra.mxu0 0
    %1280 = vmatprep.subr.bf16.mxu0 0
    %1281 = vmatpush1.bf16.msra.mxu0 0
    %1282 = vmatprep.subr.bf16.mxu0 0
    %1283 = vmatpush1.bf16.msra.mxu0 0
    %1284 = vmatprep.subr.bf16.mxu0 0
    %1285 = vmatpush1.bf16.msra.mxu0 0
    %1286 = vmatprep.subr.bf16.mxu0 0
    %1287 = vmatpush1.bf16.msra.mxu0 0
    %1288 = vmatprep.mubr.bf16.mxu0 0
    %1289 = vmatmul.mubr.bf16.gmra.mrb[0].mxu0 %v268
    %v1290 = vpop.f32.mrb[0].mxu0
    %v1291 = vadd.f32 %v1175, %v1290
    %v1292 = vpop.f32.mrb[0].mxu0
    %v1293 = vpop.f32.mrb[0].mxu0
    %v1294 = vadd.f32 %v1176, %v1293
    %v1295 = vpop.f32.mrb[0].mxu0
    %1296 = vmatprep.mubr.bf16.mxu0 0
    %1297 = vmatmul.mubr.bf16.gmra.mrb[0].mxu0 %v271
    %v1298 = vpop.f32.mrb[0].mxu0
    %v1299 = vadd.f32 %v1177, %v1298
    %v1300 = vpop.f32.mrb[0].mxu0
    %v1301 = vpop.f32.mrb[0].mxu0
    %v1302 = vadd.f32 %v1178, %v1301
    %v1303 = vpop.f32.mrb[0].mxu0
    %1304 = vmatprep.mubr.bf16.mxu0 0
    %1305 = vmatmul.mubr.bf16.gmra.mrb[0].mxu0 %v274
    %v1306 = vpop.f32.mrb[0].mxu0
    %v1307 = vadd.f32 %v1179, %v1306
    %v1308 = vpop.f32.mrb[0].mxu0
    %v1309 = vpop.f32.mrb[0].mxu0
    %v1310 = vadd.f32 %v1180, %v1309
    %v1311 = vpop.f32.mrb[0].mxu0
    %1312 = vmatprep.mubr.bf16.mxu0 0
    %1313 = vmatmul.mubr.bf16.gmra.mrb[0].mxu0 %v277
    %v1314 = vpop.f32.mrb[0].mxu0
    %v1315 = vadd.f32 %v1181, %v1314
    %v1316 = vpop.f32.mrb[0].mxu0
    %v1317 = vpop.f32.mrb[0].mxu0
    %v1318 = vadd.f32 %v1182, %v1317
    %v1319 = vpop.f32.mrb[0].mxu0
    %1320 = vdwg.mxu0
    %v1321 = vpack.c.bf16 %v1294, %v1291
    %v1322 = vpack.c.bf16 %v1302, %v1299
    %v1323 = vpack.c.bf16 %v1310, %v1307
    %v1324 = vpack.c.bf16 %v1318, %v1315
    %1325 = vmatprep.subr.bf16.mxu0 0
    %1326 = vmatpush1.bf16.msra.mxu0 %v1321
    %1327 = vmatprep.subr.bf16.mxu0 0
    %1328 = vmatpush1.bf16.msra.mxu0 %v1322
    %1329 = vmatprep.subr.bf16.mxu0 0
    %1330 = vmatpush1.bf16.msra.mxu0 %v1323
    %1331 = vmatprep.subr.bf16.mxu0 0
    %1332 = vmatpush1.bf16.msra.mxu0 %v1324
    %1333 = vmatprep.subr.bf16.mxu0 0
    %1334 = vmatpush1.bf16.msra.mxu0 0
    %1335 = vmatprep.subr.bf16.mxu0 0
    %1336 = vmatpush1.bf16.msra.mxu0 0
    %1337 = vmatprep.subr.bf16.mxu0 0
    %1338 = vmatpush1.bf16.msra.mxu0 0
    %1339 = vmatprep.subr.bf16.mxu0 0
    %1340 = vmatpush1.bf16.msra.mxu0 0
    %1341 = vmatprep.subr.bf16.mxu0 0
    %1342 = vmatpush1.bf16.msra.mxu0 0
    %1343 = vmatprep.subr.bf16.mxu0 0
    %1344 = vmatpush1.bf16.msra.mxu0 0
    %1345 = vmatprep.subr.bf16.mxu0 0
    %1346 = vmatpush1.bf16.msra.mxu0 0
    %1347 = vmatprep.subr.bf16.mxu0 0
    %1348 = vmatpush1.bf16.msra.mxu0 0
    %1349 = vmatprep.subr.bf16.mxu0 0
    %1350 = vmatpush1.bf16.msra.mxu0 0
    %1351 = vmatprep.subr.bf16.mxu0 0
    %1352 = vmatpush1.bf16.msra.mxu0 0
    %1353 = vmatprep.subr.bf16.mxu0 0
    %1354 = vmatpush1.bf16.msra.mxu0 0
    %1355 = vmatprep.subr.bf16.mxu0 0
    %1356 = vmatpush1.bf16.msra.mxu0 0
    %1357 = vmatprep.mubr.bf16.mxu0 0
    %1358 = vmatmul.mubr.bf16.gmra.mrb[0].mxu0 %v268
    %v1359 = vpop.f32.mrb[0].mxu0
    %v1360 = vadd.f32 %v1175, %v1359
    %v1361 = vpop.f32.mrb[0].mxu0
    %v1362 = vpop.f32.mrb[0].mxu0
    %v1363 = vadd.f32 %v1176, %v1362
    %v1364 = vpop.f32.mrb[0].mxu0
    %1365 = vmatprep.mubr.bf16.mxu0 0
    %1366 = vmatmul.mubr.bf16.gmra.mrb[0].mxu0 %v271
    %v1367 = vpop.f32.mrb[0].mxu0
    %v1368 = vadd.f32 %v1177, %v1367
    %v1369 = vpop.f32.mrb[0].mxu0
    %v1370 = vpop.f32.mrb[0].mxu0
    %v1371 = vadd.f32 %v1178, %v1370
    %v1372 = vpop.f32.mrb[0].mxu0
    %1373 = vmatprep.mubr.bf16.mxu0 0
    %1374 = vmatmul.mubr.bf16.gmra.mrb[0].mxu0 %v274
    %v1375 = vpop.f32.mrb[0].mxu0
    %v1376 = vadd.f32 %v1179, %v1375
    %v1377 = vpop.f32.mrb[0].mxu0
    %v1378 = vpop.f32.mrb[0].mxu0
    %v1379 = vadd.f32 %v1180, %v1378
    %v1380 = vpop.f32.mrb[0].mxu0
    %1381 = vmatprep.mubr.bf16.mxu0 0
    %1382 = vmatmul.mubr.bf16.gmra.mrb[0].mxu0 %v277
    %v1383 = vpop.f32.mrb[0].mxu0
    %v1384 = vadd.f32 %v1181, %v1383
    %v1385 = vpop.f32.mrb[0].mxu0
    %v1386 = vpop.f32.mrb[0].mxu0
    %v1387 = vadd.f32 %v1182, %v1386
    %v1388 = vpop.f32.mrb[0].mxu0
    %1389 = vdwg.mxu0
    %v1390 = vpack.c.bf16 %v1363, %v1360
    %v1391 = vpack.c.bf16 %v1371, %v1368
    %v1392 = vpack.c.bf16 %v1379, %v1376
    %v1393 = vpack.c.bf16 %v1387, %v1384
    %1394 = vmatprep.subr.bf16.mxu0 0
    %1395 = vmatpush1.bf16.msra.mxu0 %v1390
    %1396 = vmatprep.subr.bf16.mxu0 0
    %1397 = vmatpush1.bf16.msra.mxu0 %v1391
    %1398 = vmatprep.subr.bf16.mxu0 0
    %1399 = vmatpush1.bf16.msra.mxu0 %v1392
    %1400 = vmatprep.subr.bf16.mxu0 0
    %1401 = vmatpush1.bf16.msra.mxu0 %v1393
    %1402 = vmatprep.subr.bf16.mxu0 0
    %1403 = vmatpush1.bf16.msra.mxu0 0
    %1404 = vmatprep.subr.bf16.mxu0 0
    %1405 = vmatpush1.bf16.msra.mxu0 0
    %1406 = vmatprep.subr.bf16.mxu0 0
    %1407 = vmatpush1.bf16.msra.mxu0 0
    %1408 = vmatprep.subr.bf16.mxu0 0
    %1409 = vmatpush1.bf16.msra.mxu0 0
    %1410 = vmatprep.subr.bf16.mxu0 0
    %1411 = vmatpush1.bf16.msra.mxu0 0
    %1412 = vmatprep.subr.bf16.mxu0 0
    %1413 = vmatpush1.bf16.msra.mxu0 0
    %1414 = vmatprep.subr.bf16.mxu0 0
    %1415 = vmatpush1.bf16.msra.mxu0 0
    %1416 = vmatprep.subr.bf16.mxu0 0
    %1417 = vmatpush1.bf16.msra.mxu0 0
    %1418 = vmatprep.subr.bf16.mxu0 0
    %1419 = vmatpush1.bf16.msra.mxu0 0
    %1420 = vmatprep.subr.bf16.mxu0 0
    %1421 = vmatpush1.bf16.msra.mxu0 0
    %1422 = vmatprep.subr.bf16.mxu0 0
    %1423 = vmatpush1.bf16.msra.mxu0 0
    %1424 = vmatprep.subr.bf16.mxu0 0
    %1425 = vmatpush1.bf16.msra.mxu0 0
    %1426 = vmatprep.mubr.bf16.mxu0 0
    %1427 = vmatmul.mubr.bf16.gmra.mrb[0].mxu0 %v268
    %v1428 = vpop.f32.mrb[0].mxu0
    %v1429 = vadd.f32 %v1175, %v1428
    %v1430 = vpop.f32.mrb[0].mxu0
    %v1431 = vpop.f32.mrb[0].mxu0
    %v1432 = vadd.f32 %v1176, %v1431
    %v1433 = vpop.f32.mrb[0].mxu0
    %1434 = vmatprep.mubr.bf16.mxu0 0
    %1435 = vmatmul.mubr.bf16.gmra.mrb[0].mxu0 %v271
    %v1436 = vpop.f32.mrb[0].mxu0
    %v1437 = vadd.f32 %v1177, %v1436
    %v1438 = vpop.f32.mrb[0].mxu0
    %v1439 = vpop.f32.mrb[0].mxu0
    %v1440 = vadd.f32 %v1178, %v1439
    %v1441 = vpop.f32.mrb[0].mxu0
    %1442 = vmatprep.mubr.bf16.mxu0 0
    %1443 = vmatmul.mubr.bf16.gmra.mrb[0].mxu0 %v274
    %v1444 = vpop.f32.mrb[0].mxu0
    %v1445 = vadd.f32 %v1179, %v1444
    %v1446 = vpop.f32.mrb[0].mxu0
    %v1447 = vpop.f32.mrb[0].mxu0
    %v1448 = vadd.f32 %v1180, %v1447
    %v1449 = vpop.f32.mrb[0].mxu0
    %1450 = vmatprep.mubr.bf16.mxu0 0
    %1451 = vmatmul.mubr.bf16.gmra.mrb[0].mxu0 %v277
    %v1452 = vpop.f32.mrb[0].mxu0
    %v1453 = vadd.f32 %v1181, %v1452
    %v1454 = vpop.f32.mrb[0].mxu0
    %v1455 = vpop.f32.mrb[0].mxu0
    %v1456 = vadd.f32 %v1182, %v1455
    %v1457 = vpop.f32.mrb[0].mxu0
    %1458 = vdwg.mxu0
    %v1459 = vpack.c.bf16 %v1432, %v1429
    %v1460 = vpack.c.bf16 %v1440, %v1437
    %v1461 = vpack.c.bf16 %v1448, %v1445
    %v1462 = vpack.c.bf16 %v1456, %v1453
    %1463 = vmatprep.subr.bf16.mxu0 0
    %1464 = vmatpush1.bf16.msra.mxu0 %v1459
    %1465 = vmatprep.subr.bf16.mxu0 0
    %1466 = vmatpush1.bf16.msra.mxu0 %v1460
    %1467 = vmatprep.subr.bf16.mxu0 0
    %1468 = vmatpush1.bf16.msra.mxu0 %v1461
    %1469 = vmatprep.subr.bf16.mxu0 0
    %1470 = vmatpush1.bf16.msra.mxu0 %v1462
    %1471 = vmatprep.subr.bf16.mxu0 0
    %1472 = vmatpush1.bf16.msra.mxu0 0
    %1473 = vmatprep.subr.bf16.mxu0 0
    %1474 = vmatpush1.bf16.msra.mxu0 0
    %1475 = vmatprep.subr.bf16.mxu0 0
    %1476 = vmatpush1.bf16.msra.mxu0 0
    %1477 = vmatprep.subr.bf16.mxu0 0
    %1478 = vmatpush1.bf16.msra.mxu0 0
    %1479 = vmatprep.subr.bf16.mxu0 0
    %1480 = vmatpush1.bf16.msra.mxu0 0
    %1481 = vmatprep.subr.bf16.mxu0 0
    %1482 = vmatpush1.bf16.msra.mxu0 0
    %1483 = vmatprep.subr.bf16.mxu0 0
    %1484 = vmatpush1.bf16.msra.mxu0 0
    %1485 = vmatprep.subr.bf16.mxu0 0
    %1486 = vmatpush1.bf16.msra.mxu0 0
    %1487 = vmatprep.subr.bf16.mxu0 0
    %1488 = vmatpush1.bf16.msra.mxu0 0
    %1489 = vmatprep.subr.bf16.mxu0 0
    %1490 = vmatpush1.bf16.msra.mxu0 0
    %1491 = vmatprep.subr.bf16.mxu0 0
    %1492 = vmatpush1.bf16.msra.mxu0 0
    %1493 = vmatprep.subr.bf16.mxu0 0
    %1494 = vmatpush1.bf16.msra.mxu0 0
    %1495 = vmatprep.mubr.bf16.mxu0 0
    %1496 = vmatmul.mubr.bf16.gmra.mrb[0].mxu0 %v268
    %v1497 = vpop.f32.mrb[0].mxu0
    %v1498 = vadd.f32 %v1175, %v1497
    %v1499 = vpop.f32.mrb[0].mxu0
    %v1500 = vpop.f32.mrb[0].mxu0
    %v1501 = vadd.f32 %v1176, %v1500
    %v1502 = vpop.f32.mrb[0].mxu0
    %1503 = vmatprep.mubr.bf16.mxu0 0
    %1504 = vmatmul.mubr.bf16.gmra.mrb[0].mxu0 %v271
    %v1505 = vpop.f32.mrb[0].mxu0
    %v1506 = vadd.f32 %v1177, %v1505
    %v1507 = vpop.f32.mrb[0].mxu0
    %v1508 = vpop.f32.mrb[0].mxu0
    %v1509 = vadd.f32 %v1178, %v1508
    %v1510 = vpop.f32.mrb[0].mxu0
    %1511 = vmatprep.mubr.bf16.mxu0 0
    %1512 = vmatmul.mubr.bf16.gmra.mrb[0].mxu0 %v274
    %v1513 = vpop.f32.mrb[0].mxu0
    %v1514 = vadd.f32 %v1179, %v1513
    %v1515 = vpop.f32.mrb[0].mxu0
    %v1516 = vpop.f32.mrb[0].mxu0
    %v1517 = vadd.f32 %v1180, %v1516
    %v1518 = vpop.f32.mrb[0].mxu0
    %1519 = vmatprep.mubr.bf16.mxu0 0
    %1520 = vmatmul.mubr.bf16.gmra.mrb[0].mxu0 %v277
    %v1521 = vpop.f32.mrb[0].mxu0
    %v1522 = vadd.f32 %v1181, %v1521
    %v1523 = vpop.f32.mrb[0].mxu0
    %v1524 = vpop.f32.mrb[0].mxu0
    %v1525 = vadd.f32 %v1182, %v1524
    %v1526 = vpop.f32.mrb[0].mxu0
    %1527 = vdwg.mxu0
    %v1528 = vpack.c.bf16 %v1501, %v1498
    %v1529 = vpack.c.bf16 %v1509, %v1506
    %v1530 = vpack.c.bf16 %v1517, %v1514
    %v1531 = vpack.c.bf16 %v1525, %v1522
    %1532 = vmatprep.subr.bf16.mxu0 0
    %1533 = vmatpush1.bf16.msra.mxu0 %v1528
    %1534 = vmatprep.subr.bf16.mxu0 0
    %1535 = vmatpush1.bf16.msra.mxu0 %v1529
    %1536 = vmatprep.subr.bf16.mxu0 0
    %1537 = vmatpush1.bf16.msra.mxu0 %v1530
    %1538 = vmatprep.subr.bf16.mxu0 0
    %1539 = vmatpush1.bf16.msra.mxu0 %v1531
    %1540 = vmatprep.subr.bf16.mxu0 0
    %1541 = vmatpush1.bf16.msra.mxu0 0
    %1542 = vmatprep.subr.bf16.mxu0 0
    %1543 = vmatpush1.bf16.msra.mxu0 0
    %1544 = vmatprep.subr.bf16.mxu0 0
    %1545 = vmatpush1.bf16.msra.mxu0 0
    %1546 = vmatprep.subr.bf16.mxu0 0
    %1547 = vmatpush1.bf16.msra.mxu0 0
    %1548 = vmatprep.subr.bf16.mxu0 0
    %1549 = vmatpush1.bf16.msra.mxu0 0
    %1550 = vmatprep.subr.bf16.mxu0 0
    %1551 = vmatpush1.bf16.msra.mxu0 0
    %1552 = vmatprep.subr.bf16.mxu0 0
    %1553 = vmatpush1.bf16.msra.mxu0 0
    %1554 = vmatprep.subr.bf16.mxu0 0
    %1555 = vmatpush1.bf16.msra.mxu0 0
    %1556 = vmatprep.subr.bf16.mxu0 0
    %1557 = vmatpush1.bf16.msra.mxu0 0
    %1558 = vmatprep.subr.bf16.mxu0 0
    %1559 = vmatpush1.bf16.msra.mxu0 0
    %1560 = vmatprep.subr.bf16.mxu0 0
    %1561 = vmatpush1.bf16.msra.mxu0 0
    %1562 = vmatprep.subr.bf16.mxu0 0
    %1563 = vmatpush1.bf16.msra.mxu0 0
    %1564 = vmatprep.mubr.bf16.mxu0 0
    %1565 = vmatmul.mubr.bf16.gmra.mrb[0].mxu0 %v268
    %v1566 = vpop.f32.mrb[0].mxu0
    %v1567 = vadd.f32 %v1175, %v1566
    %v1568 = vpop.f32.mrb[0].mxu0
    %v1569 = vpop.f32.mrb[0].mxu0
    %v1570 = vadd.f32 %v1176, %v1569
    %v1571 = vpop.f32.mrb[0].mxu0
    %1572 = vmatprep.mubr.bf16.mxu0 0
    %1573 = vmatmul.mubr.bf16.gmra.mrb[0].mxu0 %v271
    %v1574 = vpop.f32.mrb[0].mxu0
    %v1575 = vadd.f32 %v1177, %v1574
    %v1576 = vpop.f32.mrb[0].mxu0
    %v1577 = vpop.f32.mrb[0].mxu0
    %v1578 = vadd.f32 %v1178, %v1577
    %v1579 = vpop.f32.mrb[0].mxu0
    %1580 = vmatprep.mubr.bf16.mxu0 0
    %1581 = vmatmul.mubr.bf16.gmra.mrb[0].mxu0 %v274
    %v1582 = vpop.f32.mrb[0].mxu0
    %v1583 = vadd.f32 %v1179, %v1582
    %v1584 = vpop.f32.mrb[0].mxu0
    %v1585 = vpop.f32.mrb[0].mxu0
    %v1586 = vadd.f32 %v1180, %v1585
    %v1587 = vpop.f32.mrb[0].mxu0
    %1588 = vmatprep.mubr.bf16.mxu0 0
    %1589 = vmatmul.mubr.bf16.gmra.mrb[0].mxu0 %v277
    %v1590 = vpop.f32.mrb[0].mxu0
    %v1591 = vadd.f32 %v1181, %v1590
    %v1592 = vpop.f32.mrb[0].mxu0
    %v1593 = vpop.f32.mrb[0].mxu0
    %v1594 = vadd.f32 %v1182, %v1593
    %v1595 = vpop.f32.mrb[0].mxu0
    %1596 = vdwg.mxu0
    %v1597 = vpack.c.bf16 %v1570, %v1567
    %v1598 = vpack.c.bf16 %v1578, %v1575
    %v1599 = vpack.c.bf16 %v1586, %v1583
    %v1600 = vpack.c.bf16 %v1594, %v1591
    %1601 = vmatprep.subr.bf16.mxu0 0
    %1602 = vmatpush1.bf16.msra.mxu0 %v1597
    %1603 = vmatprep.subr.bf16.mxu0 0
    %1604 = vmatpush1.bf16.msra.mxu0 %v1598
    %1605 = vmatprep.subr.bf16.mxu0 0
    %1606 = vmatpush1.bf16.msra.mxu0 %v1599
    %1607 = vmatprep.subr.bf16.mxu0 0
    %1608 = vmatpush1.bf16.msra.mxu0 %v1600
    %1609 = vmatprep.subr.bf16.mxu0 0
    %1610 = vmatpush1.bf16.msra.mxu0 0
    %1611 = vmatprep.subr.bf16.mxu0 0
    %1612 = vmatpush1.bf16.msra.mxu0 0
    %1613 = vmatprep.subr.bf16.mxu0 0
    %1614 = vmatpush1.bf16.msra.mxu0 0
    %1615 = vmatprep.subr.bf16.mxu0 0
    %1616 = vmatpush1.bf16.msra.mxu0 0
    %1617 = vmatprep.subr.bf16.mxu0 0
    %1618 = vmatpush1.bf16.msra.mxu0 0
    %1619 = vmatprep.subr.bf16.mxu0 0
    %1620 = vmatpush1.bf16.msra.mxu0 0
    %1621 = vmatprep.subr.bf16.mxu0 0
    %1622 = vmatpush1.bf16.msra.mxu0 0
    %1623 = vmatprep.subr.bf16.mxu0 0
    %1624 = vmatpush1.bf16.msra.mxu0 0
    %1625 = vmatprep.subr.bf16.mxu0 0
    %1626 = vmatpush1.bf16.msra.mxu0 0
    %1627 = vmatprep.subr.bf16.mxu0 0
    %1628 = vmatpush1.bf16.msra.mxu0 0
    %1629 = vmatprep.subr.bf16.mxu0 0
    %1630 = vmatpush1.bf16.msra.mxu0 0
    %1631 = vmatprep.subr.bf16.mxu0 0
    %1632 = vmatpush1.bf16.msra.mxu0 0
    %1633 = vmatprep.mubr.bf16.mxu0 0
    %1634 = vmatmul.mubr.bf16.gmra.mrb[0].mxu0 %v268
    %v1635 = vpop.f32.mrb[0].mxu0
    %v1636 = vadd.f32 %v1175, %v1635
    %v1637 = vpop.f32.mrb[0].mxu0
    %v1638 = vpop.f32.mrb[0].mxu0
    %v1639 = vadd.f32 %v1176, %v1638
    %v1640 = vpop.f32.mrb[0].mxu0
    %1641 = vmatprep.mubr.bf16.mxu0 0
    %1642 = vmatmul.mubr.bf16.gmra.mrb[0].mxu0 %v271
    %v1643 = vpop.f32.mrb[0].mxu0
    %v1644 = vadd.f32 %v1177, %v1643
    %v1645 = vpop.f32.mrb[0].mxu0
    %v1646 = vpop.f32.mrb[0].mxu0
    %v1647 = vadd.f32 %v1178, %v1646
    %v1648 = vpop.f32.mrb[0].mxu0
    %1649 = vmatprep.mubr.bf16.mxu0 0
    %1650 = vmatmul.mubr.bf16.gmra.mrb[0].mxu0 %v274
    %v1651 = vpop.f32.mrb[0].mxu0
    %v1652 = vadd.f32 %v1179, %v1651
    %v1653 = vpop.f32.mrb[0].mxu0
    %v1654 = vpop.f32.mrb[0].mxu0
    %v1655 = vadd.f32 %v1180, %v1654
    %v1656 = vpop.f32.mrb[0].mxu0
    %1657 = vmatprep.mubr.bf16.mxu0 0
    %1658 = vmatmul.mubr.bf16.gmra.mrb[0].mxu0 %v277
    %v1659 = vpop.f32.mrb[0].mxu0
    %v1660 = vadd.f32 %v1181, %v1659
    %v1661 = vpop.f32.mrb[0].mxu0
    %v1662 = vpop.f32.mrb[0].mxu0
    %v1663 = vadd.f32 %v1182, %v1662
    %v1664 = vpop.f32.mrb[0].mxu0
    %1665 = vdwg.mxu0
    %v1666 = vpack.c.bf16 %v1639, %v1636
    %v1667 = vpack.c.bf16 %v1647, %v1644
    %v1668 = vpack.c.bf16 %v1655, %v1652
    %v1669 = vpack.c.bf16 %v1663, %v1660
    %1670 = vmatprep.subr.bf16.mxu0 0
    %1671 = vmatpush1.bf16.msra.mxu0 %v1666
    %1672 = vmatprep.subr.bf16.mxu0 0
    %1673 = vmatpush1.bf16.msra.mxu0 %v1667
    %1674 = vmatprep.subr.bf16.mxu0 0
    %1675 = vmatpush1.bf16.msra.mxu0 %v1668
    %1676 = vmatprep.subr.bf16.mxu0 0
    %1677 = vmatpush1.bf16.msra.mxu0 %v1669
    %1678 = vmatprep.subr.bf16.mxu0 0
    %1679 = vmatpush1.bf16.msra.mxu0 0
    %1680 = vmatprep.subr.bf16.mxu0 0
    %1681 = vmatpush1.bf16.msra.mxu0 0
    %1682 = vmatprep.subr.bf16.mxu0 0
    %1683 = vmatpush1.bf16.msra.mxu0 0
    %1684 = vmatprep.subr.bf16.mxu0 0
    %1685 = vmatpush1.bf16.msra.mxu0 0
    %1686 = vmatprep.subr.bf16.mxu0 0
    %1687 = vmatpush1.bf16.msra.mxu0 0
    %1688 = vmatprep.subr.bf16.mxu0 0
    %1689 = vmatpush1.bf16.msra.mxu0 0
    %1690 = vmatprep.subr.bf16.mxu0 0
    %1691 = vmatpush1.bf16.msra.mxu0 0
    %1692 = vmatprep.subr.bf16.mxu0 0
    %1693 = vmatpush1.bf16.msra.mxu0 0
    %1694 = vmatprep.subr.bf16.mxu0 0
    %1695 = vmatpush1.bf16.msra.mxu0 0
    %1696 = vmatprep.subr.bf16.mxu0 0
    %1697 = vmatpush1.bf16.msra.mxu0 0
    %1698 = vmatprep.subr.bf16.mxu0 0
    %1699 = vmatpush1.bf16.msra.mxu0 0
    %1700 = vmatprep.subr.bf16.mxu0 0
    %1701 = vmatpush1.bf16.msra.mxu0 0
    %1702 = vmatprep.mubr.bf16.mxu0 0
    %1703 = vmatmul.mubr.bf16.gmra.mrb[0].mxu0 %v268
    %v1704 = vpop.f32.mrb[0].mxu0
    %v1705 = vadd.f32 %v1175, %v1704
    %v1706 = vpop.f32.mrb[0].mxu0
    %v1707 = vpop.f32.mrb[0].mxu0
    %v1708 = vadd.f32 %v1176, %v1707
    %v1709 = vpop.f32.mrb[0].mxu0
    %1710 = vmatprep.mubr.bf16.mxu0 0
    %1711 = vmatmul.mubr.bf16.gmra.mrb[0].mxu0 %v271
    %v1712 = vpop.f32.mrb[0].mxu0
    %v1713 = vadd.f32 %v1177, %v1712
    %v1714 = vpop.f32.mrb[0].mxu0
    %v1715 = vpop.f32.mrb[0].mxu0
    %v1716 = vadd.f32 %v1178, %v1715
    %v1717 = vpop.f32.mrb[0].mxu0
    %1718 = vmatprep.mubr.bf16.mxu0 0
    %1719 = vmatmul.mubr.bf16.gmra.mrb[0].mxu0 %v274
    %v1720 = vpop.f32.mrb[0].mxu0
    %v1721 = vadd.f32 %v1179, %v1720
    %v1722 = vpop.f32.mrb[0].mxu0
    %v1723 = vpop.f32.mrb[0].mxu0
    %v1724 = vadd.f32 %v1180, %v1723
    %v1725 = vpop.f32.mrb[0].mxu0
    %1726 = vmatprep.mubr.bf16.mxu0 0
    %1727 = vmatmul.mubr.bf16.gmra.mrb[0].mxu0 %v277
    %v1728 = vpop.f32.mrb[0].mxu0
    %v1729 = vadd.f32 %v1181, %v1728
    %v1730 = vpop.f32.mrb[0].mxu0
    %v1731 = vpop.f32.mrb[0].mxu0
    %v1732 = vadd.f32 %v1182, %v1731
    %v1733 = vpop.f32.mrb[0].mxu0
    %1734 = vdwg.mxu0
    %v1735 = vpack.c.bf16 %v1708, %v1705
    %v1736 = vpack.c.bf16 %v1716, %v1713
    %v1737 = vpack.c.bf16 %v1724, %v1721
    %v1738 = vpack.c.bf16 %v1732, %v1729
    %1739 = vmatprep.subr.bf16.mxu0 0
    %1740 = vmatpush1.bf16.msra.mxu0 %v1735
    %1741 = vmatprep.subr.bf16.mxu0 0
    %1742 = vmatpush1.bf16.msra.mxu0 %v1736
    %1743 = vmatprep.subr.bf16.mxu0 0
    %1744 = vmatpush1.bf16.msra.mxu0 %v1737
    %1745 = vmatprep.subr.bf16.mxu0 0
    %1746 = vmatpush1.bf16.msra.mxu0 %v1738
    %1747 = vmatprep.subr.bf16.mxu0 0
    %1748 = vmatpush1.bf16.msra.mxu0 0
    %1749 = vmatprep.subr.bf16.mxu0 0
    %1750 = vmatpush1.bf16.msra.mxu0 0
    %1751 = vmatprep.subr.bf16.mxu0 0
    %1752 = vmatpush1.bf16.msra.mxu0 0
    %1753 = vmatprep.subr.bf16.mxu0 0
    %1754 = vmatpush1.bf16.msra.mxu0 0
    %1755 = vmatprep.subr.bf16.mxu0 0
    %1756 = vmatpush1.bf16.msra.mxu0 0
    %1757 = vmatprep.subr.bf16.mxu0 0
    %1758 = vmatpush1.bf16.msra.mxu0 0
    %1759 = vmatprep.subr.bf16.mxu0 0
    %1760 = vmatpush1.bf16.msra.mxu0 0
    %1761 = vmatprep.subr.bf16.mxu0 0
    %1762 = vmatpush1.bf16.msra.mxu0 0
    %1763 = vmatprep.subr.bf16.mxu0 0
    %1764 = vmatpush1.bf16.msra.mxu0 0
    %1765 = vmatprep.subr.bf16.mxu0 0
    %1766 = vmatpush1.bf16.msra.mxu0 0
    %1767 = vmatprep.subr.bf16.mxu0 0
    %1768 = vmatpush1.bf16.msra.mxu0 0
    %1769 = vmatprep.subr.bf16.mxu0 0
    %1770 = vmatpush1.bf16.msra.mxu0 0
    %1771 = vmatprep.mubr.bf16.mxu0 0
    %1772 = vmatmul.mubr.bf16.gmra.mrb[0].mxu0 %v268
    %v1773 = vpop.f32.mrb[0].mxu0
    %v1774 = vadd.f32 %v1175, %v1773
    %v1775 = vpop.f32.mrb[0].mxu0
    %v1776 = vpop.f32.mrb[0].mxu0
    %v1777 = vadd.f32 %v1176, %v1776
    %v1778 = vpop.f32.mrb[0].mxu0
    %1779 = vmatprep.mubr.bf16.mxu0 0
    %1780 = vmatmul.mubr.bf16.gmra.mrb[0].mxu0 %v271
    %v1781 = vpop.f32.mrb[0].mxu0
    %v1782 = vadd.f32 %v1177, %v1781
    %v1783 = vpop.f32.mrb[0].mxu0
    %v1784 = vpop.f32.mrb[0].mxu0
    %v1785 = vadd.f32 %v1178, %v1784
    %v1786 = vpop.f32.mrb[0].mxu0
    %1787 = vmatprep.mubr.bf16.mxu0 0
    %1788 = vmatmul.mubr.bf16.gmra.mrb[0].mxu0 %v274
    %v1789 = vpop.f32.mrb[0].mxu0
    %v1790 = vadd.f32 %v1179, %v1789
    %v1791 = vpop.f32.mrb[0].mxu0
    %v1792 = vpop.f32.mrb[0].mxu0
    %v1793 = vadd.f32 %v1180, %v1792
    %v1794 = vpop.f32.mrb[0].mxu0
    %1795 = vmatprep.mubr.bf16.mxu0 0
    %1796 = vmatmul.mubr.bf16.gmra.mrb[0].mxu0 %v277
    %v1797 = vpop.f32.mrb[0].mxu0
    %v1798 = vadd.f32 %v1181, %v1797
    %v1799 = vpop.f32.mrb[0].mxu0
    %v1800 = vpop.f32.mrb[0].mxu0
    %v1801 = vadd.f32 %v1182, %v1800
    %v1802 = vpop.f32.mrb[0].mxu0
    %1803 = vdwg.mxu0
    %v1804 = vpack.c.bf16 %v1777, %v1774
    %v1805 = vpack.c.bf16 %v1785, %v1782
    %v1806 = vpack.c.bf16 %v1793, %v1790
    %v1807 = vpack.c.bf16 %v1801, %v1798
    %1808 = vmatprep.subr.bf16.mxu0 0
    %1809 = vmatpush1.bf16.msra.mxu0 %v1804
    %1810 = vmatprep.subr.bf16.mxu0 0
    %1811 = vmatpush1.bf16.msra.mxu0 %v1805
    %1812 = vmatprep.subr.bf16.mxu0 0
    %1813 = vmatpush1.bf16.msra.mxu0 %v1806
    %1814 = vmatprep.subr.bf16.mxu0 0
    %1815 = vmatpush1.bf16.msra.mxu0 %v1807
    %1816 = vmatprep.subr.bf16.mxu0 0
    %1817 = vmatpush1.bf16.msra.mxu0 0
    %1818 = vmatprep.subr.bf16.mxu0 0
    %1819 = vmatpush1.bf16.msra.mxu0 0
    %1820 = vmatprep.subr.bf16.mxu0 0
    %1821 = vmatpush1.bf16.msra.mxu0 0
    %1822 = vmatprep.subr.bf16.mxu0 0
    %1823 = vmatpush1.bf16.msra.mxu0 0
    %1824 = vmatprep.subr.bf16.mxu0 0
    %1825 = vmatpush1.bf16.msra.mxu0 0
    %1826 = vmatprep.subr.bf16.mxu0 0
    %1827 = vmatpush1.bf16.msra.mxu0 0
    %1828 = vmatprep.subr.bf16.mxu0 0
    %1829 = vmatpush1.bf16.msra.mxu0 0
    %1830 = vmatprep.subr.bf16.mxu0 0
    %1831 = vmatpush1.bf16.msra.mxu0 0
    %1832 = vmatprep.subr.bf16.mxu0 0
    %1833 = vmatpush1.bf16.msra.mxu0 0
    %1834 = vmatprep.subr.bf16.mxu0 0
    %1835 = vmatpush1.bf16.msra.mxu0 0
    %1836 = vmatprep.subr.bf16.mxu0 0
    %1837 = vmatpush1.bf16.msra.mxu0 0
    %1838 = vmatprep.subr.bf16.mxu0 0
    %1839 = vmatpush1.bf16.msra.mxu0 0
    %1840 = vmatprep.mubr.bf16.mxu0 0
    %1841 = vmatmul.mubr.bf16.gmra.mrb[0].mxu0 %v268
    %v1842 = vpop.f32.mrb[0].mxu0
    %v1843 = vadd.f32 %v1175, %v1842
    %v1844 = vpop.f32.mrb[0].mxu0
    %v1845 = vpop.f32.mrb[0].mxu0
    %v1846 = vadd.f32 %v1176, %v1845
    %v1847 = vpop.f32.mrb[0].mxu0
    %1848 = vmatprep.mubr.bf16.mxu0 0
    %1849 = vmatmul.mubr.bf16.gmra.mrb[0].mxu0 %v271
    %v1850 = vpop.f32.mrb[0].mxu0
    %v1851 = vadd.f32 %v1177, %v1850
    %v1852 = vpop.f32.mrb[0].mxu0
    %v1853 = vpop.f32.mrb[0].mxu0
    %v1854 = vadd.f32 %v1178, %v1853
    %v1855 = vpop.f32.mrb[0].mxu0
    %1856 = vmatprep.mubr.bf16.mxu0 0
    %1857 = vmatmul.mubr.bf16.gmra.mrb[0].mxu0 %v274
    %v1858 = vpop.f32.mrb[0].mxu0
    %v1859 = vadd.f32 %v1179, %v1858
    %v1860 = vpop.f32.mrb[0].mxu0
    %v1861 = vpop.f32.mrb[0].mxu0
    %v1862 = vadd.f32 %v1180, %v1861
    %v1863 = vpop.f32.mrb[0].mxu0
    %1864 = vmatprep.mubr.bf16.mxu0 0
    %1865 = vmatmul.mubr.bf16.gmra.mrb[0].mxu0 %v277
    %v1866 = vpop.f32.mrb[0].mxu0
    %v1867 = vadd.f32 %v1181, %v1866
    %v1868 = vpop.f32.mrb[0].mxu0
    %v1869 = vpop.f32.mrb[0].mxu0
    %v1870 = vadd.f32 %v1182, %v1869
    %v1871 = vpop.f32.mrb[0].mxu0
    %1872 = vdwg.mxu0
    %v1873 = vld [vmem:[%s8] sm:$0x1]
    %v1874 = vld [vmem:[#allocation9] sm:$0x1]
    %v1875 = vadd.f32 %v1843, %v1846
    %v1876 = vadd.f32 %v1875, %v1851
    %v1877 = vadd.f32 %v1876, %v1854
    %v1878 = vadd.f32 %v1877, %v1859
    %v1879 = vadd.f32 %v1878, %v1862
    %v1880 = vadd.f32 %v1879, %v1867
    %v1881 = vadd.f32 %v1880, %v1870
    %v1882 = vrot.slane %v1881, 4
    %v1883 = vadd.f32 %v1881, %v1882
    %v1884 = vrot.slane %v1883, 2
    %v1885 = vadd.f32 %v1883, %v1884
    %v1886 = vrot.slane %v1885, 1
    %v1887 = vadd.f32 %v1885, %v1886
    %v1888 = vmul.f32 %v1887, %v980
    %v1889 = vmul.f32 %v1843, %v1843
    %v1890 = vmul.f32 %v1846, %v1846
    %v1891 = vmul.f32 %v1851, %v1851
    %v1892 = vmul.f32 %v1854, %v1854
    %v1893 = vmul.f32 %v1859, %v1859
    %v1894 = vmul.f32 %v1862, %v1862
    %v1895 = vmul.f32 %v1867, %v1867
    %v1896 = vmul.f32 %v1870, %v1870
    %v1897 = vadd.f32 %v1889, %v1890
    %v1898 = vadd.f32 %v1897, %v1891
    %v1899 = vadd.f32 %v1898, %v1892
    %v1900 = vadd.f32 %v1899, %v1893
    %v1901 = vadd.f32 %v1900, %v1894
    %v1902 = vadd.f32 %v1901, %v1895
    %v1903 = vadd.f32 %v1902, %v1896
    %v1904 = vrot.slane %v1903, 4
    %v1905 = vadd.f32 %v1903, %v1904
    %v1906 = vrot.slane %v1905, 2
    %v1907 = vadd.f32 %v1905, %v1906
    %v1908 = vrot.slane %v1907, 1
    %v1909 = vadd.f32 %v1907, %v1908
    %v1910 = vmul.f32 %v1909, %v980
    %v1911 = vmul.f32 %v1888, %v1888
    %v1912 = vsub.f32 %v1910, %v1911
    %v1913 = vadd.f32 %v1912, 1e-05
    %v1914 = vrsqrt.pop %v1913
    %v1915 = vmul.f32 %v1873, %v1914
    %v1916 = vmul.f32 %v1888, %v1915
    %v1917 = vsub.f32 %v1874, %v1916
    %v1919 = vlaneseq
    %v1920 = vshrl.u32 %v1919, 7
    %v1921 = vsub.s32 0, %v1920
    %v1922 = vrot.slane %v1915, %v1921
    %v1924 = vmul.f32 %v1843, %v1922
    %v1925 = vmul.f32 %v1846, %v1922
    %v1926 = vmul.f32 %v1851, %v1922
    %v1927 = vmul.f32 %v1854, %v1922
    %v1928 = vmul.f32 %v1859, %v1922
    %v1929 = vmul.f32 %v1862, %v1922
    %v1930 = vmul.f32 %v1867, %v1922
    %v1931 = vmul.f32 %v1870, %v1922
    %v1933 = vlaneseq
    %v1934 = vshrl.u32 %v1933, 7
    %v1935 = vsub.s32 0, %v1934
    %v1936 = vrot.slane %v1917, %v1935
    %v1938 = vadd.f32 %v1924, %v1936
    %v1939 = vadd.f32 %v1925, %v1936
    %v1940 = vadd.f32 %v1926, %v1936
    %v1941 = vadd.f32 %v1927, %v1936
    %v1942 = vadd.f32 %v1928, %v1936
    %v1943 = vadd.f32 %v1929, %v1936
    %v1944 = vadd.f32 %v1930, %v1936
    %v1945 = vadd.f32 %v1931, %v1936
    %v1946 = vmax.f32 %v1938, 0.0
    %v1947 = vmax.f32 %v1939, 0.0
    %v1948 = vmax.f32 %v1940, 0.0
    %v1949 = vmax.f32 %v1941, 0.0
    %v1950 = vmax.f32 %v1942, 0.0
    %v1951 = vmax.f32 %v1943, 0.0
    %v1952 = vmax.f32 %v1944, 0.0
    %v1953 = vmax.f32 %v1945, 0.0
    %v1954 = vld [vmem:[%s10] sm:$0xff]
    %v1955 = vld [vmem:[%s10 + $0x8] sm:$0xff]
    %v1956 = vld [vmem:[%s10 + $0x10] sm:$0xff]
    %v1957 = vld [vmem:[%s10 + $0x18] sm:$0xff]
    %v1958 = vld [vmem:[%s10 + $0x20] sm:$0xff]
    %v1959 = vld [vmem:[%s10 + $0x28] sm:$0xff]
    %v1960 = vld [vmem:[%s10 + $0x30] sm:$0xff]
    %v1961 = vld [vmem:[%s10 + $0x38] sm:$0xff]
    %v1962 = vld [vmem:[%s10 + $0x40] sm:$0xff]
    %v1963 = vld [vmem:[%s10 + $0x48] sm:$0xff]
    %v1964 = vld [vmem:[%s10 + $0x50] sm:$0xff]
    %v1965 = vld [vmem:[%s10 + $0x58] sm:$0xff]
    %v1966 = vld [vmem:[%s10 + $0x60] sm:$0xff]
    %v1967 = vld [vmem:[%s10 + $0x68] sm:$0xff]
    %v1968 = vld [vmem:[%s10 + $0x70] sm:$0xff]
    %v1969 = vld [vmem:[%s10 + $0x78] sm:$0xff]
    %v1970 = vld [vmem:[%s11] sm:$0x1]
    %v1972 = vlaneseq
    %v1973 = vshrl.u32 %v1972, 7
    %v1974 = vsub.s32 0, %v1973
    %v1975 = vrot.slane %v1970, %v1974
    %1977 = vmatprep.subr.mxu0 0.0
    %1978 = vmatpush1.msra.mxu0 %v1954
    %1979 = vmatprep.subr.mxu0 0.0
    %1980 = vmatpush1.msra.mxu0 %v1955
    %1981 = vmatprep.subr.mxu0 0.0
    %1982 = vmatpush1.msra.mxu0 %v1956
    %1983 = vmatprep.subr.mxu0 0.0
    %1984 = vmatpush1.msra.mxu0 %v1957
    %1985 = vmatprep.subr.mxu0 0.0
    %1986 = vmatpush1.msra.mxu0 %v1958
    %1987 = vmatprep.subr.mxu0 0.0
    %1988 = vmatpush1.msra.mxu0 %v1959
    %1989 = vmatprep.subr.mxu0 0.0
    %1990 = vmatpush1.msra.mxu0 %v1960
    %1991 = vmatprep.subr.mxu0 0.0
    %1992 = vmatpush1.msra.mxu0 %v1961
    %1993 = vmatprep.subr.mxu0 0.0
    %1994 = vmatpush1.msra.mxu0 %v1962
    %1995 = vmatprep.subr.mxu0 0.0
    %1996 = vmatpush1.msra.mxu0 %v1963
    %1997 = vmatprep.subr.mxu0 0.0
    %1998 = vmatpush1.msra.mxu0 %v1964
    %1999 = vmatprep.subr.mxu0 0.0
    %2000 = vmatpush1.msra.mxu0 %v1965
    %2001 = vmatprep.subr.mxu0 0.0
    %2002 = vmatpush1.msra.mxu0 %v1966
    %2003 = vmatprep.subr.mxu0 0.0
    %2004 = vmatpush1.msra.mxu0 %v1967
    %2005 = vmatprep.subr.mxu0 0.0
    %2006 = vmatpush1.msra.mxu0 %v1968
    %2007 = vmatprep.subr.mxu0 0.0
    %2008 = vmatpush1.msra.mxu0 %v1969
    %2009 = vmatprep.subr.mxu0 0.0
    %2010 = vmatpush1.msra.mxu0 0.0
    %2011 = vmatprep.subr.mxu0 0.0
    %2012 = vmatpush1.msra.mxu0 0.0
    %2013 = vmatprep.subr.mxu0 0.0
    %2014 = vmatpush1.msra.mxu0 0.0
    %2015 = vmatprep.subr.mxu0 0.0
    %2016 = vmatpush1.msra.mxu0 0.0
    %2017 = vmatprep.subr.mxu0 0.0
    %2018 = vmatpush1.msra.mxu0 0.0
    %2019 = vmatprep.subr.mxu0 0.0
    %2020 = vmatpush1.msra.mxu0 0.0
    %2021 = vmatprep.subr.mxu0 0.0
    %2022 = vmatpush1.msra.mxu0 0.0
    %2023 = vmatprep.subr.mxu0 0.0
    %2024 = vmatpush1.msra.mxu0 0.0
    %2025 = vmatprep.subr.mxu0 0.0
    %2026 = vmatpush1.msra.mxu0 0.0
    %2027 = vmatprep.subr.mxu0 0.0
    %2028 = vmatpush1.msra.mxu0 0.0
    %2029 = vmatprep.subr.mxu0 0.0
    %2030 = vmatpush1.msra.mxu0 0.0
    %2031 = vmatprep.subr.mxu0 0.0
    %2032 = vmatpush1.msra.mxu0 0.0
    %2033 = vmatprep.subr.mxu0 0.0
    %2034 = vmatpush1.msra.mxu0 0.0
    %2035 = vmatprep.subr.mxu0 0.0
    %2036 = vmatpush1.msra.mxu0 0.0
    %2037 = vmatprep.subr.mxu0 0.0
    %2038 = vmatpush1.msra.mxu0 0.0
    %2039 = vmatprep.subr.mxu0 0.0
    %2040 = vmatpush1.msra.mxu0 0.0
    %2041 = vmatprep.mubr.f32.mxu0 0.0
    %2042 = vmatmul.mubr.f32.gmra.mrb[0].mxu0 %v1946
    %v2043 = vpop.f32.mrb[0].mxu0
    %v2044 = vadd.f32 %v1975, %v2043
    %v2045 = vpop.f32.mrb[0].mxu0
    %2046 = vmatprep.mubr.f32.mxu0 0.0
    %2047 = vmatmul.mubr.f32.gmra.mrb[0].mxu0 %v1947
    %v2048 = vpop.f32.mrb[0].mxu0
    %v2049 = vadd.f32 %v1975, %v2048
    %v2050 = vpop.f32.mrb[0].mxu0
    %2051 = vmatprep.mubr.f32.mxu0 0.0
    %2052 = vmatmul.mubr.f32.gmra.mrb[0].mxu0 %v1948
    %v2053 = vpop.f32.mrb[0].mxu0
    %v2054 = vadd.f32 %v1975, %v2053
    %v2055 = vpop.f32.mrb[0].mxu0
    %2056 = vmatprep.mubr.f32.mxu0 0.0
    %2057 = vmatmul.mubr.f32.gmra.mrb[0].mxu0 %v1949
    %v2058 = vpop.f32.mrb[0].mxu0
    %v2059 = vadd.f32 %v1975, %v2058
    %v2060 = vpop.f32.mrb[0].mxu0
    %2061 = vmatprep.mubr.f32.mxu0 0.0
    %2062 = vmatmul.mubr.f32.gmra.mrb[0].mxu0 %v1950
    %v2063 = vpop.f32.mrb[0].mxu0
    %v2064 = vadd.f32 %v1975, %v2063
    %v2065 = vpop.f32.mrb[0].mxu0
    %2066 = vmatprep.mubr.f32.mxu0 0.0
    %2067 = vmatmul.mubr.f32.gmra.mrb[0].mxu0 %v1951
    %v2068 = vpop.f32.mrb[0].mxu0
    %v2069 = vadd.f32 %v1975, %v2068
    %v2070 = vpop.f32.mrb[0].mxu0
    %2071 = vmatprep.mubr.f32.mxu0 0.0
    %2072 = vmatmul.mubr.f32.gmra.mrb[0].mxu0 %v1952
    %v2073 = vpop.f32.mrb[0].mxu0
    %v2074 = vadd.f32 %v1975, %v2073
    %v2075 = vpop.f32.mrb[0].mxu0
    %2076 = vmatprep.mubr.f32.mxu0 0.0
    %2077 = vmatmul.mubr.f32.gmra.mrb[0].mxu0 %v1953
    %v2078 = vpop.f32.mrb[0].mxu0
    %v2079 = vadd.f32 %v1975, %v2078
    %v2080 = vpop.f32.mrb[0].mxu0
    %2081 = vdwg.mxu0
    %v2082 = vmul.f32 %v2044, 0.1
    %v2083 = vmul.f32 %v2049, 0.1
    %v2084 = vmul.f32 %v2054, 0.1
    %v2085 = vmul.f32 %v2059, 0.1
    %v2086 = vmul.f32 %v2064, 0.1
    %v2087 = vmul.f32 %v2069, 0.1
    %v2088 = vmul.f32 %v2074, 0.1
    %v2089 = vmul.f32 %v2079, 0.1
    %v2090 = vpack.c.bf16 %v2049, %v2044
    %v2091 = vpack.c.bf16 %v2059, %v2054
    %v2092 = vpack.c.bf16 %v2069, %v2064
    %v2093 = vpack.c.bf16 %v2079, %v2074
    %2094 = vmatprep.subr.bf16.mxu0 0
    %2095 = vmatpush1.bf16.msra.mxu0 %v2090
    %2096 = vmatprep.subr.bf16.mxu0 0
    %2097 = vmatpush1.bf16.msra.mxu0 %v2091
    %2098 = vmatprep.subr.bf16.mxu0 0
    %2099 = vmatpush1.bf16.msra.mxu0 %v2092
    %2100 = vmatprep.subr.bf16.mxu0 0
    %2101 = vmatpush1.bf16.msra.mxu0 %v2093
    %2102 = vmatprep.subr.bf16.mxu0 0
    %2103 = vmatpush1.bf16.msra.mxu0 0
    %2104 = vmatprep.subr.bf16.mxu0 0
    %2105 = vmatpush1.bf16.msra.mxu0 0
    %2106 = vmatprep.subr.bf16.mxu0 0
    %2107 = vmatpush1.bf16.msra.mxu0 0
    %2108 = vmatprep.subr.bf16.mxu0 0
    %2109 = vmatpush1.bf16.msra.mxu0 0
    %2110 = vmatprep.subr.bf16.mxu0 0
    %2111 = vmatpush1.bf16.msra.mxu0 0
    %2112 = vmatprep.subr.bf16.mxu0 0
    %2113 = vmatpush1.bf16.msra.mxu0 0
    %2114 = vmatprep.subr.bf16.mxu0 0
    %2115 = vmatpush1.bf16.msra.mxu0 0
    %2116 = vmatprep.subr.bf16.mxu0 0
    %2117 = vmatpush1.bf16.msra.mxu0 0
    %2118 = vmatprep.subr.bf16.mxu0 0
    %2119 = vmatpush1.bf16.msra.mxu0 0
    %2120 = vmatprep.subr.bf16.mxu0 0
    %2121 = vmatpush1.bf16.msra.mxu0 0
    %2122 = vmatprep.subr.bf16.mxu0 0
    %2123 = vmatpush1.bf16.msra.mxu0 0
    %2124 = vmatprep.subr.bf16.mxu0 0
    %2125 = vmatpush1.bf16.msra.mxu0 0
    %2126 = vmatprep.mubr.bf16.mxu0 0
    %2127 = vmatmul.mubr.bf16.gmra.mrb[0].mxu0 %v268
    %v2128 = vpop.f32.mrb[0].mxu0
    %v2129 = vadd.f32 %v2082, %v2128
    %v2130 = vpop.f32.mrb[0].mxu0
    %v2131 = vpop.f32.mrb[0].mxu0
    %v2132 = vadd.f32 %v2083, %v2131
    %v2133 = vpop.f32.mrb[0].mxu0
    %2134 = vmatprep.mubr.bf16.mxu0 0
    %2135 = vmatmul.mubr.bf16.gmra.mrb[0].mxu0 %v271
    %v2136 = vpop.f32.mrb[0].mxu0
    %v2137 = vadd.f32 %v2084, %v2136
    %v2138 = vpop.f32.mrb[0].mxu0
    %v2139 = vpop.f32.mrb[0].mxu0
    %v2140 = vadd.f32 %v2085, %v2139
    %v2141 = vpop.f32.mrb[0].mxu0
    %2142 = vmatprep.mubr.bf16.mxu0 0
    %2143 = vmatmul.mubr.bf16.gmra.mrb[0].mxu0 %v274
    %v2144 = vpop.f32.mrb[0].mxu0
    %v2145 = vadd.f32 %v2086, %v2144
    %v2146 = vpop.f32.mrb[0].mxu0
    %v2147 = vpop.f32.mrb[0].mxu0
    %v2148 = vadd.f32 %v2087, %v2147
    %v2149 = vpop.f32.mrb[0].mxu0
    %2150 = vmatprep.mubr.bf16.mxu0 0
    %2151 = vmatmul.mubr.bf16.gmra.mrb[0].mxu0 %v277
    %v2152 = vpop.f32.mrb[0].mxu0
    %v2153 = vadd.f32 %v2088, %v2152
    %v2154 = vpop.f32.mrb[0].mxu0
    %v2155 = vpop.f32.mrb[0].mxu0
    %v2156 = vadd.f32 %v2089, %v2155
    %v2157 = vpop.f32.mrb[0].mxu0
    %2158 = vdwg.mxu0
    %v2159 = vpack.c.bf16 %v2132, %v2129
    %v2160 = vpack.c.bf16 %v2140, %v2137
    %v2161 = vpack.c.bf16 %v2148, %v2145
    %v2162 = vpack.c.bf16 %v2156, %v2153
    %2163 = vmatprep.subr.bf16.mxu0 0
    %2164 = vmatpush1.bf16.msra.mxu0 %v2159
    %2165 = vmatprep.subr.bf16.mxu0 0
    %2166 = vmatpush1.bf16.msra.mxu0 %v2160
    %2167 = vmatprep.subr.bf16.mxu0 0
    %2168 = vmatpush1.bf16.msra.mxu0 %v2161
    %2169 = vmatprep.subr.bf16.mxu0 0
    %2170 = vmatpush1.bf16.msra.mxu0 %v2162
    %2171 = vmatprep.subr.bf16.mxu0 0
    %2172 = vmatpush1.bf16.msra.mxu0 0
    %2173 = vmatprep.subr.bf16.mxu0 0
    %2174 = vmatpush1.bf16.msra.mxu0 0
    %2175 = vmatprep.subr.bf16.mxu0 0
    %2176 = vmatpush1.bf16.msra.mxu0 0
    %2177 = vmatprep.subr.bf16.mxu0 0
    %2178 = vmatpush1.bf16.msra.mxu0 0
    %2179 = vmatprep.subr.bf16.mxu0 0
    %2180 = vmatpush1.bf16.msra.mxu0 0
    %2181 = vmatprep.subr.bf16.mxu0 0
    %2182 = vmatpush1.bf16.msra.mxu0 0
    %2183 = vmatprep.subr.bf16.mxu0 0
    %2184 = vmatpush1.bf16.msra.mxu0 0
    %2185 = vmatprep.subr.bf16.mxu0 0
    %2186 = vmatpush1.bf16.msra.mxu0 0
    %2187 = vmatprep.subr.bf16.mxu0 0
    %2188 = vmatpush1.bf16.msra.mxu0 0
    %2189 = vmatprep.subr.bf16.mxu0 0
    %2190 = vmatpush1.bf16.msra.mxu0 0
    %2191 = vmatprep.subr.bf16.mxu0 0
    %2192 = vmatpush1.bf16.msra.mxu0 0
    %2193 = vmatprep.subr.bf16.mxu0 0
    %2194 = vmatpush1.bf16.msra.mxu0 0
    %2195 = vmatprep.mubr.bf16.mxu0 0
    %2196 = vmatmul.mubr.bf16.gmra.mrb[0].mxu0 %v268
    %v2197 = vpop.f32.mrb[0].mxu0
    %v2198 = vadd.f32 %v2082, %v2197
    %v2199 = vpop.f32.mrb[0].mxu0
    %v2200 = vpop.f32.mrb[0].mxu0
    %v2201 = vadd.f32 %v2083, %v2200
    %v2202 = vpop.f32.mrb[0].mxu0
    %2203 = vmatprep.mubr.bf16.mxu0 0
    %2204 = vmatmul.mubr.bf16.gmra.mrb[0].mxu0 %v271
    %v2205 = vpop.f32.mrb[0].mxu0
    %v2206 = vadd.f32 %v2084, %v2205
    %v2207 = vpop.f32.mrb[0].mxu0
    %v2208 = vpop.f32.mrb[0].mxu0
    %v2209 = vadd.f32 %v2085, %v2208
    %v2210 = vpop.f32.mrb[0].mxu0
    %2211 = vmatprep.mubr.bf16.mxu0 0
    %2212 = vmatmul.mubr.bf16.gmra.mrb[0].mxu0 %v274
    %v2213 = vpop.f32.mrb[0].mxu0
    %v2214 = vadd.f32 %v2086, %v2213
    %v2215 = vpop.f32.mrb[0].mxu0
    %v2216 = vpop.f32.mrb[0].mxu0
    %v2217 = vadd.f32 %v2087, %v2216
    %v2218 = vpop.f32.mrb[0].mxu0
    %2219 = vmatprep.mubr.bf16.mxu0 0
    %2220 = vmatmul.mubr.bf16.gmra.mrb[0].mxu0 %v277
    %v2221 = vpop.f32.mrb[0].mxu0
    %v2222 = vadd.f32 %v2088, %v2221
    %v2223 = vpop.f32.mrb[0].mxu0
    %v2224 = vpop.f32.mrb[0].mxu0
    %v2225 = vadd.f32 %v2089, %v2224
    %v2226 = vpop.f32.mrb[0].mxu0
    %2227 = vdwg.mxu0
    %v2228 = vpack.c.bf16 %v2201, %v2198
    %v2229 = vpack.c.bf16 %v2209, %v2206
    %v2230 = vpack.c.bf16 %v2217, %v2214
    %v2231 = vpack.c.bf16 %v2225, %v2222
    %2232 = vmatprep.subr.bf16.mxu0 0
    %2233 = vmatpush1.bf16.msra.mxu0 %v2228
    %2234 = vmatprep.subr.bf16.mxu0 0
    %2235 = vmatpush1.bf16.msra.mxu0 %v2229
    %2236 = vmatprep.subr.bf16.mxu0 0
    %2237 = vmatpush1.bf16.msra.mxu0 %v2230
    %2238 = vmatprep.subr.bf16.mxu0 0
    %2239 = vmatpush1.bf16.msra.mxu0 %v2231
    %2240 = vmatprep.subr.bf16.mxu0 0
    %2241 = vmatpush1.bf16.msra.mxu0 0
    %2242 = vmatprep.subr.bf16.mxu0 0
    %2243 = vmatpush1.bf16.msra.mxu0 0
    %2244 = vmatprep.subr.bf16.mxu0 0
    %2245 = vmatpush1.bf16.msra.mxu0 0
    %2246 = vmatprep.subr.bf16.mxu0 0
    %2247 = vmatpush1.bf16.msra.mxu0 0
    %2248 = vmatprep.subr.bf16.mxu0 0
    %2249 = vmatpush1.bf16.msra.mxu0 0
    %2250 = vmatprep.subr.bf16.mxu0 0
    %2251 = vmatpush1.bf16.msra.mxu0 0
    %2252 = vmatprep.subr.bf16.mxu0 0
    %2253 = vmatpush1.bf16.msra.mxu0 0
    %2254 = vmatprep.subr.bf16.mxu0 0
    %2255 = vmatpush1.bf16.msra.mxu0 0
    %2256 = vmatprep.subr.bf16.mxu0 0
    %2257 = vmatpush1.bf16.msra.mxu0 0
    %2258 = vmatprep.subr.bf16.mxu0 0
    %2259 = vmatpush1.bf16.msra.mxu0 0
    %2260 = vmatprep.subr.bf16.mxu0 0
    %2261 = vmatpush1.bf16.msra.mxu0 0
    %2262 = vmatprep.subr.bf16.mxu0 0
    %2263 = vmatpush1.bf16.msra.mxu0 0
    %2264 = vmatprep.mubr.bf16.mxu0 0
    %2265 = vmatmul.mubr.bf16.gmra.mrb[0].mxu0 %v268
    %v2266 = vpop.f32.mrb[0].mxu0
    %v2267 = vadd.f32 %v2082, %v2266
    %v2268 = vpop.f32.mrb[0].mxu0
    %v2269 = vpop.f32.mrb[0].mxu0
    %v2270 = vadd.f32 %v2083, %v2269
    %v2271 = vpop.f32.mrb[0].mxu0
    %2272 = vmatprep.mubr.bf16.mxu0 0
    %2273 = vmatmul.mubr.bf16.gmra.mrb[0].mxu0 %v271
    %v2274 = vpop.f32.mrb[0].mxu0
    %v2275 = vadd.f32 %v2084, %v2274
    %v2276 = vpop.f32.mrb[0].mxu0
    %v2277 = vpop.f32.mrb[0].mxu0
    %v2278 = vadd.f32 %v2085, %v2277
    %v2279 = vpop.f32.mrb[0].mxu0
    %2280 = vmatprep.mubr.bf16.mxu0 0
    %2281 = vmatmul.mubr.bf16.gmra.mrb[0].mxu0 %v274
    %v2282 = vpop.f32.mrb[0].mxu0
    %v2283 = vadd.f32 %v2086, %v2282
    %v2284 = vpop.f32.mrb[0].mxu0
    %v2285 = vpop.f32.mrb[0].mxu0
    %v2286 = vadd.f32 %v2087, %v2285
    %v2287 = vpop.f32.mrb[0].mxu0
    %2288 = vmatprep.mubr.bf16.mxu0 0
    %2289 = vmatmul.mubr.bf16.gmra.mrb[0].mxu0 %v277
    %v2290 = vpop.f32.mrb[0].mxu0
    %v2291 = vadd.f32 %v2088, %v2290
    %v2292 = vpop.f32.mrb[0].mxu0
    %v2293 = vpop.f32.mrb[0].mxu0
    %v2294 = vadd.f32 %v2089, %v2293
    %v2295 = vpop.f32.mrb[0].mxu0
    %2296 = vdwg.mxu0
    %v2297 = vpack.c.bf16 %v2270, %v2267
    %v2298 = vpack.c.bf16 %v2278, %v2275
    %v2299 = vpack.c.bf16 %v2286, %v2283
    %v2300 = vpack.c.bf16 %v2294, %v2291
    %2301 = vmatprep.subr.bf16.mxu0 0
    %2302 = vmatpush1.bf16.msra.mxu0 %v2297
    %2303 = vmatprep.subr.bf16.mxu0 0
    %2304 = vmatpush1.bf16.msra.mxu0 %v2298
    %2305 = vmatprep.subr.bf16.mxu0 0
    %2306 = vmatpush1.bf16.msra.mxu0 %v2299
    %2307 = vmatprep.subr.bf16.mxu0 0
    %2308 = vmatpush1.bf16.msra.mxu0 %v2300
    %2309 = vmatprep.subr.bf16.mxu0 0
    %2310 = vmatpush1.bf16.msra.mxu0 0
    %2311 = vmatprep.subr.bf16.mxu0 0
    %2312 = vmatpush1.bf16.msra.mxu0 0
    %2313 = vmatprep.subr.bf16.mxu0 0
    %2314 = vmatpush1.bf16.msra.mxu0 0
    %2315 = vmatprep.subr.bf16.mxu0 0
    %2316 = vmatpush1.bf16.msra.mxu0 0
    %2317 = vmatprep.subr.bf16.mxu0 0
    %2318 = vmatpush1.bf16.msra.mxu0 0
    %2319 = vmatprep.subr.bf16.mxu0 0
    %2320 = vmatpush1.bf16.msra.mxu0 0
    %2321 = vmatprep.subr.bf16.mxu0 0
    %2322 = vmatpush1.bf16.msra.mxu0 0
    %2323 = vmatprep.subr.bf16.mxu0 0
    %2324 = vmatpush1.bf16.msra.mxu0 0
    %2325 = vmatprep.subr.bf16.mxu0 0
    %2326 = vmatpush1.bf16.msra.mxu0 0
    %2327 = vmatprep.subr.bf16.mxu0 0
    %2328 = vmatpush1.bf16.msra.mxu0 0
    %2329 = vmatprep.subr.bf16.mxu0 0
    %2330 = vmatpush1.bf16.msra.mxu0 0
    %2331 = vmatprep.subr.bf16.mxu0 0
    %2332 = vmatpush1.bf16.msra.mxu0 0
    %2333 = vmatprep.mubr.bf16.mxu0 0
    %2334 = vmatmul.mubr.bf16.gmra.mrb[0].mxu0 %v268
    %v2335 = vpop.f32.mrb[0].mxu0
    %v2336 = vadd.f32 %v2082, %v2335
    %v2337 = vpop.f32.mrb[0].mxu0
    %v2338 = vpop.f32.mrb[0].mxu0
    %v2339 = vadd.f32 %v2083, %v2338
    %v2340 = vpop.f32.mrb[0].mxu0
    %2341 = vmatprep.mubr.bf16.mxu0 0
    %2342 = vmatmul.mubr.bf16.gmra.mrb[0].mxu0 %v271
    %v2343 = vpop.f32.mrb[0].mxu0
    %v2344 = vadd.f32 %v2084, %v2343
    %v2345 = vpop.f32.mrb[0].mxu0
    %v2346 = vpop.f32.mrb[0].mxu0
    %v2347 = vadd.f32 %v2085, %v2346
    %v2348 = vpop.f32.mrb[0].mxu0
    %2349 = vmatprep.mubr.bf16.mxu0 0
    %2350 = vmatmul.mubr.bf16.gmra.mrb[0].mxu0 %v274
    %v2351 = vpop.f32.mrb[0].mxu0
    %v2352 = vadd.f32 %v2086, %v2351
    %v2353 = vpop.f32.mrb[0].mxu0
    %v2354 = vpop.f32.mrb[0].mxu0
    %v2355 = vadd.f32 %v2087, %v2354
    %v2356 = vpop.f32.mrb[0].mxu0
    %2357 = vmatprep.mubr.bf16.mxu0 0
    %2358 = vmatmul.mubr.bf16.gmra.mrb[0].mxu0 %v277
    %v2359 = vpop.f32.mrb[0].mxu0
    %v2360 = vadd.f32 %v2088, %v2359
    %v2361 = vpop.f32.mrb[0].mxu0
    %v2362 = vpop.f32.mrb[0].mxu0
    %v2363 = vadd.f32 %v2089, %v2362
    %v2364 = vpop.f32.mrb[0].mxu0
    %2365 = vdwg.mxu0
    %v2366 = vpack.c.bf16 %v2339, %v2336
    %v2367 = vpack.c.bf16 %v2347, %v2344
    %v2368 = vpack.c.bf16 %v2355, %v2352
    %v2369 = vpack.c.bf16 %v2363, %v2360
    %2370 = vmatprep.subr.bf16.mxu0 0
    %2371 = vmatpush1.bf16.msra.mxu0 %v2366
    %2372 = vmatprep.subr.bf16.mxu0 0
    %2373 = vmatpush1.bf16.msra.mxu0 %v2367
    %2374 = vmatprep.subr.bf16.mxu0 0
    %2375 = vmatpush1.bf16.msra.mxu0 %v2368
    %2376 = vmatprep.subr.bf16.mxu0 0
    %2377 = vmatpush1.bf16.msra.mxu0 %v2369
    %2378 = vmatprep.subr.bf16.mxu0 0
    %2379 = vmatpush1.bf16.msra.mxu0 0
    %2380 = vmatprep.subr.bf16.mxu0 0
    %2381 = vmatpush1.bf16.msra.mxu0 0
    %2382 = vmatprep.subr.bf16.mxu0 0
    %2383 = vmatpush1.bf16.msra.mxu0 0
    %2384 = vmatprep.subr.bf16.mxu0 0
    %2385 = vmatpush1.bf16.msra.mxu0 0
    %2386 = vmatprep.subr.bf16.mxu0 0
    %2387 = vmatpush1.bf16.msra.mxu0 0
    %2388 = vmatprep.subr.bf16.mxu0 0
    %2389 = vmatpush1.bf16.msra.mxu0 0
    %2390 = vmatprep.subr.bf16.mxu0 0
    %2391 = vmatpush1.bf16.msra.mxu0 0
    %2392 = vmatprep.subr.bf16.mxu0 0
    %2393 = vmatpush1.bf16.msra.mxu0 0
    %2394 = vmatprep.subr.bf16.mxu0 0
    %2395 = vmatpush1.bf16.msra.mxu0 0
    %2396 = vmatprep.subr.bf16.mxu0 0
    %2397 = vmatpush1.bf16.msra.mxu0 0
    %2398 = vmatprep.subr.bf16.mxu0 0
    %2399 = vmatpush1.bf16.msra.mxu0 0
    %2400 = vmatprep.subr.bf16.mxu0 0
    %2401 = vmatpush1.bf16.msra.mxu0 0
    %2402 = vmatprep.mubr.bf16.mxu0 0
    %2403 = vmatmul.mubr.bf16.gmra.mrb[0].mxu0 %v268
    %v2404 = vpop.f32.mrb[0].mxu0
    %v2405 = vadd.f32 %v2082, %v2404
    %v2406 = vpop.f32.mrb[0].mxu0
    %v2407 = vpop.f32.mrb[0].mxu0
    %v2408 = vadd.f32 %v2083, %v2407
    %v2409 = vpop.f32.mrb[0].mxu0
    %2410 = vmatprep.mubr.bf16.mxu0 0
    %2411 = vmatmul.mubr.bf16.gmra.mrb[0].mxu0 %v271
    %v2412 = vpop.f32.mrb[0].mxu0
    %v2413 = vadd.f32 %v2084, %v2412
    %v2414 = vpop.f32.mrb[0].mxu0
    %v2415 = vpop.f32.mrb[0].mxu0
    %v2416 = vadd.f32 %v2085, %v2415
    %v2417 = vpop.f32.mrb[0].mxu0
    %2418 = vmatprep.mubr.bf16.mxu0 0
    %2419 = vmatmul.mubr.bf16.gmra.mrb[0].mxu0 %v274
    %v2420 = vpop.f32.mrb[0].mxu0
    %v2421 = vadd.f32 %v2086, %v2420
    %v2422 = vpop.f32.mrb[0].mxu0
    %v2423 = vpop.f32.mrb[0].mxu0
    %v2424 = vadd.f32 %v2087, %v2423
    %v2425 = vpop.f32.mrb[0].mxu0
    %2426 = vmatprep.mubr.bf16.mxu0 0
    %2427 = vmatmul.mubr.bf16.gmra.mrb[0].mxu0 %v277
    %v2428 = vpop.f32.mrb[0].mxu0
    %v2429 = vadd.f32 %v2088, %v2428
    %v2430 = vpop.f32.mrb[0].mxu0
    %v2431 = vpop.f32.mrb[0].mxu0
    %v2432 = vadd.f32 %v2089, %v2431
    %v2433 = vpop.f32.mrb[0].mxu0
    %2434 = vdwg.mxu0
    %v2435 = vpack.c.bf16 %v2408, %v2405
    %v2436 = vpack.c.bf16 %v2416, %v2413
    %v2437 = vpack.c.bf16 %v2424, %v2421
    %v2438 = vpack.c.bf16 %v2432, %v2429
    %2439 = vmatprep.subr.bf16.mxu0 0
    %2440 = vmatpush1.bf16.msra.mxu0 %v2435
    %2441 = vmatprep.subr.bf16.mxu0 0
    %2442 = vmatpush1.bf16.msra.mxu0 %v2436
    %2443 = vmatprep.subr.bf16.mxu0 0
    %2444 = vmatpush1.bf16.msra.mxu0 %v2437
    %2445 = vmatprep.subr.bf16.mxu0 0
    %2446 = vmatpush1.bf16.msra.mxu0 %v2438
    %2447 = vmatprep.subr.bf16.mxu0 0
    %2448 = vmatpush1.bf16.msra.mxu0 0
    %2449 = vmatprep.subr.bf16.mxu0 0
    %2450 = vmatpush1.bf16.msra.mxu0 0
    %2451 = vmatprep.subr.bf16.mxu0 0
    %2452 = vmatpush1.bf16.msra.mxu0 0
    %2453 = vmatprep.subr.bf16.mxu0 0
    %2454 = vmatpush1.bf16.msra.mxu0 0
    %2455 = vmatprep.subr.bf16.mxu0 0
    %2456 = vmatpush1.bf16.msra.mxu0 0
    %2457 = vmatprep.subr.bf16.mxu0 0
    %2458 = vmatpush1.bf16.msra.mxu0 0
    %2459 = vmatprep.subr.bf16.mxu0 0
    %2460 = vmatpush1.bf16.msra.mxu0 0
    %2461 = vmatprep.subr.bf16.mxu0 0
    %2462 = vmatpush1.bf16.msra.mxu0 0
    %2463 = vmatprep.subr.bf16.mxu0 0
    %2464 = vmatpush1.bf16.msra.mxu0 0
    %2465 = vmatprep.subr.bf16.mxu0 0
    %2466 = vmatpush1.bf16.msra.mxu0 0
    %2467 = vmatprep.subr.bf16.mxu0 0
    %2468 = vmatpush1.bf16.msra.mxu0 0
    %2469 = vmatprep.subr.bf16.mxu0 0
    %2470 = vmatpush1.bf16.msra.mxu0 0
    %2471 = vmatprep.mubr.bf16.mxu0 0
    %2472 = vmatmul.mubr.bf16.gmra.mrb[0].mxu0 %v268
    %v2473 = vpop.f32.mrb[0].mxu0
    %v2474 = vadd.f32 %v2082, %v2473
    %v2475 = vpop.f32.mrb[0].mxu0
    %v2476 = vpop.f32.mrb[0].mxu0
    %v2477 = vadd.f32 %v2083, %v2476
    %v2478 = vpop.f32.mrb[0].mxu0
    %2479 = vmatprep.mubr.bf16.mxu0 0
    %2480 = vmatmul.mubr.bf16.gmra.mrb[0].mxu0 %v271
    %v2481 = vpop.f32.mrb[0].mxu0
    %v2482 = vadd.f32 %v2084, %v2481
    %v2483 = vpop.f32.mrb[0].mxu0
    %v2484 = vpop.f32.mrb[0].mxu0
    %v2485 = vadd.f32 %v2085, %v2484
    %v2486 = vpop.f32.mrb[0].mxu0
    %2487 = vmatprep.mubr.bf16.mxu0 0
    %2488 = vmatmul.mubr.bf16.gmra.mrb[0].mxu0 %v274
    %v2489 = vpop.f32.mrb[0].mxu0
    %v2490 = vadd.f32 %v2086, %v2489
    %v2491 = vpop.f32.mrb[0].mxu0
    %v2492 = vpop.f32.mrb[0].mxu0
    %v2493 = vadd.f32 %v2087, %v2492
    %v2494 = vpop.f32.mrb[0].mxu0
    %2495 = vmatprep.mubr.bf16.mxu0 0
    %2496 = vmatmul.mubr.bf16.gmra.mrb[0].mxu0 %v277
    %v2497 = vpop.f32.mrb[0].mxu0
    %v2498 = vadd.f32 %v2088, %v2497
    %v2499 = vpop.f32.mrb[0].mxu0
    %v2500 = vpop.f32.mrb[0].mxu0
    %v2501 = vadd.f32 %v2089, %v2500
    %v2502 = vpop.f32.mrb[0].mxu0
    %2503 = vdwg.mxu0
    %v2504 = vpack.c.bf16 %v2477, %v2474
    %v2505 = vpack.c.bf16 %v2485, %v2482
    %v2506 = vpack.c.bf16 %v2493, %v2490
    %v2507 = vpack.c.bf16 %v2501, %v2498
    %2508 = vmatprep.subr.bf16.mxu0 0
    %2509 = vmatpush1.bf16.msra.mxu0 %v2504
    %2510 = vmatprep.subr.bf16.mxu0 0
    %2511 = vmatpush1.bf16.msra.mxu0 %v2505
    %2512 = vmatprep.subr.bf16.mxu0 0
    %2513 = vmatpush1.bf16.msra.mxu0 %v2506
    %2514 = vmatprep.subr.bf16.mxu0 0
    %2515 = vmatpush1.bf16.msra.mxu0 %v2507
    %2516 = vmatprep.subr.bf16.mxu0 0
    %2517 = vmatpush1.bf16.msra.mxu0 0
    %2518 = vmatprep.subr.bf16.mxu0 0
    %2519 = vmatpush1.bf16.msra.mxu0 0
    %2520 = vmatprep.subr.bf16.mxu0 0
    %2521 = vmatpush1.bf16.msra.mxu0 0
    %2522 = vmatprep.subr.bf16.mxu0 0
    %2523 = vmatpush1.bf16.msra.mxu0 0
    %2524 = vmatprep.subr.bf16.mxu0 0
    %2525 = vmatpush1.bf16.msra.mxu0 0
    %2526 = vmatprep.subr.bf16.mxu0 0
    %2527 = vmatpush1.bf16.msra.mxu0 0
    %2528 = vmatprep.subr.bf16.mxu0 0
    %2529 = vmatpush1.bf16.msra.mxu0 0
    %2530 = vmatprep.subr.bf16.mxu0 0
    %2531 = vmatpush1.bf16.msra.mxu0 0
    %2532 = vmatprep.subr.bf16.mxu0 0
    %2533 = vmatpush1.bf16.msra.mxu0 0
    %2534 = vmatprep.subr.bf16.mxu0 0
    %2535 = vmatpush1.bf16.msra.mxu0 0
    %2536 = vmatprep.subr.bf16.mxu0 0
    %2537 = vmatpush1.bf16.msra.mxu0 0
    %2538 = vmatprep.subr.bf16.mxu0 0
    %2539 = vmatpush1.bf16.msra.mxu0 0
    %2540 = vmatprep.mubr.bf16.mxu0 0
    %2541 = vmatmul.mubr.bf16.gmra.mrb[0].mxu0 %v268
    %v2542 = vpop.f32.mrb[0].mxu0
    %v2543 = vadd.f32 %v2082, %v2542
    %v2544 = vpop.f32.mrb[0].mxu0
    %v2545 = vpop.f32.mrb[0].mxu0
    %v2546 = vadd.f32 %v2083, %v2545
    %v2547 = vpop.f32.mrb[0].mxu0
    %2548 = vmatprep.mubr.bf16.mxu0 0
    %2549 = vmatmul.mubr.bf16.gmra.mrb[0].mxu0 %v271
    %v2550 = vpop.f32.mrb[0].mxu0
    %v2551 = vadd.f32 %v2084, %v2550
    %v2552 = vpop.f32.mrb[0].mxu0
    %v2553 = vpop.f32.mrb[0].mxu0
    %v2554 = vadd.f32 %v2085, %v2553
    %v2555 = vpop.f32.mrb[0].mxu0
    %2556 = vmatprep.mubr.bf16.mxu0 0
    %2557 = vmatmul.mubr.bf16.gmra.mrb[0].mxu0 %v274
    %v2558 = vpop.f32.mrb[0].mxu0
    %v2559 = vadd.f32 %v2086, %v2558
    %v2560 = vpop.f32.mrb[0].mxu0
    %v2561 = vpop.f32.mrb[0].mxu0
    %v2562 = vadd.f32 %v2087, %v2561
    %v2563 = vpop.f32.mrb[0].mxu0
    %2564 = vmatprep.mubr.bf16.mxu0 0
    %2565 = vmatmul.mubr.bf16.gmra.mrb[0].mxu0 %v277
    %v2566 = vpop.f32.mrb[0].mxu0
    %v2567 = vadd.f32 %v2088, %v2566
    %v2568 = vpop.f32.mrb[0].mxu0
    %v2569 = vpop.f32.mrb[0].mxu0
    %v2570 = vadd.f32 %v2089, %v2569
    %v2571 = vpop.f32.mrb[0].mxu0
    %2572 = vdwg.mxu0
    %v2573 = vpack.c.bf16 %v2546, %v2543
    %v2574 = vpack.c.bf16 %v2554, %v2551
    %v2575 = vpack.c.bf16 %v2562, %v2559
    %v2576 = vpack.c.bf16 %v2570, %v2567
    %2577 = vmatprep.subr.bf16.mxu0 0
    %2578 = vmatpush1.bf16.msra.mxu0 %v2573
    %2579 = vmatprep.subr.bf16.mxu0 0
    %2580 = vmatpush1.bf16.msra.mxu0 %v2574
    %2581 = vmatprep.subr.bf16.mxu0 0
    %2582 = vmatpush1.bf16.msra.mxu0 %v2575
    %2583 = vmatprep.subr.bf16.mxu0 0
    %2584 = vmatpush1.bf16.msra.mxu0 %v2576
    %2585 = vmatprep.subr.bf16.mxu0 0
    %2586 = vmatpush1.bf16.msra.mxu0 0
    %2587 = vmatprep.subr.bf16.mxu0 0
    %2588 = vmatpush1.bf16.msra.mxu0 0
    %2589 = vmatprep.subr.bf16.mxu0 0
    %2590 = vmatpush1.bf16.msra.mxu0 0
    %2591 = vmatprep.subr.bf16.mxu0 0
    %2592 = vmatpush1.bf16.msra.mxu0 0
    %2593 = vmatprep.subr.bf16.mxu0 0
    %2594 = vmatpush1.bf16.msra.mxu0 0
    %2595 = vmatprep.subr.bf16.mxu0 0
    %2596 = vmatpush1.bf16.msra.mxu0 0
    %2597 = vmatprep.subr.bf16.mxu0 0
    %2598 = vmatpush1.bf16.msra.mxu0 0
    %2599 = vmatprep.subr.bf16.mxu0 0
    %2600 = vmatpush1.bf16.msra.mxu0 0
    %2601 = vmatprep.subr.bf16.mxu0 0
    %2602 = vmatpush1.bf16.msra.mxu0 0
    %2603 = vmatprep.subr.bf16.mxu0 0
    %2604 = vmatpush1.bf16.msra.mxu0 0
    %2605 = vmatprep.subr.bf16.mxu0 0
    %2606 = vmatpush1.bf16.msra.mxu0 0
    %2607 = vmatprep.subr.bf16.mxu0 0
    %2608 = vmatpush1.bf16.msra.mxu0 0
    %2609 = vmatprep.mubr.bf16.mxu0 0
    %2610 = vmatmul.mubr.bf16.gmra.mrb[0].mxu0 %v268
    %v2611 = vpop.f32.mrb[0].mxu0
    %v2612 = vadd.f32 %v2082, %v2611
    %v2613 = vpop.f32.mrb[0].mxu0
    %v2614 = vpop.f32.mrb[0].mxu0
    %v2615 = vadd.f32 %v2083, %v2614
    %v2616 = vpop.f32.mrb[0].mxu0
    %2617 = vmatprep.mubr.bf16.mxu0 0
    %2618 = vmatmul.mubr.bf16.gmra.mrb[0].mxu0 %v271
    %v2619 = vpop.f32.mrb[0].mxu0
    %v2620 = vadd.f32 %v2084, %v2619
    %v2621 = vpop.f32.mrb[0].mxu0
    %v2622 = vpop.f32.mrb[0].mxu0
    %v2623 = vadd.f32 %v2085, %v2622
    %v2624 = vpop.f32.mrb[0].mxu0
    %2625 = vmatprep.mubr.bf16.mxu0 0
    %2626 = vmatmul.mubr.bf16.gmra.mrb[0].mxu0 %v274
    %v2627 = vpop.f32.mrb[0].mxu0
    %v2628 = vadd.f32 %v2086, %v2627
    %v2629 = vpop.f32.mrb[0].mxu0
    %v2630 = vpop.f32.mrb[0].mxu0
    %v2631 = vadd.f32 %v2087, %v2630
    %v2632 = vpop.f32.mrb[0].mxu0
    %2633 = vmatprep.mubr.bf16.mxu0 0
    %2634 = vmatmul.mubr.bf16.gmra.mrb[0].mxu0 %v277
    %v2635 = vpop.f32.mrb[0].mxu0
    %v2636 = vadd.f32 %v2088, %v2635
    %v2637 = vpop.f32.mrb[0].mxu0
    %v2638 = vpop.f32.mrb[0].mxu0
    %v2639 = vadd.f32 %v2089, %v2638
    %v2640 = vpop.f32.mrb[0].mxu0
    %2641 = vdwg.mxu0
    %v2642 = vpack.c.bf16 %v2615, %v2612
    %v2643 = vpack.c.bf16 %v2623, %v2620
    %v2644 = vpack.c.bf16 %v2631, %v2628
    %v2645 = vpack.c.bf16 %v2639, %v2636
    %2646 = vmatprep.subr.bf16.mxu0 0
    %2647 = vmatpush1.bf16.msra.mxu0 %v2642
    %2648 = vmatprep.subr.bf16.mxu0 0
    %2649 = vmatpush1.bf16.msra.mxu0 %v2643
    %2650 = vmatprep.subr.bf16.mxu0 0
    %2651 = vmatpush1.bf16.msra.mxu0 %v2644
    %2652 = vmatprep.subr.bf16.mxu0 0
    %2653 = vmatpush1.bf16.msra.mxu0 %v2645
    %2654 = vmatprep.subr.bf16.mxu0 0
    %2655 = vmatpush1.bf16.msra.mxu0 0
    %2656 = vmatprep.subr.bf16.mxu0 0
    %2657 = vmatpush1.bf16.msra.mxu0 0
    %2658 = vmatprep.subr.bf16.mxu0 0
    %2659 = vmatpush1.bf16.msra.mxu0 0
    %2660 = vmatprep.subr.bf16.mxu0 0
    %2661 = vmatpush1.bf16.msra.mxu0 0
    %2662 = vmatprep.subr.bf16.mxu0 0
    %2663 = vmatpush1.bf16.msra.mxu0 0
    %2664 = vmatprep.subr.bf16.mxu0 0
    %2665 = vmatpush1.bf16.msra.mxu0 0
    %2666 = vmatprep.subr.bf16.mxu0 0
    %2667 = vmatpush1.bf16.msra.mxu0 0
    %2668 = vmatprep.subr.bf16.mxu0 0
    %2669 = vmatpush1.bf16.msra.mxu0 0
    %2670 = vmatprep.subr.bf16.mxu0 0
    %2671 = vmatpush1.bf16.msra.mxu0 0
    %2672 = vmatprep.subr.bf16.mxu0 0
    %2673 = vmatpush1.bf16.msra.mxu0 0
    %2674 = vmatprep.subr.bf16.mxu0 0
    %2675 = vmatpush1.bf16.msra.mxu0 0
    %2676 = vmatprep.subr.bf16.mxu0 0
    %2677 = vmatpush1.bf16.msra.mxu0 0
    %2678 = vmatprep.mubr.bf16.mxu0 0
    %2679 = vmatmul.mubr.bf16.gmra.mrb[0].mxu0 %v268
    %v2680 = vpop.f32.mrb[0].mxu0
    %v2681 = vadd.f32 %v2082, %v2680
    %v2682 = vpop.f32.mrb[0].mxu0
    %v2683 = vpop.f32.mrb[0].mxu0
    %v2684 = vadd.f32 %v2083, %v2683
    %v2685 = vpop.f32.mrb[0].mxu0
    %2686 = vmatprep.mubr.bf16.mxu0 0
    %2687 = vmatmul.mubr.bf16.gmra.mrb[0].mxu0 %v271
    %v2688 = vpop.f32.mrb[0].mxu0
    %v2689 = vadd.f32 %v2084, %v2688
    %v2690 = vpop.f32.mrb[0].mxu0
    %v2691 = vpop.f32.mrb[0].mxu0
    %v2692 = vadd.f32 %v2085, %v2691
    %v2693 = vpop.f32.mrb[0].mxu0
    %2694 = vmatprep.mubr.bf16.mxu0 0
    %2695 = vmatmul.mubr.bf16.gmra.mrb[0].mxu0 %v274
    %v2696 = vpop.f32.mrb[0].mxu0
    %v2697 = vadd.f32 %v2086, %v2696
    %v2698 = vpop.f32.mrb[0].mxu0
    %v2699 = vpop.f32.mrb[0].mxu0
    %v2700 = vadd.f32 %v2087, %v2699
    %v2701 = vpop.f32.mrb[0].mxu0
    %2702 = vmatprep.mubr.bf16.mxu0 0
    %2703 = vmatmul.mubr.bf16.gmra.mrb[0].mxu0 %v277
    %v2704 = vpop.f32.mrb[0].mxu0
    %v2705 = vadd.f32 %v2088, %v2704
    %v2706 = vpop.f32.mrb[0].mxu0
    %v2707 = vpop.f32.mrb[0].mxu0
    %v2708 = vadd.f32 %v2089, %v2707
    %v2709 = vpop.f32.mrb[0].mxu0
    %2710 = vdwg.mxu0
    %v2711 = vpack.c.bf16 %v2684, %v2681
    %v2712 = vpack.c.bf16 %v2692, %v2689
    %v2713 = vpack.c.bf16 %v2700, %v2697
    %v2714 = vpack.c.bf16 %v2708, %v2705
    %2715 = vmatprep.subr.bf16.mxu0 0
    %2716 = vmatpush1.bf16.msra.mxu0 %v2711
    %2717 = vmatprep.subr.bf16.mxu0 0
    %2718 = vmatpush1.bf16.msra.mxu0 %v2712
    %2719 = vmatprep.subr.bf16.mxu0 0
    %2720 = vmatpush1.bf16.msra.mxu0 %v2713
    %2721 = vmatprep.subr.bf16.mxu0 0
    %2722 = vmatpush1.bf16.msra.mxu0 %v2714
    %2723 = vmatprep.subr.bf16.mxu0 0
    %2724 = vmatpush1.bf16.msra.mxu0 0
    %2725 = vmatprep.subr.bf16.mxu0 0
    %2726 = vmatpush1.bf16.msra.mxu0 0
    %2727 = vmatprep.subr.bf16.mxu0 0
    %2728 = vmatpush1.bf16.msra.mxu0 0
    %2729 = vmatprep.subr.bf16.mxu0 0
    %2730 = vmatpush1.bf16.msra.mxu0 0
    %2731 = vmatprep.subr.bf16.mxu0 0
    %2732 = vmatpush1.bf16.msra.mxu0 0
    %2733 = vmatprep.subr.bf16.mxu0 0
    %2734 = vmatpush1.bf16.msra.mxu0 0
    %2735 = vmatprep.subr.bf16.mxu0 0
    %2736 = vmatpush1.bf16.msra.mxu0 0
    %2737 = vmatprep.subr.bf16.mxu0 0
    %2738 = vmatpush1.bf16.msra.mxu0 0
    %2739 = vmatprep.subr.bf16.mxu0 0
    %2740 = vmatpush1.bf16.msra.mxu0 0
    %2741 = vmatprep.subr.bf16.mxu0 0
    %2742 = vmatpush1.bf16.msra.mxu0 0
    %2743 = vmatprep.subr.bf16.mxu0 0
    %2744 = vmatpush1.bf16.msra.mxu0 0
    %2745 = vmatprep.subr.bf16.mxu0 0
    %2746 = vmatpush1.bf16.msra.mxu0 0
    %2747 = vmatprep.mubr.bf16.mxu0 0
    %2748 = vmatmul.mubr.bf16.gmra.mrb[0].mxu0 %v268
    %v2749 = vpop.f32.mrb[0].mxu0
    %v2750 = vadd.f32 %v2082, %v2749
    %v2751 = vpop.f32.mrb[0].mxu0
    %v2752 = vpop.f32.mrb[0].mxu0
    %v2753 = vadd.f32 %v2083, %v2752
    %v2754 = vpop.f32.mrb[0].mxu0
    %2755 = vmatprep.mubr.bf16.mxu0 0
    %2756 = vmatmul.mubr.bf16.gmra.mrb[0].mxu0 %v271
    %v2757 = vpop.f32.mrb[0].mxu0
    %v2758 = vadd.f32 %v2084, %v2757
    %v2759 = vpop.f32.mrb[0].mxu0
    %v2760 = vpop.f32.mrb[0].mxu0
    %v2761 = vadd.f32 %v2085, %v2760
    %v2762 = vpop.f32.mrb[0].mxu0
    %2763 = vmatprep.mubr.bf16.mxu0 0
    %2764 = vmatmul.mubr.bf16.gmra.mrb[0].mxu0 %v274
    %v2765 = vpop.f32.mrb[0].mxu0
    %v2766 = vadd.f32 %v2086, %v2765
    %v2767 = vpop.f32.mrb[0].mxu0
    %v2768 = vpop.f32.mrb[0].mxu0
    %v2769 = vadd.f32 %v2087, %v2768
    %v2770 = vpop.f32.mrb[0].mxu0
    %2771 = vmatprep.mubr.bf16.mxu0 0
    %2772 = vmatmul.mubr.bf16.gmra.mrb[0].mxu0 %v277
    %v2773 = vpop.f32.mrb[0].mxu0
    %v2774 = vadd.f32 %v2088, %v2773
    %v2775 = vpop.f32.mrb[0].mxu0
    %v2776 = vpop.f32.mrb[0].mxu0
    %v2777 = vadd.f32 %v2089, %v2776
    %v2778 = vpop.f32.mrb[0].mxu0
    %2779 = vdwg.mxu0
    %v2780 = vld [vmem:[%s12] sm:$0x1]
    %v2781 = vld [vmem:[%s13] sm:$0x1]
    %v2782 = vadd.f32 %v2750, %v2753
    %v2783 = vadd.f32 %v2782, %v2758
    %v2784 = vadd.f32 %v2783, %v2761
    %v2785 = vadd.f32 %v2784, %v2766
    %v2786 = vadd.f32 %v2785, %v2769
    %v2787 = vadd.f32 %v2786, %v2774
    %v2788 = vadd.f32 %v2787, %v2777
    %v2789 = vrot.slane %v2788, 4
    %v2790 = vadd.f32 %v2788, %v2789
    %v2791 = vrot.slane %v2790, 2
    %v2792 = vadd.f32 %v2790, %v2791
    %v2793 = vrot.slane %v2792, 1
    %v2794 = vadd.f32 %v2792, %v2793
    %v2795 = vmul.f32 %v2794, %v980
    %v2796 = vmul.f32 %v2750, %v2750
    %v2797 = vmul.f32 %v2753, %v2753
    %v2798 = vmul.f32 %v2758, %v2758
    %v2799 = vmul.f32 %v2761, %v2761
    %v2800 = vmul.f32 %v2766, %v2766
    %v2801 = vmul.f32 %v2769, %v2769
    %v2802 = vmul.f32 %v2774, %v2774
    %v2803 = vmul.f32 %v2777, %v2777
    %v2804 = vadd.f32 %v2796, %v2797
    %v2805 = vadd.f32 %v2804, %v2798
    %v2806 = vadd.f32 %v2805, %v2799
    %v2807 = vadd.f32 %v2806, %v2800
    %v2808 = vadd.f32 %v2807, %v2801
    %v2809 = vadd.f32 %v2808, %v2802
    %v2810 = vadd.f32 %v2809, %v2803
    %v2811 = vrot.slane %v2810, 4
    %v2812 = vadd.f32 %v2810, %v2811
    %v2813 = vrot.slane %v2812, 2
    %v2814 = vadd.f32 %v2812, %v2813
    %v2815 = vrot.slane %v2814, 1
    %v2816 = vadd.f32 %v2814, %v2815
    %v2817 = vmul.f32 %v2816, %v980
    %v2818 = vmul.f32 %v2795, %v2795
    %v2819 = vsub.f32 %v2817, %v2818
    %v2820 = vadd.f32 %v2819, 1e-05
    %v2821 = vrsqrt.pop %v2820
    %v2822 = vmul.f32 %v2780, %v2821
    %v2823 = vmul.f32 %v2795, %v2822
    %v2824 = vsub.f32 %v2781, %v2823
    %v2826 = vlaneseq
    %v2827 = vshrl.u32 %v2826, 7
    %v2828 = vsub.s32 0, %v2827
    %v2829 = vrot.slane %v2822, %v2828
    %v2831 = vmul.f32 %v2750, %v2829
    %v2832 = vmul.f32 %v2753, %v2829
    %v2833 = vmul.f32 %v2758, %v2829
    %v2834 = vmul.f32 %v2761, %v2829
    %v2835 = vmul.f32 %v2766, %v2829
    %v2836 = vmul.f32 %v2769, %v2829
    %v2837 = vmul.f32 %v2774, %v2829
    %v2838 = vmul.f32 %v2777, %v2829
    %v2840 = vlaneseq
    %v2841 = vshrl.u32 %v2840, 7
    %v2842 = vsub.s32 0, %v2841
    %v2843 = vrot.slane %v2824, %v2842
    %v2845 = vadd.f32 %v2831, %v2843
    %v2846 = vadd.f32 %v2832, %v2843
    %v2847 = vadd.f32 %v2833, %v2843
    %v2848 = vadd.f32 %v2834, %v2843
    %v2849 = vadd.f32 %v2835, %v2843
    %v2850 = vadd.f32 %v2836, %v2843
    %v2851 = vadd.f32 %v2837, %v2843
    %v2852 = vadd.f32 %v2838, %v2843
    %2853 = vst [vmem:[#allocation10] sm:$0xff] %v2845
    %2854 = vst [vmem:[#allocation10 + $0x8] sm:$0xff] %v2846
    %2855 = vst [vmem:[#allocation10 + $0x10] sm:$0xff] %v2847
    %2856 = vst [vmem:[#allocation10 + $0x18] sm:$0xff] %v2848
    %2857 = vst [vmem:[#allocation10 + $0x20] sm:$0xff] %v2849
    %2858 = vst [vmem:[#allocation10 + $0x28] sm:$0xff] %v2850
    %2859 = vst [vmem:[#allocation10 + $0x30] sm:$0xff] %v2851
    %2860 = vst [vmem:[#allocation10 + $0x38] sm:$0xff] %v2852
    // Predicated region
    $region70: #{tpu_custom_call.1} parent=1 // pred_check
      _
    $region71: #{tpu_custom_call.1} parent=1 // pred_check_branch
      %2862 = sbr.rel (0) target = $region73
    $region72: #{tpu_custom_call.1} parent=1 // pred_region
      %s2864 = ssub.s32 1024, 1024
      %2865 = vsyncadd [#allocation6], %s2864
      %s2866 = sshll.u32 [#allocation10], 4
      %s2867 = int_to_ptr.vmem [resolvable:$true] %s2866
      %2872 = dma.vmem_to_hbm [thread:$0]  %s2867, 1024, %s14, [#allocation6], 128, 128, 8
    $region73: #{tpu_custom_call.1} parent=1 // pred_fallthru
      _
    // Predicated region
    $region74: #{tpu_custom_call.1} parent=1 // pred_check
      _
    $region75: #{tpu_custom_call.1} parent=1 // pred_check_branch
      %2874 = sbr.rel (0) target = $region77
    $region76: #{tpu_custom_call.1} parent=1 // pred_region
      %2875 = dma.done [#allocation6], 1024
    $region77: #{tpu_custom_call.1} parent=1 // pred_fallthru
      _
    %2876 = vsyncpa [#allocation5], 1
    %2877 = vsyncpa [#allocation8], 1
    %2878 = vsyncpa [#allocation6], 1
  %2879 = vsyncmov [#allocation3]
  %s2880 = vpop.sfrf %2879
  %p2881 = scmp.eq.s32.totalorder %s2880, 0
  %p2882 = pneg %p2881
  %2884 = shalt.err (%p2882)

</llo_original>
